<compile_context>
chip_gen: v6e
topology: v6e:2x2x1
jax: 0.10.0
libtpu: 0.0.40
codegen_flags: <defaults>
</compile_context>

<pallas_src>
import numpy as np
import jax
import jax.numpy as jnp
from jax import lax
from jax.experimental import pallas as pl
from jax.experimental.pallas import tpu as pltpu


def _round_up(x, m):
    return ((x + m - 1) // m) * m


def _make_delay_net_kernel(*, near_idx, far_idx, time_chunk, ring_len, d_max,
                           bt, n_rec_p):
    """Build the serial recurrence kernel.

    near_idx / far_idx: static lists of (weight_index, delay) with
    delay < time_chunk (handled inside the serial step loop) and
    delay >= time_chunk (handled as one chunk-wide batched matmul).
    """

    def kernel(in_cur_ref, wd_ref, rtc_ref, thr_ref,
               raster_ref, vrec_ref, ring_ref):
        c = pl.program_id(1)                    # serial time-chunk index
        t0 = c * time_chunk

        @pl.when(c == 0)
        def _init():                            # fresh state per batch tile
            vrec_ref[...] = jnp.zeros_like(vrec_ref)
            ring_ref[...] = jnp.zeros_like(ring_ref)

        # loop-invariant broadcasts (JAX does not CSE broadcast_in_dim)
        rtc = jnp.broadcast_to(rtc_ref[...], (bt, n_rec_p))
        thr = jnp.broadcast_to(thr_ref[...], (bt, n_rec_p))

        def delayed_slice(t, d, masked):
            # Ring slot (t - d) mod R holds spike_{t-d} when t > d and the
            # zero init when t < d; the where only needs to kill the t == d
            # case (and is skipped entirely in steady-state chunks).
            slot = (t - d + ring_len) % ring_len
            sl = ring_ref[slot]                 # (bt, n_rec_p) bf16
            if masked:
                sl = jnp.where(t > d, sl, jnp.zeros_like(sl))
            return sl

        def run_chunk(masked):
            # --- far delays (d >= Tc): every operand is already in the ring
            #     at chunk start -> one M = Tc*bt matmul per far delay, off
            #     the serial dependency chain, added into the in_cur block.
            if far_idx:
                cur_all = in_cur_ref[...].reshape(time_chunk * bt, n_rec_p)
                for (i, d) in far_idx:
                    rows = [delayed_slice(t0 + j, d, masked)
                            for j in range(time_chunk)]
                    stacked = jnp.concatenate(rows, axis=0)   # (Tc*bt, n_rec_p)
                    cur_all = cur_all + jnp.dot(
                        stacked, wd_ref[i], preferred_element_type=jnp.float32)
                cur_all = cur_all.reshape(time_chunk, bt, n_rec_p)

            # --- serial per-timestep recurrence (near delays only)
            for j in range(time_chunk):
                t = t0 + j
                cur = cur_all[j] if far_idx else in_cur_ref[j]
                for (i, d) in near_idx:
                    sl = delayed_slice(t, d, masked)
                    cur = cur + jnp.dot(sl, wd_ref[i],
                                        preferred_element_type=jnp.float32)

                # leaky integrate, spike (SpikeFunc.forward), soft reset
                v = vrec_ref[...] * rtc + cur
                spike = (v - thr > 0.0).astype(jnp.float32)
                vrec_ref[...] = v - spike * thr

                sp = spike.astype(jnp.bfloat16)  # exact 0/1 in bf16
                raster_ref[j] = sp               # streamed back to HBM
                ring_ref[t % ring_len] = sp      # kept for delayed reads

        # warm-up chunks (some t <= d_max) need the strict "t > d" mask;
        # steady-state chunks read ring slots directly (no selects).
        @pl.when(t0 <= d_max)
        def _warm():
            run_chunk(masked=True)

        @pl.when(t0 > d_max)
        def _steady():
            run_chunk(masked=False)

    return kernel


def delay_network_forward(x_bct, W_i, W_r, W_o, B_r, B_o,
                          tau_rec, tau_out, thr_rec, delays,
                          dt=0.001, time_chunk=16,
                          weight_dtype=jnp.bfloat16):
    """JAX/Pallas equivalent of DelayNetwork.forward (inference path).

    x_bct:  (B, n_in, T) float32 spike raster (PyTorch layout)
    returns (mem_pot_out (B, n_out), rec_spike_raster (B, n_rec, T))
    """
    delays = np.asarray(delays).astype(np.int32)            # (n_rec, n_rec)
    B, n_in, T = map(int, x_bct.shape)
    n_rec = int(W_r.shape[0])
    n_out = int(W_o.shape[0])

    # unique nonzero delays (static, like self.possible_delays; d == 0 dropped)
    possible = [int(d) for d in np.unique(delays) if d != 0]
    assert len(possible) >= 1, "need at least one nonzero delay"
    n_d = len(possible)
    d_max = max(possible)
    ring_len = d_max + 1
    assert ring_len == d_max + 1   # "t > d" semantics rely on this invariant

    # lane/sublane padding: full vregs, lane-dense stores, bf16-tile-friendly B
    n_rec_p = _round_up(n_rec, 128)
    if B >= 256:
        B_p = _round_up(B, 32)
        Bt = B_p // 2            # two batch tiles -> shards across 2 TCs (v7x)
    else:
        B_p = _round_up(B, 16)
        Bt = B_p
    Tc = max(1, min(int(time_chunk), T))
    T_p = _round_up(T, Tc)

    f32 = jnp.float32
    cst = jnp.float32(-dt * 10.0)        # matches torch: cst = -dt * 10
    prec = lax.Precision.HIGHEST

    # --- hoisted input projection, written directly in padded layout ---
    x_tbi = jnp.transpose(x_bct.astype(f32), (2, 0, 1))          # (T, B, n_in)
    x_tbi = jnp.pad(x_tbi, ((0, T_p - T), (0, B_p - B), (0, 0)))
    W_i_p = jnp.pad(W_i.astype(f32), ((0, n_rec_p - n_rec), (0, 0)))
    B_r_p = jnp.pad(B_r.astype(f32), (0, n_rec_p - n_rec))
    in_cur = jnp.einsum('tbi,ri->tbr', x_tbi, W_i_p, precision=prec) + B_r_p

    # --- per-delay masked recurrent weights: wd[k] = (delays == d_k) * W_r.T
    #     (F.linear(s, W_r * mask.T) == s @ (W_r.T * mask))
    masks = np.stack([(delays == d).astype(np.float32) for d in possible], 0)
    wd = jnp.asarray(masks) * jnp.transpose(W_r.astype(f32))[None]
    wd = jnp.pad(wd, ((0, 0), (0, n_rec_p - n_rec), (0, n_rec_p - n_rec)))
    wd = wd.astype(weight_dtype)                       # (n_d, n_rec_p, n_rec_p)

    rec_tc = jnp.broadcast_to(jnp.exp(cst / tau_rec.astype(f32)), (n_rec,))
    rec_tc = jnp.pad(rec_tc, (0, n_rec_p - n_rec), constant_values=1.0)[None]
    thr = jnp.broadcast_to(thr_rec.astype(f32), (n_rec,))
    thr = jnp.pad(thr, (0, n_rec_p - n_rec), constant_values=1.0)[None]

    near_idx = [(i, d) for i, d in enumerate(possible) if d < Tc]
    far_idx = [(i, d) for i, d in enumerate(possible) if d >= Tc]

    # --- explicit VMEM budget (double-buffered streams + weights + scratch) --
    bpe_w = jnp.dtype(weight_dtype).itemsize
    vmem_est = (2 * Tc * Bt * n_rec_p * 4            # in_cur blocks (f32)
                + 2 * Tc * Bt * n_rec_p * 2          # raster blocks (bf16)
                + 2 * n_d * n_rec_p * n_rec_p * bpe_w  # masked W_r^T stacks
                + Bt * n_rec_p * 4                   # mem_pot_rec scratch
                + ring_len * Bt * n_rec_p * 2        # bf16 spike ring
                + 4 * n_rec_p * 4)                   # rtc / thr
    vmem_limit = int(min(64 * 1024 * 1024, max(32 * 1024 * 1024, 2 * vmem_est)))

    grid = (B_p // Bt, T_p // Tc)
    grid_spec = pltpu.PrefetchScalarGridSpec(
        num_scalar_prefetch=0,
        grid=grid,
        in_specs=[
            pl.BlockSpec((Tc, Bt, n_rec_p), lambda b, c: (c, b, 0)),        # input currents
            pl.BlockSpec((n_d, n_rec_p, n_rec_p), lambda b, c: (0, 0, 0)),  # masked W_r^T
            pl.BlockSpec((1, n_rec_p), lambda b, c: (0, 0)),                # rec time const
            pl.BlockSpec((1, n_rec_p), lambda b, c: (0, 0)),                # threshold
        ],
        out_specs=pl.BlockSpec((Tc, Bt, n_rec_p), lambda b, c: (c, b, 0)),  # streamed raster
        scratch_shapes=[
            pltpu.VMEM((Bt, n_rec_p), f32),                  # mem_pot_rec
            pltpu.VMEM((ring_len, Bt, n_rec_p), jnp.bfloat16),  # spike ring
        ],
    )

    kernel = _make_delay_net_kernel(
        near_idx=near_idx, far_idx=far_idx, time_chunk=Tc, ring_len=ring_len,
        d_max=d_max, bt=Bt, n_rec_p=n_rec_p)

    raster_p = pl.pallas_call(
        kernel,
        out_shape=jax.ShapeDtypeStruct((T_p, B_p, n_rec_p), jnp.bfloat16),
        grid_spec=grid_spec,
        compiler_params=pltpu.CompilerParams(
            dimension_semantics=("parallel", "arbitrary"),   # time is serial
            vmem_limit_bytes=vmem_limit),
    )(in_cur, wd, rec_tc, thr)

    raster = raster_p[:T, :B, :n_rec]              # (T, B, n_rec) bf16, exact 0/1

    # --- hoisted output layer: one GEMM + closed-form leaky integration ---
    #     mem_pot_out[T-1] = sum_t out_tc^(T-1-t) * (spikes_t @ W_o^T + B_o)
    out_cur = jnp.einsum('tbr,or->tbo', raster, W_o.astype(f32),
                         precision=prec) + B_o.astype(f32)   # (T, B, n_out)
    out_tc = jnp.broadcast_to(jnp.exp(cst / tau_out.astype(f32)), (n_out,))
    powers = jnp.float32(T - 1) - jnp.arange(T, dtype=f32)   # T-1-t
    w = out_tc[None, :] ** powers[:, None]                   # (T, n_out)
    mem_pot_out = jnp.einsum('to,tbo->bo', w, out_cur)

    # PyTorch returns torch.stack(rec_spike_raster, dim=2) -> (B, n_rec, T)
    rec_spike_raster = jnp.transpose(raster, (1, 2, 0)).astype(f32)
    return mem_pot_out, rec_spike_raster


if __name__ == "__main__":
    # small shapes consistent with DelayNetwork(n_in, n_rec, n_out, delays)
    B, n_in, n_rec, n_out, T = 2, 4, 32, 10, 16
    key = jax.random.PRNGKey(0)
    ks = jax.random.split(key, 6)

    # deterministic "kaiming_uniform"-style parameter init (shapes from __init__)
    bound = float(np.sqrt(2.0) * np.sqrt(3.0 / n_rec))
    W_i = jax.random.uniform(ks[0], (n_rec, n_in), jnp.float32, -bound, bound)
    W_r = jax.random.uniform(ks[1], (n_rec, n_rec), jnp.float32, -bound, bound)
    W_o = jax.random.uniform(ks[2], (n_out, n_rec), jnp.float32, -bound, bound)
    B_r = jnp.zeros((n_rec,), jnp.float32)
    B_o = jnp.zeros((n_out,), jnp.float32)
    tau_rec = jnp.full((1,), 0.2, jnp.float32)
    tau_out = jnp.full((1,), 0.2, jnp.float32)
    thr_rec = jnp.full((1,), 0.5, jnp.float32)

    # delay matrix (buffer 'delays'), integer delays in [0, 4]
    delays = np.asarray(jax.random.randint(ks[3], (n_rec, n_rec), 0, 5),
                        dtype=np.int32)

    # input spike raster (B, n_in, T), ~30% spike probability
    x = (jax.random.uniform(ks[4], (B, n_in, T)) < 0.3).astype(jnp.float32)

    # time_chunk=4 so BOTH the near-delay per-step path (d < Tc) and the
    # far-delay chunk-batched matmul path (d >= Tc, here d = 4) are exercised,
    # along with both the warm-up (masked) and steady-state chunk bodies.
    mem_pot_out, rec_spikes = delay_network_forward(
        x, W_i, W_r, W_o, B_r, B_o, tau_rec, tau_out, thr_rec, delays,
        time_chunk=4)
    jax.block_until_ready((mem_pot_out, rec_spikes))

    assert mem_pot_out.shape == (B, n_out)
    assert rec_spikes.shape == (B, n_rec, T)
    assert bool(jnp.all(jnp.isfinite(mem_pot_out)))
    assert bool(jnp.all((rec_spikes == 0.0) | (rec_spikes == 1.0)))

    cst = jnp.float32(-0.001 * 10.0)
    prec = lax.Precision.HIGHEST

    # Internal consistency: closed-form output integrator vs the reference
    # sequential recurrence, both computed from the kernel's own spike raster.
    out_tc = jnp.exp(cst / tau_out)
    out_cur = jnp.einsum('brt,or->tbo', rec_spikes, W_o, precision=prec) + B_o

    def out_step(mem, cur_t):
        return mem * out_tc + cur_t, None

    ref_out, _ = lax.scan(out_step, jnp.zeros((B, n_out), jnp.float32), out_cur)
    assert bool(jnp.allclose(mem_pot_out, ref_out, rtol=1e-3, atol=1e-3))

    # First two timesteps are purely feedforward (smallest delay is 1 and the
    # recurrence requires the strict t > d): verify spikes against XLA.
    rec_tc = jnp.exp(cst / tau_rec)
    cur0 = jnp.einsum('bi,ri->br', x[:, :, 0], W_i, precision=prec) + B_r
    cur1 = jnp.einsum('bi,ri->br', x[:, :, 1], W_i, precision=prec) + B_r
    v0 = cur0
    s0 = (v0 - thr_rec > 0.0).astype(jnp.float32)
    v0 = v0 - s0 * thr_rec
    v1 = v0 * rec_tc + cur1
    s1 = (v1 - thr_rec > 0.0).astype(jnp.float32)
    assert bool(jnp.array_equal(rec_spikes[:, :, 0], s0))
    assert bool(jnp.array_equal(rec_spikes[:, :, 1], s1))

    print("KERNEL_OK")
</pallas_src>

<mosaic_0001>
module attributes {stable_mosaic.version = 11 : i64} {
  func.func @kernel(%arg0: i32, %arg1: i32, %arg2: memref<4x16x128xf32, #tpu.memory_space<vmem>>, %arg3: memref<4x128x128xbf16, #tpu.memory_space<vmem>>, %arg4: memref<1x128xf32, #tpu.memory_space<vmem>>, %arg5: memref<1x128xf32, #tpu.memory_space<vmem>>, %arg6: memref<4x16x128xbf16, #tpu.memory_space<vmem>>, %arg7: memref<16x128xf32, #tpu.memory_space<vmem>>, %arg8: memref<5x16x128xbf16, #tpu.memory_space<vmem>>) attributes {dimension_semantics = [#tpu.dimension_semantics<parallel>, #tpu.dimension_semantics<arbitrary>], iteration_bounds = array<i64: 1, 4>, scalar_prefetch = 0 : i64, scratch_operands = 2 : i64, tpu.core_type = #tpu.core_type<tc>, window_params = [{transform_indices = @transform_0, window_bounds = array<i64: 4, 16, 128>}, {pipeline_mode = #tpu.pipeline_mode<synchronous>, transform_indices = @transform_1, window_bounds = array<i64: 4, 128, 128>}, {pipeline_mode = #tpu.pipeline_mode<synchronous>, transform_indices = @transform_2, window_bounds = array<i64: 1, 128>}, {pipeline_mode = #tpu.pipeline_mode<synchronous>, transform_indices = @transform_3, window_bounds = array<i64: 1, 128>}, {transform_indices = @transform_4, window_bounds = array<i64: 4, 16, 128>}]} {
    %c4_i32 = arith.constant 4 : i32
    %0 = arith.muli %arg1, %c4_i32 : i32
    %c0_i32 = arith.constant 0 : i32
    %1 = arith.cmpi eq, %arg1, %c0_i32 : i32
    %2 = arith.extui %1 : i1 to i32
    %c0_i32_0 = arith.constant 0 : i32
    %3 = arith.cmpi ne, %2, %c0_i32_0 : i32
    scf.if %3 {
      %cst = arith.constant 0.000000e+00 : f32
      %16 = vector.broadcast %cst : f32 to vector<16x128xf32>
      %c0_8 = arith.constant 0 : index
      %c0_9 = arith.constant 0 : index
      %17 = vector.load %arg7[%c0_8, %c0_9] : memref<16x128xf32, #tpu.memory_space<vmem>>, vector<16x128xf32>
      tpu.vector_store %arg7[%c0_8, %c0_9], %16 {strides = array<i32>} : memref<16x128xf32, #tpu.memory_space<vmem>>, vector<16x128xf32>,
      %cst_10 = arith.constant 0.000000e+00 : bf16
      %18 = vector.broadcast %cst_10 : bf16 to vector<5x16x128xbf16>
      %c0_11 = arith.constant 0 : index
      %c0_12 = arith.constant 0 : index
      %c0_13 = arith.constant 0 : index
      %19 = vector.load %arg8[%c0_11, %c0_12, %c0_13] : memref<5x16x128xbf16, #tpu.memory_space<vmem>>, vector<5x16x128xbf16>
      tpu.vector_store %arg8[%c0_11, %c0_12, %c0_13], %18 {strides = array<i32>} : memref<5x16x128xbf16, #tpu.memory_space<vmem>>, vector<5x16x128xbf16>,
    } else {
    }
    %c0 = arith.constant 0 : index
    %c0_1 = arith.constant 0 : index
    %4 = vector.load %arg4[%c0, %c0_1] : memref<1x128xf32, #tpu.memory_space<vmem>>, vector<1x128xf32>
    %5 = vector.shape_cast %4 : vector<1x128xf32> to vector<1x128xf32>
    %6 = vector.broadcast %5 : vector<1x128xf32> to vector<16x128xf32>
    %c0_2 = arith.constant 0 : index
    %c0_3 = arith.constant 0 : index
    %7 = vector.load %arg5[%c0_2, %c0_3] : memref<1x128xf32, #tpu.memory_space<vmem>>, vector<1x128xf32>
    %8 = vector.shape_cast %7 : vector<1x128xf32> to vector<1x128xf32>
    %9 = vector.broadcast %8 : vector<1x128xf32> to vector<16x128xf32>
    %c4_i32_4 = arith.constant 4 : i32
    %10 = arith.cmpi sle, %0, %c4_i32_4 : i32
    %11 = arith.extui %10 : i1 to i32
    %c0_i32_5 = arith.constant 0 : i32
    %12 = arith.cmpi ne, %11, %c0_i32_5 : i32
    scf.if %12 {
      %c0_8 = arith.constant 0 : index
      %c0_9 = arith.constant 0 : index
      %c0_10 = arith.constant 0 : index
      %16 = vector.load %arg2[%c0_8, %c0_9, %c0_10] : memref<4x16x128xf32, #tpu.memory_space<vmem>>, vector<4x16x128xf32>
      %17 = vector.shape_cast %16 : vector<4x16x128xf32> to vector<64x128xf32>
      %c0_i32_11 = arith.constant 0 : i32
      %18 = arith.addi %0, %c0_i32_11 : i32
      %c4_i32_12 = arith.constant 4 : i32
      %19 = arith.subi %18, %c4_i32_12 : i32
      %c5_i32 = arith.constant 5 : i32
      %20 = arith.addi %19, %c5_i32 : i32
      %c5_i32_13 = arith.constant 5 : i32
      %c0_i32_14 = arith.constant 0 : i32
      %21 = arith.cmpi eq, %c5_i32_13, %c0_i32_14 : i32
      %c1_i32 = arith.constant 1 : i32
      %22 = arith.select %21, %c1_i32, %c5_i32_13 : i32
      %23 = arith.remsi %20, %22 : i32
      %c0_i32_15 = arith.constant 0 : i32
      %24 = arith.cmpi ne, %23, %c0_i32_15 : i32
      %c0_i32_16 = arith.constant 0 : i32
      %25 = arith.cmpi slt, %23, %c0_i32_16 : i32
      %c0_i32_17 = arith.constant 0 : i32
      %26 = arith.cmpi slt, %22, %c0_i32_17 : i32
      %27 = arith.xori %25, %26 : i1
      %28 = arith.andi %27, %24 : i1
      %29 = arith.addi %23, %22 : i32
      %30 = arith.select %28, %29, %23 : i32
      %31 = arith.index_cast %30 : i32 to index
      %c0_18 = arith.constant 0 : index
      %c0_19 = arith.constant 0 : index
      %32 = vector.load %arg8[%31, %c0_18, %c0_19] : memref<5x16x128xbf16, #tpu.memory_space<vmem>>, vector<1x16x128xbf16>
      %33 = vector.shape_cast %32 : vector<1x16x128xbf16> to vector<16x128xbf16>
      %c4_i32_20 = arith.constant 4 : i32
      %34 = arith.cmpi sgt, %18, %c4_i32_20 : i32
      %cst = arith.constant 0.000000e+00 : bf16
      %35 = vector.broadcast %cst : bf16 to vector<16x128xbf16>
      %36 = arith.select %34, %33, %35 : vector<16x128xbf16>
      %c1_i32_21 = arith.constant 1 : i32
      %37 = arith.addi %0, %c1_i32_21 : i32
      %c4_i32_22 = arith.constant 4 : i32
      %38 = arith.subi %37, %c4_i32_22 : i32
      %c5_i32_23 = arith.constant 5 : i32
      %39 = arith.addi %38, %c5_i32_23 : i32
      %c5_i32_24 = arith.constant 5 : i32
      %c0_i32_25 = arith.constant 0 : i32
      %40 = arith.cmpi eq, %c5_i32_24, %c0_i32_25 : i32
      %c1_i32_26 = arith.constant 1 : i32
      %41 = arith.select %40, %c1_i32_26, %c5_i32_24 : i32
      %42 = arith.remsi %39, %41 : i32
      %c0_i32_27 = arith.constant 0 : i32
      %43 = arith.cmpi ne, %42, %c0_i32_27 : i32
      %c0_i32_28 = arith.constant 0 : i32
      %44 = arith.cmpi slt, %42, %c0_i32_28 : i32
      %c0_i32_29 = arith.constant 0 : i32
      %45 = arith.cmpi slt, %41, %c0_i32_29 : i32
      %46 = arith.xori %44, %45 : i1
      %47 = arith.andi %46, %43 : i1
      %48 = arith.addi %42, %41 : i32
      %49 = arith.select %47, %48, %42 : i32
      %50 = arith.index_cast %49 : i32 to index
      %c0_30 = arith.constant 0 : index
      %c0_31 = arith.constant 0 : index
      %51 = vector.load %arg8[%50, %c0_30, %c0_31] : memref<5x16x128xbf16, #tpu.memory_space<vmem>>, vector<1x16x128xbf16>
      %52 = vector.shape_cast %51 : vector<1x16x128xbf16> to vector<16x128xbf16>
      %c4_i32_32 = arith.constant 4 : i32
      %53 = arith.cmpi sgt, %37, %c4_i32_32 : i32
      %cst_33 = arith.constant 0.000000e+00 : bf16
      %54 = vector.broadcast %cst_33 : bf16 to vector<16x128xbf16>
      %55 = arith.select %53, %52, %54 : vector<16x128xbf16>
      %c2_i32 = arith.constant 2 : i32
      %56 = arith.addi %0, %c2_i32 : i32
      %c4_i32_34 = arith.constant 4 : i32
      %57 = arith.subi %56, %c4_i32_34 : i32
      %c5_i32_35 = arith.constant 5 : i32
      %58 = arith.addi %57, %c5_i32_35 : i32
      %c5_i32_36 = arith.constant 5 : i32
      %c0_i32_37 = arith.constant 0 : i32
      %59 = arith.cmpi eq, %c5_i32_36, %c0_i32_37 : i32
      %c1_i32_38 = arith.constant 1 : i32
      %60 = arith.select %59, %c1_i32_38, %c5_i32_36 : i32
      %61 = arith.remsi %58, %60 : i32
      %c0_i32_39 = arith.constant 0 : i32
      %62 = arith.cmpi ne, %61, %c0_i32_39 : i32
      %c0_i32_40 = arith.constant 0 : i32
      %63 = arith.cmpi slt, %61, %c0_i32_40 : i32
      %c0_i32_41 = arith.constant 0 : i32
      %64 = arith.cmpi slt, %60, %c0_i32_41 : i32
      %65 = arith.xori %63, %64 : i1
      %66 = arith.andi %65, %62 : i1
      %67 = arith.addi %61, %60 : i32
      %68 = arith.select %66, %67, %61 : i32
      %69 = arith.index_cast %68 : i32 to index
      %c0_42 = arith.constant 0 : index
      %c0_43 = arith.constant 0 : index
      %70 = vector.load %arg8[%69, %c0_42, %c0_43] : memref<5x16x128xbf16, #tpu.memory_space<vmem>>, vector<1x16x128xbf16>
      %71 = vector.shape_cast %70 : vector<1x16x128xbf16> to vector<16x128xbf16>
      %c4_i32_44 = arith.constant 4 : i32
      %72 = arith.cmpi sgt, %56, %c4_i32_44 : i32
      %cst_45 = arith.constant 0.000000e+00 : bf16
      %73 = vector.broadcast %cst_45 : bf16 to vector<16x128xbf16>
      %74 = arith.select %72, %71, %73 : vector<16x128xbf16>
      %c3_i32 = arith.constant 3 : i32
      %75 = arith.addi %0, %c3_i32 : i32
      %c4_i32_46 = arith.constant 4 : i32
      %76 = arith.subi %75, %c4_i32_46 : i32
      %c5_i32_47 = arith.constant 5 : i32
      %77 = arith.addi %76, %c5_i32_47 : i32
      %c5_i32_48 = arith.constant 5 : i32
      %c0_i32_49 = arith.constant 0 : i32
      %78 = arith.cmpi eq, %c5_i32_48, %c0_i32_49 : i32
      %c1_i32_50 = arith.constant 1 : i32
      %79 = arith.select %78, %c1_i32_50, %c5_i32_48 : i32
      %80 = arith.remsi %77, %79 : i32
      %c0_i32_51 = arith.constant 0 : i32
      %81 = arith.cmpi ne, %80, %c0_i32_51 : i32
      %c0_i32_52 = arith.constant 0 : i32
      %82 = arith.cmpi slt, %80, %c0_i32_52 : i32
      %c0_i32_53 = arith.constant 0 : i32
      %83 = arith.cmpi slt, %79, %c0_i32_53 : i32
      %84 = arith.xori %82, %83 : i1
      %85 = arith.andi %84, %81 : i1
      %86 = arith.addi %80, %79 : i32
      %87 = arith.select %85, %86, %80 : i32
      %88 = arith.index_cast %87 : i32 to index
      %c0_54 = arith.constant 0 : index
      %c0_55 = arith.constant 0 : index
      %89 = vector.load %arg8[%88, %c0_54, %c0_55] : memref<5x16x128xbf16, #tpu.memory_space<vmem>>, vector<1x16x128xbf16>
      %90 = vector.shape_cast %89 : vector<1x16x128xbf16> to vector<16x128xbf16>
      %c4_i32_56 = arith.constant 4 : i32
      %91 = arith.cmpi sgt, %75, %c4_i32_56 : i32
      %cst_57 = arith.constant 0.000000e+00 : bf16
      %92 = vector.broadcast %cst_57 : bf16 to vector<16x128xbf16>
      %93 = arith.select %91, %90, %92 : vector<16x128xbf16>
      %94 = tpu.concatenate %36, %55, %74, %93 in 0 : vector<16x128xbf16>, vector<16x128xbf16>, vector<16x128xbf16>, vector<16x128xbf16> -> vector<64x128xbf16>
      %c3 = arith.constant 3 : index
      %c0_58 = arith.constant 0 : index
      %c0_59 = arith.constant 0 : index
      %95 = vector.load %arg3[%c3, %c0_58, %c0_59] : memref<4x128x128xbf16, #tpu.memory_space<vmem>>, vector<1x128x128xbf16>
      %96 = vector.shape_cast %95 : vector<1x128x128xbf16> to vector<128x128xbf16>
      %cst_60 = arith.constant dense<0.000000e+00> : vector<64x128xf32>
      %97 = tpu.matmul %94, %96, %cst_60 {dimension_numbers = #tpu.dot_dimension_numbers<[1], [0], [0], [1], [0, 0, 1, 1], [], []>} : vector<64x128xbf16>, vector<128x128xbf16>, vector<64x128xf32> -> vector<64x128xf32>
      %98 = arith.addf %17, %97 : vector<64x128xf32>
      %99 = vector.shape_cast %98 : vector<64x128xf32> to vector<4x16x128xf32>
      %c0_i32_61 = arith.constant 0 : i32
      %100 = arith.addi %0, %c0_i32_61 : i32
      %101 = vector.extract_strided_slice %99 {offsets = [0, 0, 0], sizes = [1, 16, 128], strides = [1, 1, 1]} : vector<4x16x128xf32> to vector<1x16x128xf32>
      %102 = vector.shape_cast %101 : vector<1x16x128xf32> to vector<16x128xf32>
      %c1_i32_62 = arith.constant 1 : i32
      %103 = arith.subi %100, %c1_i32_62 : i32
      %c5_i32_63 = arith.constant 5 : i32
      %104 = arith.addi %103, %c5_i32_63 : i32
      %c5_i32_64 = arith.constant 5 : i32
      %c0_i32_65 = arith.constant 0 : i32
      %105 = arith.cmpi eq, %c5_i32_64, %c0_i32_65 : i32
      %c1_i32_66 = arith.constant 1 : i32
      %106 = arith.select %105, %c1_i32_66, %c5_i32_64 : i32
      %107 = arith.remsi %104, %106 : i32
      %c0_i32_67 = arith.constant 0 : i32
      %108 = arith.cmpi ne, %107, %c0_i32_67 : i32
      %c0_i32_68 = arith.constant 0 : i32
      %109 = arith.cmpi slt, %107, %c0_i32_68 : i32
      %c0_i32_69 = arith.constant 0 : i32
      %110 = arith.cmpi slt, %106, %c0_i32_69 : i32
      %111 = arith.xori %109, %110 : i1
      %112 = arith.andi %111, %108 : i1
      %113 = arith.addi %107, %106 : i32
      %114 = arith.select %112, %113, %107 : i32
      %115 = arith.index_cast %114 : i32 to index
      %c0_70 = arith.constant 0 : index
      %c0_71 = arith.constant 0 : index
      %116 = vector.load %arg8[%115, %c0_70, %c0_71] : memref<5x16x128xbf16, #tpu.memory_space<vmem>>, vector<1x16x128xbf16>
      %117 = vector.shape_cast %116 : vector<1x16x128xbf16> to vector<16x128xbf16>
      %c1_i32_72 = arith.constant 1 : i32
      %118 = arith.cmpi sgt, %100, %c1_i32_72 : i32
      %cst_73 = arith.constant 0.000000e+00 : bf16
      %119 = vector.broadcast %cst_73 : bf16 to vector<16x128xbf16>
      %120 = arith.select %118, %117, %119 : vector<16x128xbf16>
      %c0_74 = arith.constant 0 : index
      %c0_75 = arith.constant 0 : index
      %c0_76 = arith.constant 0 : index
      %121 = vector.load %arg3[%c0_74, %c0_75, %c0_76] : memref<4x128x128xbf16, #tpu.memory_space<vmem>>, vector<1x128x128xbf16>
      %122 = vector.shape_cast %121 : vector<1x128x128xbf16> to vector<128x128xbf16>
      %cst_77 = arith.constant dense<0.000000e+00> : vector<16x128xf32>
      %123 = tpu.matmul %120, %122, %cst_77 {dimension_numbers = #tpu.dot_dimension_numbers<[1], [0], [0], [1], [0, 0, 1, 1], [], []>} : vector<16x128xbf16>, vector<128x128xbf16>, vector<16x128xf32> -> vector<16x128xf32>
      %124 = arith.addf %102, %123 : vector<16x128xf32>
      %c2_i32_78 = arith.constant 2 : i32
      %125 = arith.subi %100, %c2_i32_78 : i32
      %c5_i32_79 = arith.constant 5 : i32
      %126 = arith.addi %125, %c5_i32_79 : i32
      %c5_i32_80 = arith.constant 5 : i32
      %c0_i32_81 = arith.constant 0 : i32
      %127 = arith.cmpi eq, %c5_i32_80, %c0_i32_81 : i32
      %c1_i32_82 = arith.constant 1 : i32
      %128 = arith.select %127, %c1_i32_82, %c5_i32_80 : i32
      %129 = arith.remsi %126, %128 : i32
      %c0_i32_83 = arith.constant 0 : i32
      %130 = arith.cmpi ne, %129, %c0_i32_83 : i32
      %c0_i32_84 = arith.constant 0 : i32
      %131 = arith.cmpi slt, %129, %c0_i32_84 : i32
      %c0_i32_85 = arith.constant 0 : i32
      %132 = arith.cmpi slt, %128, %c0_i32_85 : i32
      %133 = arith.xori %131, %132 : i1
      %134 = arith.andi %133, %130 : i1
      %135 = arith.addi %129, %128 : i32
      %136 = arith.select %134, %135, %129 : i32
      %137 = arith.index_cast %136 : i32 to index
      %c0_86 = arith.constant 0 : index
      %c0_87 = arith.constant 0 : index
      %138 = vector.load %arg8[%137, %c0_86, %c0_87] : memref<5x16x128xbf16, #tpu.memory_space<vmem>>, vector<1x16x128xbf16>
      %139 = vector.shape_cast %138 : vector<1x16x128xbf16> to vector<16x128xbf16>
      %c2_i32_88 = arith.constant 2 : i32
      %140 = arith.cmpi sgt, %100, %c2_i32_88 : i32
      %cst_89 = arith.constant 0.000000e+00 : bf16
      %141 = vector.broadcast %cst_89 : bf16 to vector<16x128xbf16>
      %142 = arith.select %140, %139, %141 : vector<16x128xbf16>
      %c1 = arith.constant 1 : index
      %c0_90 = arith.constant 0 : index
      %c0_91 = arith.constant 0 : index
      %143 = vector.load %arg3[%c1, %c0_90, %c0_91] : memref<4x128x128xbf16, #tpu.memory_space<vmem>>, vector<1x128x128xbf16>
      %144 = vector.shape_cast %143 : vector<1x128x128xbf16> to vector<128x128xbf16>
      %cst_92 = arith.constant dense<0.000000e+00> : vector<16x128xf32>
      %145 = tpu.matmul %142, %144, %cst_92 {dimension_numbers = #tpu.dot_dimension_numbers<[1], [0], [0], [1], [0, 0, 1, 1], [], []>} : vector<16x128xbf16>, vector<128x128xbf16>, vector<16x128xf32> -> vector<16x128xf32>
      %146 = arith.addf %124, %145 : vector<16x128xf32>
      %c3_i32_93 = arith.constant 3 : i32
      %147 = arith.subi %100, %c3_i32_93 : i32
      %c5_i32_94 = arith.constant 5 : i32
      %148 = arith.addi %147, %c5_i32_94 : i32
      %c5_i32_95 = arith.constant 5 : i32
      %c0_i32_96 = arith.constant 0 : i32
      %149 = arith.cmpi eq, %c5_i32_95, %c0_i32_96 : i32
      %c1_i32_97 = arith.constant 1 : i32
      %150 = arith.select %149, %c1_i32_97, %c5_i32_95 : i32
      %151 = arith.remsi %148, %150 : i32
      %c0_i32_98 = arith.constant 0 : i32
      %152 = arith.cmpi ne, %151, %c0_i32_98 : i32
      %c0_i32_99 = arith.constant 0 : i32
      %153 = arith.cmpi slt, %151, %c0_i32_99 : i32
      %c0_i32_100 = arith.constant 0 : i32
      %154 = arith.cmpi slt, %150, %c0_i32_100 : i32
      %155 = arith.xori %153, %154 : i1
      %156 = arith.andi %155, %152 : i1
      %157 = arith.addi %151, %150 : i32
      %158 = arith.select %156, %157, %151 : i32
      %159 = arith.index_cast %158 : i32 to index
      %c0_101 = arith.constant 0 : index
      %c0_102 = arith.constant 0 : index
      %160 = vector.load %arg8[%159, %c0_101, %c0_102] : memref<5x16x128xbf16, #tpu.memory_space<vmem>>, vector<1x16x128xbf16>
      %161 = vector.shape_cast %160 : vector<1x16x128xbf16> to vector<16x128xbf16>
      %c3_i32_103 = arith.constant 3 : i32
      %162 = arith.cmpi sgt, %100, %c3_i32_103 : i32
      %cst_104 = arith.constant 0.000000e+00 : bf16
      %163 = vector.broadcast %cst_104 : bf16 to vector<16x128xbf16>
      %164 = arith.select %162, %161, %163 : vector<16x128xbf16>
      %c2 = arith.constant 2 : index
      %c0_105 = arith.constant 0 : index
      %c0_106 = arith.constant 0 : index
      %165 = vector.load %arg3[%c2, %c0_105, %c0_106] : memref<4x128x128xbf16, #tpu.memory_space<vmem>>, vector<1x128x128xbf16>
      %166 = vector.shape_cast %165 : vector<1x128x128xbf16> to vector<128x128xbf16>
      %cst_107 = arith.constant dense<0.000000e+00> : vector<16x128xf32>
      %167 = tpu.matmul %164, %166, %cst_107 {dimension_numbers = #tpu.dot_dimension_numbers<[1], [0], [0], [1], [0, 0, 1, 1], [], []>} : vector<16x128xbf16>, vector<128x128xbf16>, vector<16x128xf32> -> vector<16x128xf32>
      %168 = arith.addf %146, %167 : vector<16x128xf32>
      %c0_108 = arith.constant 0 : index
      %c0_109 = arith.constant 0 : index
      %169 = vector.load %arg7[%c0_108, %c0_109] : memref<16x128xf32, #tpu.memory_space<vmem>>, vector<16x128xf32>
      %170 = arith.mulf %169, %6 : vector<16x128xf32>
      %171 = arith.addf %170, %168 : vector<16x128xf32>
      %172 = arith.subf %171, %9 : vector<16x128xf32>
      %cst_110 = arith.constant 0.000000e+00 : f32
      %173 = vector.broadcast %cst_110 : f32 to vector<16x128xf32>
      %174 = arith.cmpf ogt, %172, %173 : vector<16x128xf32>
      %175 = arith.extui %174 : vector<16x128xi1> to vector<16x128xi32>
      %176 = arith.sitofp %175 : vector<16x128xi32> to vector<16x128xf32>
      %177 = arith.mulf %176, %9 : vector<16x128xf32>
      %178 = arith.subf %171, %177 : vector<16x128xf32>
      %c0_111 = arith.constant 0 : index
      %c0_112 = arith.constant 0 : index
      %179 = vector.load %arg7[%c0_111, %c0_112] : memref<16x128xf32, #tpu.memory_space<vmem>>, vector<16x128xf32>
      tpu.vector_store %arg7[%c0_111, %c0_112], %178 {strides = array<i32>} : memref<16x128xf32, #tpu.memory_space<vmem>>, vector<16x128xf32>,
      %180 = arith.truncf %176 : vector<16x128xf32> to vector<16x128xbf16>
      %c0_113 = arith.constant 0 : index
      %c0_114 = arith.constant 0 : index
      %c0_115 = arith.constant 0 : index
      %181 = vector.load %arg6[%c0_113, %c0_114, %c0_115] : memref<4x16x128xbf16, #tpu.memory_space<vmem>>, vector<1x16x128xbf16>
      %182 = vector.shape_cast %181 : vector<1x16x128xbf16> to vector<16x128xbf16>
      %183 = vector.shape_cast %180 : vector<16x128xbf16> to vector<1x16x128xbf16>
      tpu.vector_store %arg6[%c0_113, %c0_114, %c0_115], %183 {strides = array<i32>} : memref<4x16x128xbf16, #tpu.memory_space<vmem>>, vector<1x16x128xbf16>,
      %c5_i32_116 = arith.constant 5 : i32
      %c0_i32_117 = arith.constant 0 : i32
      %184 = arith.cmpi eq, %c5_i32_116, %c0_i32_117 : i32
      %c1_i32_118 = arith.constant 1 : i32
      %185 = arith.select %184, %c1_i32_118, %c5_i32_116 : i32
      %186 = arith.remsi %100, %185 : i32
      %c0_i32_119 = arith.constant 0 : i32
      %187 = arith.cmpi ne, %186, %c0_i32_119 : i32
      %c0_i32_120 = arith.constant 0 : i32
      %188 = arith.cmpi slt, %186, %c0_i32_120 : i32
      %c0_i32_121 = arith.constant 0 : i32
      %189 = arith.cmpi slt, %185, %c0_i32_121 : i32
      %190 = arith.xori %188, %189 : i1
      %191 = arith.andi %190, %187 : i1
      %192 = arith.addi %186, %185 : i32
      %193 = arith.select %191, %192, %186 : i32
      %194 = arith.index_cast %193 : i32 to index
      %c0_122 = arith.constant 0 : index
      %c0_123 = arith.constant 0 : index
      %195 = vector.load %arg8[%194, %c0_122, %c0_123] : memref<5x16x128xbf16, #tpu.memory_space<vmem>>, vector<1x16x128xbf16>
      %196 = vector.shape_cast %195 : vector<1x16x128xbf16> to vector<16x128xbf16>
      %197 = vector.shape_cast %180 : vector<16x128xbf16> to vector<1x16x128xbf16>
      tpu.vector_store %arg8[%194, %c0_122, %c0_123], %197 {strides = array<i32>} : memref<5x16x128xbf16, #tpu.memory_space<vmem>>, vector<1x16x128xbf16>,
      %c1_i32_124 = arith.constant 1 : i32
      %198 = arith.addi %0, %c1_i32_124 : i32
      %199 = vector.extract_strided_slice %99 {offsets = [1, 0, 0], sizes = [1, 16, 128], strides = [1, 1, 1]} : vector<4x16x128xf32> to vector<1x16x128xf32>
      %200 = vector.shape_cast %199 : vector<1x16x128xf32> to vector<16x128xf32>
      %c1_i32_125 = arith.constant 1 : i32
      %201 = arith.subi %198, %c1_i32_125 : i32
      %c5_i32_126 = arith.constant 5 : i32
      %202 = arith.addi %201, %c5_i32_126 : i32
      %c5_i32_127 = arith.constant 5 : i32
      %c0_i32_128 = arith.constant 0 : i32
      %203 = arith.cmpi eq, %c5_i32_127, %c0_i32_128 : i32
      %c1_i32_129 = arith.constant 1 : i32
      %204 = arith.select %203, %c1_i32_129, %c5_i32_127 : i32
      %205 = arith.remsi %202, %204 : i32
      %c0_i32_130 = arith.constant 0 : i32
      %206 = arith.cmpi ne, %205, %c0_i32_130 : i32
      %c0_i32_131 = arith.constant 0 : i32
      %207 = arith.cmpi slt, %205, %c0_i32_131 : i32
      %c0_i32_132 = arith.constant 0 : i32
      %208 = arith.cmpi slt, %204, %c0_i32_132 : i32
      %209 = arith.xori %207, %208 : i1
      %210 = arith.andi %209, %206 : i1
      %211 = arith.addi %205, %204 : i32
      %212 = arith.select %210, %211, %205 : i32
      %213 = arith.index_cast %212 : i32 to index
      %c0_133 = arith.constant 0 : index
      %c0_134 = arith.constant 0 : index
      %214 = vector.load %arg8[%213, %c0_133, %c0_134] : memref<5x16x128xbf16, #tpu.memory_space<vmem>>, vector<1x16x128xbf16>
      %215 = vector.shape_cast %214 : vector<1x16x128xbf16> to vector<16x128xbf16>
      %c1_i32_135 = arith.constant 1 : i32
      %216 = arith.cmpi sgt, %198, %c1_i32_135 : i32
      %cst_136 = arith.constant 0.000000e+00 : bf16
      %217 = vector.broadcast %cst_136 : bf16 to vector<16x128xbf16>
      %218 = arith.select %216, %215, %217 : vector<16x128xbf16>
      %c0_137 = arith.constant 0 : index
      %c0_138 = arith.constant 0 : index
      %c0_139 = arith.constant 0 : index
      %219 = vector.load %arg3[%c0_137, %c0_138, %c0_139] : memref<4x128x128xbf16, #tpu.memory_space<vmem>>, vector<1x128x128xbf16>
      %220 = vector.shape_cast %219 : vector<1x128x128xbf16> to vector<128x128xbf16>
      %cst_140 = arith.constant dense<0.000000e+00> : vector<16x128xf32>
      %221 = tpu.matmul %218, %220, %cst_140 {dimension_numbers = #tpu.dot_dimension_numbers<[1], [0], [0], [1], [0, 0, 1, 1], [], []>} : vector<16x128xbf16>, vector<128x128xbf16>, vector<16x128xf32> -> vector<16x128xf32>
      %222 = arith.addf %200, %221 : vector<16x128xf32>
      %c2_i32_141 = arith.constant 2 : i32
      %223 = arith.subi %198, %c2_i32_141 : i32
      %c5_i32_142 = arith.constant 5 : i32
      %224 = arith.addi %223, %c5_i32_142 : i32
      %c5_i32_143 = arith.constant 5 : i32
      %c0_i32_144 = arith.constant 0 : i32
      %225 = arith.cmpi eq, %c5_i32_143, %c0_i32_144 : i32
      %c1_i32_145 = arith.constant 1 : i32
      %226 = arith.select %225, %c1_i32_145, %c5_i32_143 : i32
      %227 = arith.remsi %224, %226 : i32
      %c0_i32_146 = arith.constant 0 : i32
      %228 = arith.cmpi ne, %227, %c0_i32_146 : i32
      %c0_i32_147 = arith.constant 0 : i32
      %229 = arith.cmpi slt, %227, %c0_i32_147 : i32
      %c0_i32_148 = arith.constant 0 : i32
      %230 = arith.cmpi slt, %226, %c0_i32_148 : i32
      %231 = arith.xori %229, %230 : i1
      %232 = arith.andi %231, %228 : i1
      %233 = arith.addi %227, %226 : i32
      %234 = arith.select %232, %233, %227 : i32
      %235 = arith.index_cast %234 : i32 to index
      %c0_149 = arith.constant 0 : index
      %c0_150 = arith.constant 0 : index
      %236 = vector.load %arg8[%235, %c0_149, %c0_150] : memref<5x16x128xbf16, #tpu.memory_space<vmem>>, vector<1x16x128xbf16>
      %237 = vector.shape_cast %236 : vector<1x16x128xbf16> to vector<16x128xbf16>
      %c2_i32_151 = arith.constant 2 : i32
      %238 = arith.cmpi sgt, %198, %c2_i32_151 : i32
      %cst_152 = arith.constant 0.000000e+00 : bf16
      %239 = vector.broadcast %cst_152 : bf16 to vector<16x128xbf16>
      %240 = arith.select %238, %237, %239 : vector<16x128xbf16>
      %c1_153 = arith.constant 1 : index
      %c0_154 = arith.constant 0 : index
      %c0_155 = arith.constant 0 : index
      %241 = vector.load %arg3[%c1_153, %c0_154, %c0_155] : memref<4x128x128xbf16, #tpu.memory_space<vmem>>, vector<1x128x128xbf16>
      %242 = vector.shape_cast %241 : vector<1x128x128xbf16> to vector<128x128xbf16>
      %cst_156 = arith.constant dense<0.000000e+00> : vector<16x128xf32>
      %243 = tpu.matmul %240, %242, %cst_156 {dimension_numbers = #tpu.dot_dimension_numbers<[1], [0], [0], [1], [0, 0, 1, 1], [], []>} : vector<16x128xbf16>, vector<128x128xbf16>, vector<16x128xf32> -> vector<16x128xf32>
      %244 = arith.addf %222, %243 : vector<16x128xf32>
      %c3_i32_157 = arith.constant 3 : i32
      %245 = arith.subi %198, %c3_i32_157 : i32
      %c5_i32_158 = arith.constant 5 : i32
      %246 = arith.addi %245, %c5_i32_158 : i32
      %c5_i32_159 = arith.constant 5 : i32
      %c0_i32_160 = arith.constant 0 : i32
      %247 = arith.cmpi eq, %c5_i32_159, %c0_i32_160 : i32
      %c1_i32_161 = arith.constant 1 : i32
      %248 = arith.select %247, %c1_i32_161, %c5_i32_159 : i32
      %249 = arith.remsi %246, %248 : i32
      %c0_i32_162 = arith.constant 0 : i32
      %250 = arith.cmpi ne, %249, %c0_i32_162 : i32
      %c0_i32_163 = arith.constant 0 : i32
      %251 = arith.cmpi slt, %249, %c0_i32_163 : i32
      %c0_i32_164 = arith.constant 0 : i32
      %252 = arith.cmpi slt, %248, %c0_i32_164 : i32
      %253 = arith.xori %251, %252 : i1
      %254 = arith.andi %253, %250 : i1
      %255 = arith.addi %249, %248 : i32
      %256 = arith.select %254, %255, %249 : i32
      %257 = arith.index_cast %256 : i32 to index
      %c0_165 = arith.constant 0 : index
      %c0_166 = arith.constant 0 : index
      %258 = vector.load %arg8[%257, %c0_165, %c0_166] : memref<5x16x128xbf16, #tpu.memory_space<vmem>>, vector<1x16x128xbf16>
      %259 = vector.shape_cast %258 : vector<1x16x128xbf16> to vector<16x128xbf16>
      %c3_i32_167 = arith.constant 3 : i32
      %260 = arith.cmpi sgt, %198, %c3_i32_167 : i32
      %cst_168 = arith.constant 0.000000e+00 : bf16
      %261 = vector.broadcast %cst_168 : bf16 to vector<16x128xbf16>
      %262 = arith.select %260, %259, %261 : vector<16x128xbf16>
      %c2_169 = arith.constant 2 : index
      %c0_170 = arith.constant 0 : index
      %c0_171 = arith.constant 0 : index
      %263 = vector.load %arg3[%c2_169, %c0_170, %c0_171] : memref<4x128x128xbf16, #tpu.memory_space<vmem>>, vector<1x128x128xbf16>
      %264 = vector.shape_cast %263 : vector<1x128x128xbf16> to vector<128x128xbf16>
      %cst_172 = arith.constant dense<0.000000e+00> : vector<16x128xf32>
      %265 = tpu.matmul %262, %264, %cst_172 {dimension_numbers = #tpu.dot_dimension_numbers<[1], [0], [0], [1], [0, 0, 1, 1], [], []>} : vector<16x128xbf16>, vector<128x128xbf16>, vector<16x128xf32> -> vector<16x128xf32>
      %266 = arith.addf %244, %265 : vector<16x128xf32>
      %c0_173 = arith.constant 0 : index
      %c0_174 = arith.constant 0 : index
      %267 = vector.load %arg7[%c0_173, %c0_174] : memref<16x128xf32, #tpu.memory_space<vmem>>, vector<16x128xf32>
      %268 = arith.mulf %267, %6 : vector<16x128xf32>
      %269 = arith.addf %268, %266 : vector<16x128xf32>
      %270 = arith.subf %269, %9 : vector<16x128xf32>
      %cst_175 = arith.constant 0.000000e+00 : f32
      %271 = vector.broadcast %cst_175 : f32 to vector<16x128xf32>
      %272 = arith.cmpf ogt, %270, %271 : vector<16x128xf32>
      %273 = arith.extui %272 : vector<16x128xi1> to vector<16x128xi32>
      %274 = arith.sitofp %273 : vector<16x128xi32> to vector<16x128xf32>
      %275 = arith.mulf %274, %9 : vector<16x128xf32>
      %276 = arith.subf %269, %275 : vector<16x128xf32>
      %c0_176 = arith.constant 0 : index
      %c0_177 = arith.constant 0 : index
      %277 = vector.load %arg7[%c0_176, %c0_177] : memref<16x128xf32, #tpu.memory_space<vmem>>, vector<16x128xf32>
      tpu.vector_store %arg7[%c0_176, %c0_177], %276 {strides = array<i32>} : memref<16x128xf32, #tpu.memory_space<vmem>>, vector<16x128xf32>,
      %278 = arith.truncf %274 : vector<16x128xf32> to vector<16x128xbf16>
      %c1_178 = arith.constant 1 : index
      %c0_179 = arith.constant 0 : index
      %c0_180 = arith.constant 0 : index
      %279 = vector.load %arg6[%c1_178, %c0_179, %c0_180] : memref<4x16x128xbf16, #tpu.memory_space<vmem>>, vector<1x16x128xbf16>
      %280 = vector.shape_cast %279 : vector<1x16x128xbf16> to vector<16x128xbf16>
      %281 = vector.shape_cast %278 : vector<16x128xbf16> to vector<1x16x128xbf16>
      tpu.vector_store %arg6[%c1_178, %c0_179, %c0_180], %281 {strides = array<i32>} : memref<4x16x128xbf16, #tpu.memory_space<vmem>>, vector<1x16x128xbf16>,
      %c5_i32_181 = arith.constant 5 : i32
      %c0_i32_182 = arith.constant 0 : i32
      %282 = arith.cmpi eq, %c5_i32_181, %c0_i32_182 : i32
      %c1_i32_183 = arith.constant 1 : i32
      %283 = arith.select %282, %c1_i32_183, %c5_i32_181 : i32
      %284 = arith.remsi %198, %283 : i32
      %c0_i32_184 = arith.constant 0 : i32
      %285 = arith.cmpi ne, %284, %c0_i32_184 : i32
      %c0_i32_185 = arith.constant 0 : i32
      %286 = arith.cmpi slt, %284, %c0_i32_185 : i32
      %c0_i32_186 = arith.constant 0 : i32
      %287 = arith.cmpi slt, %283, %c0_i32_186 : i32
      %288 = arith.xori %286, %287 : i1
      %289 = arith.andi %288, %285 : i1
      %290 = arith.addi %284, %283 : i32
      %291 = arith.select %289, %290, %284 : i32
      %292 = arith.index_cast %291 : i32 to index
      %c0_187 = arith.constant 0 : index
      %c0_188 = arith.constant 0 : index
      %293 = vector.load %arg8[%292, %c0_187, %c0_188] : memref<5x16x128xbf16, #tpu.memory_space<vmem>>, vector<1x16x128xbf16>
      %294 = vector.shape_cast %293 : vector<1x16x128xbf16> to vector<16x128xbf16>
      %295 = vector.shape_cast %278 : vector<16x128xbf16> to vector<1x16x128xbf16>
      tpu.vector_store %arg8[%292, %c0_187, %c0_188], %295 {strides = array<i32>} : memref<5x16x128xbf16, #tpu.memory_space<vmem>>, vector<1x16x128xbf16>,
      %c2_i32_189 = arith.constant 2 : i32
      %296 = arith.addi %0, %c2_i32_189 : i32
      %297 = vector.extract_strided_slice %99 {offsets = [2, 0, 0], sizes = [1, 16, 128], strides = [1, 1, 1]} : vector<4x16x128xf32> to vector<1x16x128xf32>
      %298 = vector.shape_cast %297 : vector<1x16x128xf32> to vector<16x128xf32>
      %c1_i32_190 = arith.constant 1 : i32
      %299 = arith.subi %296, %c1_i32_190 : i32
      %c5_i32_191 = arith.constant 5 : i32
      %300 = arith.addi %299, %c5_i32_191 : i32
      %c5_i32_192 = arith.constant 5 : i32
      %c0_i32_193 = arith.constant 0 : i32
      %301 = arith.cmpi eq, %c5_i32_192, %c0_i32_193 : i32
      %c1_i32_194 = arith.constant 1 : i32
      %302 = arith.select %301, %c1_i32_194, %c5_i32_192 : i32
      %303 = arith.remsi %300, %302 : i32
      %c0_i32_195 = arith.constant 0 : i32
      %304 = arith.cmpi ne, %303, %c0_i32_195 : i32
      %c0_i32_196 = arith.constant 0 : i32
      %305 = arith.cmpi slt, %303, %c0_i32_196 : i32
      %c0_i32_197 = arith.constant 0 : i32
      %306 = arith.cmpi slt, %302, %c0_i32_197 : i32
      %307 = arith.xori %305, %306 : i1
      %308 = arith.andi %307, %304 : i1
      %309 = arith.addi %303, %302 : i32
      %310 = arith.select %308, %309, %303 : i32
      %311 = arith.index_cast %310 : i32 to index
      %c0_198 = arith.constant 0 : index
      %c0_199 = arith.constant 0 : index
      %312 = vector.load %arg8[%311, %c0_198, %c0_199] : memref<5x16x128xbf16, #tpu.memory_space<vmem>>, vector<1x16x128xbf16>
      %313 = vector.shape_cast %312 : vector<1x16x128xbf16> to vector<16x128xbf16>
      %c1_i32_200 = arith.constant 1 : i32
      %314 = arith.cmpi sgt, %296, %c1_i32_200 : i32
      %cst_201 = arith.constant 0.000000e+00 : bf16
      %315 = vector.broadcast %cst_201 : bf16 to vector<16x128xbf16>
      %316 = arith.select %314, %313, %315 : vector<16x128xbf16>
      %c0_202 = arith.constant 0 : index
      %c0_203 = arith.constant 0 : index
      %c0_204 = arith.constant 0 : index
      %317 = vector.load %arg3[%c0_202, %c0_203, %c0_204] : memref<4x128x128xbf16, #tpu.memory_space<vmem>>, vector<1x128x128xbf16>
      %318 = vector.shape_cast %317 : vector<1x128x128xbf16> to vector<128x128xbf16>
      %cst_205 = arith.constant dense<0.000000e+00> : vector<16x128xf32>
      %319 = tpu.matmul %316, %318, %cst_205 {dimension_numbers = #tpu.dot_dimension_numbers<[1], [0], [0], [1], [0, 0, 1, 1], [], []>} : vector<16x128xbf16>, vector<128x128xbf16>, vector<16x128xf32> -> vector<16x128xf32>
      %320 = arith.addf %298, %319 : vector<16x128xf32>
      %c2_i32_206 = arith.constant 2 : i32
      %321 = arith.subi %296, %c2_i32_206 : i32
      %c5_i32_207 = arith.constant 5 : i32
      %322 = arith.addi %321, %c5_i32_207 : i32
      %c5_i32_208 = arith.constant 5 : i32
      %c0_i32_209 = arith.constant 0 : i32
      %323 = arith.cmpi eq, %c5_i32_208, %c0_i32_209 : i32
      %c1_i32_210 = arith.constant 1 : i32
      %324 = arith.select %323, %c1_i32_210, %c5_i32_208 : i32
      %325 = arith.remsi %322, %324 : i32
      %c0_i32_211 = arith.constant 0 : i32
      %326 = arith.cmpi ne, %325, %c0_i32_211 : i32
      %c0_i32_212 = arith.constant 0 : i32
      %327 = arith.cmpi slt, %325, %c0_i32_212 : i32
      %c0_i32_213 = arith.constant 0 : i32
      %328 = arith.cmpi slt, %324, %c0_i32_213 : i32
      %329 = arith.xori %327, %328 : i1
      %330 = arith.andi %329, %326 : i1
      %331 = arith.addi %325, %324 : i32
      %332 = arith.select %330, %331, %325 : i32
      %333 = arith.index_cast %332 : i32 to index
      %c0_214 = arith.constant 0 : index
      %c0_215 = arith.constant 0 : index
      %334 = vector.load %arg8[%333, %c0_214, %c0_215] : memref<5x16x128xbf16, #tpu.memory_space<vmem>>, vector<1x16x128xbf16>
      %335 = vector.shape_cast %334 : vector<1x16x128xbf16> to vector<16x128xbf16>
      %c2_i32_216 = arith.constant 2 : i32
      %336 = arith.cmpi sgt, %296, %c2_i32_216 : i32
      %cst_217 = arith.constant 0.000000e+00 : bf16
      %337 = vector.broadcast %cst_217 : bf16 to vector<16x128xbf16>
      %338 = arith.select %336, %335, %337 : vector<16x128xbf16>
      %c1_218 = arith.constant 1 : index
      %c0_219 = arith.constant 0 : index
      %c0_220 = arith.constant 0 : index
      %339 = vector.load %arg3[%c1_218, %c0_219, %c0_220] : memref<4x128x128xbf16, #tpu.memory_space<vmem>>, vector<1x128x128xbf16>
      %340 = vector.shape_cast %339 : vector<1x128x128xbf16> to vector<128x128xbf16>
      %cst_221 = arith.constant dense<0.000000e+00> : vector<16x128xf32>
      %341 = tpu.matmul %338, %340, %cst_221 {dimension_numbers = #tpu.dot_dimension_numbers<[1], [0], [0], [1], [0, 0, 1, 1], [], []>} : vector<16x128xbf16>, vector<128x128xbf16>, vector<16x128xf32> -> vector<16x128xf32>
      %342 = arith.addf %320, %341 : vector<16x128xf32>
      %c3_i32_222 = arith.constant 3 : i32
      %343 = arith.subi %296, %c3_i32_222 : i32
      %c5_i32_223 = arith.constant 5 : i32
      %344 = arith.addi %343, %c5_i32_223 : i32
      %c5_i32_224 = arith.constant 5 : i32
      %c0_i32_225 = arith.constant 0 : i32
      %345 = arith.cmpi eq, %c5_i32_224, %c0_i32_225 : i32
      %c1_i32_226 = arith.constant 1 : i32
      %346 = arith.select %345, %c1_i32_226, %c5_i32_224 : i32
      %347 = arith.remsi %344, %346 : i32
      %c0_i32_227 = arith.constant 0 : i32
      %348 = arith.cmpi ne, %347, %c0_i32_227 : i32
      %c0_i32_228 = arith.constant 0 : i32
      %349 = arith.cmpi slt, %347, %c0_i32_228 : i32
      %c0_i32_229 = arith.constant 0 : i32
      %350 = arith.cmpi slt, %346, %c0_i32_229 : i32
      %351 = arith.xori %349, %350 : i1
      %352 = arith.andi %351, %348 : i1
      %353 = arith.addi %347, %346 : i32
      %354 = arith.select %352, %353, %347 : i32
      %355 = arith.index_cast %354 : i32 to index
      %c0_230 = arith.constant 0 : index
      %c0_231 = arith.constant 0 : index
      %356 = vector.load %arg8[%355, %c0_230, %c0_231] : memref<5x16x128xbf16, #tpu.memory_space<vmem>>, vector<1x16x128xbf16>
      %357 = vector.shape_cast %356 : vector<1x16x128xbf16> to vector<16x128xbf16>
      %c3_i32_232 = arith.constant 3 : i32
      %358 = arith.cmpi sgt, %296, %c3_i32_232 : i32
      %cst_233 = arith.constant 0.000000e+00 : bf16
      %359 = vector.broadcast %cst_233 : bf16 to vector<16x128xbf16>
      %360 = arith.select %358, %357, %359 : vector<16x128xbf16>
      %c2_234 = arith.constant 2 : index
      %c0_235 = arith.constant 0 : index
      %c0_236 = arith.constant 0 : index
      %361 = vector.load %arg3[%c2_234, %c0_235, %c0_236] : memref<4x128x128xbf16, #tpu.memory_space<vmem>>, vector<1x128x128xbf16>
      %362 = vector.shape_cast %361 : vector<1x128x128xbf16> to vector<128x128xbf16>
      %cst_237 = arith.constant dense<0.000000e+00> : vector<16x128xf32>
      %363 = tpu.matmul %360, %362, %cst_237 {dimension_numbers = #tpu.dot_dimension_numbers<[1], [0], [0], [1], [0, 0, 1, 1], [], []>} : vector<16x128xbf16>, vector<128x128xbf16>, vector<16x128xf32> -> vector<16x128xf32>
      %364 = arith.addf %342, %363 : vector<16x128xf32>
      %c0_238 = arith.constant 0 : index
      %c0_239 = arith.constant 0 : index
      %365 = vector.load %arg7[%c0_238, %c0_239] : memref<16x128xf32, #tpu.memory_space<vmem>>, vector<16x128xf32>
      %366 = arith.mulf %365, %6 : vector<16x128xf32>
      %367 = arith.addf %366, %364 : vector<16x128xf32>
      %368 = arith.subf %367, %9 : vector<16x128xf32>
      %cst_240 = arith.constant 0.000000e+00 : f32
      %369 = vector.broadcast %cst_240 : f32 to vector<16x128xf32>
      %370 = arith.cmpf ogt, %368, %369 : vector<16x128xf32>
      %371 = arith.extui %370 : vector<16x128xi1> to vector<16x128xi32>
      %372 = arith.sitofp %371 : vector<16x128xi32> to vector<16x128xf32>
      %373 = arith.mulf %372, %9 : vector<16x128xf32>
      %374 = arith.subf %367, %373 : vector<16x128xf32>
      %c0_241 = arith.constant 0 : index
      %c0_242 = arith.constant 0 : index
      %375 = vector.load %arg7[%c0_241, %c0_242] : memref<16x128xf32, #tpu.memory_space<vmem>>, vector<16x128xf32>
      tpu.vector_store %arg7[%c0_241, %c0_242], %374 {strides = array<i32>} : memref<16x128xf32, #tpu.memory_space<vmem>>, vector<16x128xf32>,
      %376 = arith.truncf %372 : vector<16x128xf32> to vector<16x128xbf16>
      %c2_243 = arith.constant 2 : index
      %c0_244 = arith.constant 0 : index
      %c0_245 = arith.constant 0 : index
      %377 = vector.load %arg6[%c2_243, %c0_244, %c0_245] : memref<4x16x128xbf16, #tpu.memory_space<vmem>>, vector<1x16x128xbf16>
      %378 = vector.shape_cast %377 : vector<1x16x128xbf16> to vector<16x128xbf16>
      %379 = vector.shape_cast %376 : vector<16x128xbf16> to vector<1x16x128xbf16>
      tpu.vector_store %arg6[%c2_243, %c0_244, %c0_245], %379 {strides = array<i32>} : memref<4x16x128xbf16, #tpu.memory_space<vmem>>, vector<1x16x128xbf16>,
      %c5_i32_246 = arith.constant 5 : i32
      %c0_i32_247 = arith.constant 0 : i32
      %380 = arith.cmpi eq, %c5_i32_246, %c0_i32_247 : i32
      %c1_i32_248 = arith.constant 1 : i32
      %381 = arith.select %380, %c1_i32_248, %c5_i32_246 : i32
      %382 = arith.remsi %296, %381 : i32
      %c0_i32_249 = arith.constant 0 : i32
      %383 = arith.cmpi ne, %382, %c0_i32_249 : i32
      %c0_i32_250 = arith.constant 0 : i32
      %384 = arith.cmpi slt, %382, %c0_i32_250 : i32
      %c0_i32_251 = arith.constant 0 : i32
      %385 = arith.cmpi slt, %381, %c0_i32_251 : i32
      %386 = arith.xori %384, %385 : i1
      %387 = arith.andi %386, %383 : i1
      %388 = arith.addi %382, %381 : i32
      %389 = arith.select %387, %388, %382 : i32
      %390 = arith.index_cast %389 : i32 to index
      %c0_252 = arith.constant 0 : index
      %c0_253 = arith.constant 0 : index
      %391 = vector.load %arg8[%390, %c0_252, %c0_253] : memref<5x16x128xbf16, #tpu.memory_space<vmem>>, vector<1x16x128xbf16>
      %392 = vector.shape_cast %391 : vector<1x16x128xbf16> to vector<16x128xbf16>
      %393 = vector.shape_cast %376 : vector<16x128xbf16> to vector<1x16x128xbf16>
      tpu.vector_store %arg8[%390, %c0_252, %c0_253], %393 {strides = array<i32>} : memref<5x16x128xbf16, #tpu.memory_space<vmem>>, vector<1x16x128xbf16>,
      %c3_i32_254 = arith.constant 3 : i32
      %394 = arith.addi %0, %c3_i32_254 : i32
      %395 = vector.extract_strided_slice %99 {offsets = [3, 0, 0], sizes = [1, 16, 128], strides = [1, 1, 1]} : vector<4x16x128xf32> to vector<1x16x128xf32>
      %396 = vector.shape_cast %395 : vector<1x16x128xf32> to vector<16x128xf32>
      %c1_i32_255 = arith.constant 1 : i32
      %397 = arith.subi %394, %c1_i32_255 : i32
      %c5_i32_256 = arith.constant 5 : i32
      %398 = arith.addi %397, %c5_i32_256 : i32
      %c5_i32_257 = arith.constant 5 : i32
      %c0_i32_258 = arith.constant 0 : i32
      %399 = arith.cmpi eq, %c5_i32_257, %c0_i32_258 : i32
      %c1_i32_259 = arith.constant 1 : i32
      %400 = arith.select %399, %c1_i32_259, %c5_i32_257 : i32
      %401 = arith.remsi %398, %400 : i32
      %c0_i32_260 = arith.constant 0 : i32
      %402 = arith.cmpi ne, %401, %c0_i32_260 : i32
      %c0_i32_261 = arith.constant 0 : i32
      %403 = arith.cmpi slt, %401, %c0_i32_261 : i32
      %c0_i32_262 = arith.constant 0 : i32
      %404 = arith.cmpi slt, %400, %c0_i32_262 : i32
      %405 = arith.xori %403, %404 : i1
      %406 = arith.andi %405, %402 : i1
      %407 = arith.addi %401, %400 : i32
      %408 = arith.select %406, %407, %401 : i32
      %409 = arith.index_cast %408 : i32 to index
      %c0_263 = arith.constant 0 : index
      %c0_264 = arith.constant 0 : index
      %410 = vector.load %arg8[%409, %c0_263, %c0_264] : memref<5x16x128xbf16, #tpu.memory_space<vmem>>, vector<1x16x128xbf16>
      %411 = vector.shape_cast %410 : vector<1x16x128xbf16> to vector<16x128xbf16>
      %c1_i32_265 = arith.constant 1 : i32
      %412 = arith.cmpi sgt, %394, %c1_i32_265 : i32
      %cst_266 = arith.constant 0.000000e+00 : bf16
      %413 = vector.broadcast %cst_266 : bf16 to vector<16x128xbf16>
      %414 = arith.select %412, %411, %413 : vector<16x128xbf16>
      %c0_267 = arith.constant 0 : index
      %c0_268 = arith.constant 0 : index
      %c0_269 = arith.constant 0 : index
      %415 = vector.load %arg3[%c0_267, %c0_268, %c0_269] : memref<4x128x128xbf16, #tpu.memory_space<vmem>>, vector<1x128x128xbf16>
      %416 = vector.shape_cast %415 : vector<1x128x128xbf16> to vector<128x128xbf16>
      %cst_270 = arith.constant dense<0.000000e+00> : vector<16x128xf32>
      %417 = tpu.matmul %414, %416, %cst_270 {dimension_numbers = #tpu.dot_dimension_numbers<[1], [0], [0], [1], [0, 0, 1, 1], [], []>} : vector<16x128xbf16>, vector<128x128xbf16>, vector<16x128xf32> -> vector<16x128xf32>
      %418 = arith.addf %396, %417 : vector<16x128xf32>
      %c2_i32_271 = arith.constant 2 : i32
      %419 = arith.subi %394, %c2_i32_271 : i32
      %c5_i32_272 = arith.constant 5 : i32
      %420 = arith.addi %419, %c5_i32_272 : i32
      %c5_i32_273 = arith.constant 5 : i32
      %c0_i32_274 = arith.constant 0 : i32
      %421 = arith.cmpi eq, %c5_i32_273, %c0_i32_274 : i32
      %c1_i32_275 = arith.constant 1 : i32
      %422 = arith.select %421, %c1_i32_275, %c5_i32_273 : i32
      %423 = arith.remsi %420, %422 : i32
      %c0_i32_276 = arith.constant 0 : i32
      %424 = arith.cmpi ne, %423, %c0_i32_276 : i32
      %c0_i32_277 = arith.constant 0 : i32
      %425 = arith.cmpi slt, %423, %c0_i32_277 : i32
      %c0_i32_278 = arith.constant 0 : i32
      %426 = arith.cmpi slt, %422, %c0_i32_278 : i32
      %427 = arith.xori %425, %426 : i1
      %428 = arith.andi %427, %424 : i1
      %429 = arith.addi %423, %422 : i32
      %430 = arith.select %428, %429, %423 : i32
      %431 = arith.index_cast %430 : i32 to index
      %c0_279 = arith.constant 0 : index
      %c0_280 = arith.constant 0 : index
      %432 = vector.load %arg8[%431, %c0_279, %c0_280] : memref<5x16x128xbf16, #tpu.memory_space<vmem>>, vector<1x16x128xbf16>
      %433 = vector.shape_cast %432 : vector<1x16x128xbf16> to vector<16x128xbf16>
      %c2_i32_281 = arith.constant 2 : i32
      %434 = arith.cmpi sgt, %394, %c2_i32_281 : i32
      %cst_282 = arith.constant 0.000000e+00 : bf16
      %435 = vector.broadcast %cst_282 : bf16 to vector<16x128xbf16>
      %436 = arith.select %434, %433, %435 : vector<16x128xbf16>
      %c1_283 = arith.constant 1 : index
      %c0_284 = arith.constant 0 : index
      %c0_285 = arith.constant 0 : index
      %437 = vector.load %arg3[%c1_283, %c0_284, %c0_285] : memref<4x128x128xbf16, #tpu.memory_space<vmem>>, vector<1x128x128xbf16>
      %438 = vector.shape_cast %437 : vector<1x128x128xbf16> to vector<128x128xbf16>
      %cst_286 = arith.constant dense<0.000000e+00> : vector<16x128xf32>
      %439 = tpu.matmul %436, %438, %cst_286 {dimension_numbers = #tpu.dot_dimension_numbers<[1], [0], [0], [1], [0, 0, 1, 1], [], []>} : vector<16x128xbf16>, vector<128x128xbf16>, vector<16x128xf32> -> vector<16x128xf32>
      %440 = arith.addf %418, %439 : vector<16x128xf32>
      %c3_i32_287 = arith.constant 3 : i32
      %441 = arith.subi %394, %c3_i32_287 : i32
      %c5_i32_288 = arith.constant 5 : i32
      %442 = arith.addi %441, %c5_i32_288 : i32
      %c5_i32_289 = arith.constant 5 : i32
      %c0_i32_290 = arith.constant 0 : i32
      %443 = arith.cmpi eq, %c5_i32_289, %c0_i32_290 : i32
      %c1_i32_291 = arith.constant 1 : i32
      %444 = arith.select %443, %c1_i32_291, %c5_i32_289 : i32
      %445 = arith.remsi %442, %444 : i32
      %c0_i32_292 = arith.constant 0 : i32
      %446 = arith.cmpi ne, %445, %c0_i32_292 : i32
      %c0_i32_293 = arith.constant 0 : i32
      %447 = arith.cmpi slt, %445, %c0_i32_293 : i32
      %c0_i32_294 = arith.constant 0 : i32
      %448 = arith.cmpi slt, %444, %c0_i32_294 : i32
      %449 = arith.xori %447, %448 : i1
      %450 = arith.andi %449, %446 : i1
      %451 = arith.addi %445, %444 : i32
      %452 = arith.select %450, %451, %445 : i32
      %453 = arith.index_cast %452 : i32 to index
      %c0_295 = arith.constant 0 : index
      %c0_296 = arith.constant 0 : index
      %454 = vector.load %arg8[%453, %c0_295, %c0_296] : memref<5x16x128xbf16, #tpu.memory_space<vmem>>, vector<1x16x128xbf16>
      %455 = vector.shape_cast %454 : vector<1x16x128xbf16> to vector<16x128xbf16>
      %c3_i32_297 = arith.constant 3 : i32
      %456 = arith.cmpi sgt, %394, %c3_i32_297 : i32
      %cst_298 = arith.constant 0.000000e+00 : bf16
      %457 = vector.broadcast %cst_298 : bf16 to vector<16x128xbf16>
      %458 = arith.select %456, %455, %457 : vector<16x128xbf16>
      %c2_299 = arith.constant 2 : index
      %c0_300 = arith.constant 0 : index
      %c0_301 = arith.constant 0 : index
      %459 = vector.load %arg3[%c2_299, %c0_300, %c0_301] : memref<4x128x128xbf16, #tpu.memory_space<vmem>>, vector<1x128x128xbf16>
      %460 = vector.shape_cast %459 : vector<1x128x128xbf16> to vector<128x128xbf16>
      %cst_302 = arith.constant dense<0.000000e+00> : vector<16x128xf32>
      %461 = tpu.matmul %458, %460, %cst_302 {dimension_numbers = #tpu.dot_dimension_numbers<[1], [0], [0], [1], [0, 0, 1, 1], [], []>} : vector<16x128xbf16>, vector<128x128xbf16>, vector<16x128xf32> -> vector<16x128xf32>
      %462 = arith.addf %440, %461 : vector<16x128xf32>
      %c0_303 = arith.constant 0 : index
      %c0_304 = arith.constant 0 : index
      %463 = vector.load %arg7[%c0_303, %c0_304] : memref<16x128xf32, #tpu.memory_space<vmem>>, vector<16x128xf32>
      %464 = arith.mulf %463, %6 : vector<16x128xf32>
      %465 = arith.addf %464, %462 : vector<16x128xf32>
      %466 = arith.subf %465, %9 : vector<16x128xf32>
      %cst_305 = arith.constant 0.000000e+00 : f32
      %467 = vector.broadcast %cst_305 : f32 to vector<16x128xf32>
      %468 = arith.cmpf ogt, %466, %467 : vector<16x128xf32>
      %469 = arith.extui %468 : vector<16x128xi1> to vector<16x128xi32>
      %470 = arith.sitofp %469 : vector<16x128xi32> to vector<16x128xf32>
      %471 = arith.mulf %470, %9 : vector<16x128xf32>
      %472 = arith.subf %465, %471 : vector<16x128xf32>
      %c0_306 = arith.constant 0 : index
      %c0_307 = arith.constant 0 : index
      %473 = vector.load %arg7[%c0_306, %c0_307] : memref<16x128xf32, #tpu.memory_space<vmem>>, vector<16x128xf32>
      tpu.vector_store %arg7[%c0_306, %c0_307], %472 {strides = array<i32>} : memref<16x128xf32, #tpu.memory_space<vmem>>, vector<16x128xf32>,
      %474 = arith.truncf %470 : vector<16x128xf32> to vector<16x128xbf16>
      %c3_308 = arith.constant 3 : index
      %c0_309 = arith.constant 0 : index
      %c0_310 = arith.constant 0 : index
      %475 = vector.load %arg6[%c3_308, %c0_309, %c0_310] : memref<4x16x128xbf16, #tpu.memory_space<vmem>>, vector<1x16x128xbf16>
      %476 = vector.shape_cast %475 : vector<1x16x128xbf16> to vector<16x128xbf16>
      %477 = vector.shape_cast %474 : vector<16x128xbf16> to vector<1x16x128xbf16>
      tpu.vector_store %arg6[%c3_308, %c0_309, %c0_310], %477 {strides = array<i32>} : memref<4x16x128xbf16, #tpu.memory_space<vmem>>, vector<1x16x128xbf16>,
      %c5_i32_311 = arith.constant 5 : i32
      %c0_i32_312 = arith.constant 0 : i32
      %478 = arith.cmpi eq, %c5_i32_311, %c0_i32_312 : i32
      %c1_i32_313 = arith.constant 1 : i32
      %479 = arith.select %478, %c1_i32_313, %c5_i32_311 : i32
      %480 = arith.remsi %394, %479 : i32
      %c0_i32_314 = arith.constant 0 : i32
      %481 = arith.cmpi ne, %480, %c0_i32_314 : i32
      %c0_i32_315 = arith.constant 0 : i32
      %482 = arith.cmpi slt, %480, %c0_i32_315 : i32
      %c0_i32_316 = arith.constant 0 : i32
      %483 = arith.cmpi slt, %479, %c0_i32_316 : i32
      %484 = arith.xori %482, %483 : i1
      %485 = arith.andi %484, %481 : i1
      %486 = arith.addi %480, %479 : i32
      %487 = arith.select %485, %486, %480 : i32
      %488 = arith.index_cast %487 : i32 to index
      %c0_317 = arith.constant 0 : index
      %c0_318 = arith.constant 0 : index
      %489 = vector.load %arg8[%488, %c0_317, %c0_318] : memref<5x16x128xbf16, #tpu.memory_space<vmem>>, vector<1x16x128xbf16>
      %490 = vector.shape_cast %489 : vector<1x16x128xbf16> to vector<16x128xbf16>
      %491 = vector.shape_cast %474 : vector<16x128xbf16> to vector<1x16x128xbf16>
      tpu.vector_store %arg8[%488, %c0_317, %c0_318], %491 {strides = array<i32>} : memref<5x16x128xbf16, #tpu.memory_space<vmem>>, vector<1x16x128xbf16>,
    } else {
    }
    %c4_i32_6 = arith.constant 4 : i32
    %13 = arith.cmpi sgt, %0, %c4_i32_6 : i32
    %14 = arith.extui %13 : i1 to i32
    %c0_i32_7 = arith.constant 0 : i32
    %15 = arith.cmpi ne, %14, %c0_i32_7 : i32
    scf.if %15 {
      %c0_8 = arith.constant 0 : index
      %c0_9 = arith.constant 0 : index
      %c0_10 = arith.constant 0 : index
      %16 = vector.load %arg2[%c0_8, %c0_9, %c0_10] : memref<4x16x128xf32, #tpu.memory_space<vmem>>, vector<4x16x128xf32>
      %17 = vector.shape_cast %16 : vector<4x16x128xf32> to vector<64x128xf32>
      %c0_i32_11 = arith.constant 0 : i32
      %18 = arith.addi %0, %c0_i32_11 : i32
      %c4_i32_12 = arith.constant 4 : i32
      %19 = arith.subi %18, %c4_i32_12 : i32
      %c5_i32 = arith.constant 5 : i32
      %20 = arith.addi %19, %c5_i32 : i32
      %c5_i32_13 = arith.constant 5 : i32
      %c0_i32_14 = arith.constant 0 : i32
      %21 = arith.cmpi eq, %c5_i32_13, %c0_i32_14 : i32
      %c1_i32 = arith.constant 1 : i32
      %22 = arith.select %21, %c1_i32, %c5_i32_13 : i32
      %23 = arith.remsi %20, %22 : i32
      %c0_i32_15 = arith.constant 0 : i32
      %24 = arith.cmpi ne, %23, %c0_i32_15 : i32
      %c0_i32_16 = arith.constant 0 : i32
      %25 = arith.cmpi slt, %23, %c0_i32_16 : i32
      %c0_i32_17 = arith.constant 0 : i32
      %26 = arith.cmpi slt, %22, %c0_i32_17 : i32
      %27 = arith.xori %25, %26 : i1
      %28 = arith.andi %27, %24 : i1
      %29 = arith.addi %23, %22 : i32
      %30 = arith.select %28, %29, %23 : i32
      %31 = arith.index_cast %30 : i32 to index
      %c0_18 = arith.constant 0 : index
      %c0_19 = arith.constant 0 : index
      %32 = vector.load %arg8[%31, %c0_18, %c0_19] : memref<5x16x128xbf16, #tpu.memory_space<vmem>>, vector<1x16x128xbf16>
      %33 = vector.shape_cast %32 : vector<1x16x128xbf16> to vector<16x128xbf16>
      %c1_i32_20 = arith.constant 1 : i32
      %34 = arith.addi %0, %c1_i32_20 : i32
      %c4_i32_21 = arith.constant 4 : i32
      %35 = arith.subi %34, %c4_i32_21 : i32
      %c5_i32_22 = arith.constant 5 : i32
      %36 = arith.addi %35, %c5_i32_22 : i32
      %c5_i32_23 = arith.constant 5 : i32
      %c0_i32_24 = arith.constant 0 : i32
      %37 = arith.cmpi eq, %c5_i32_23, %c0_i32_24 : i32
      %c1_i32_25 = arith.constant 1 : i32
      %38 = arith.select %37, %c1_i32_25, %c5_i32_23 : i32
      %39 = arith.remsi %36, %38 : i32
      %c0_i32_26 = arith.constant 0 : i32
      %40 = arith.cmpi ne, %39, %c0_i32_26 : i32
      %c0_i32_27 = arith.constant 0 : i32
      %41 = arith.cmpi slt, %39, %c0_i32_27 : i32
      %c0_i32_28 = arith.constant 0 : i32
      %42 = arith.cmpi slt, %38, %c0_i32_28 : i32
      %43 = arith.xori %41, %42 : i1
      %44 = arith.andi %43, %40 : i1
      %45 = arith.addi %39, %38 : i32
      %46 = arith.select %44, %45, %39 : i32
      %47 = arith.index_cast %46 : i32 to index
      %c0_29 = arith.constant 0 : index
      %c0_30 = arith.constant 0 : index
      %48 = vector.load %arg8[%47, %c0_29, %c0_30] : memref<5x16x128xbf16, #tpu.memory_space<vmem>>, vector<1x16x128xbf16>
      %49 = vector.shape_cast %48 : vector<1x16x128xbf16> to vector<16x128xbf16>
      %c2_i32 = arith.constant 2 : i32
      %50 = arith.addi %0, %c2_i32 : i32
      %c4_i32_31 = arith.constant 4 : i32
      %51 = arith.subi %50, %c4_i32_31 : i32
      %c5_i32_32 = arith.constant 5 : i32
      %52 = arith.addi %51, %c5_i32_32 : i32
      %c5_i32_33 = arith.constant 5 : i32
      %c0_i32_34 = arith.constant 0 : i32
      %53 = arith.cmpi eq, %c5_i32_33, %c0_i32_34 : i32
      %c1_i32_35 = arith.constant 1 : i32
      %54 = arith.select %53, %c1_i32_35, %c5_i32_33 : i32
      %55 = arith.remsi %52, %54 : i32
      %c0_i32_36 = arith.constant 0 : i32
      %56 = arith.cmpi ne, %55, %c0_i32_36 : i32
      %c0_i32_37 = arith.constant 0 : i32
      %57 = arith.cmpi slt, %55, %c0_i32_37 : i32
      %c0_i32_38 = arith.constant 0 : i32
      %58 = arith.cmpi slt, %54, %c0_i32_38 : i32
      %59 = arith.xori %57, %58 : i1
      %60 = arith.andi %59, %56 : i1
      %61 = arith.addi %55, %54 : i32
      %62 = arith.select %60, %61, %55 : i32
      %63 = arith.index_cast %62 : i32 to index
      %c0_39 = arith.constant 0 : index
      %c0_40 = arith.constant 0 : index
      %64 = vector.load %arg8[%63, %c0_39, %c0_40] : memref<5x16x128xbf16, #tpu.memory_space<vmem>>, vector<1x16x128xbf16>
      %65 = vector.shape_cast %64 : vector<1x16x128xbf16> to vector<16x128xbf16>
      %c3_i32 = arith.constant 3 : i32
      %66 = arith.addi %0, %c3_i32 : i32
      %c4_i32_41 = arith.constant 4 : i32
      %67 = arith.subi %66, %c4_i32_41 : i32
      %c5_i32_42 = arith.constant 5 : i32
      %68 = arith.addi %67, %c5_i32_42 : i32
      %c5_i32_43 = arith.constant 5 : i32
      %c0_i32_44 = arith.constant 0 : i32
      %69 = arith.cmpi eq, %c5_i32_43, %c0_i32_44 : i32
      %c1_i32_45 = arith.constant 1 : i32
      %70 = arith.select %69, %c1_i32_45, %c5_i32_43 : i32
      %71 = arith.remsi %68, %70 : i32
      %c0_i32_46 = arith.constant 0 : i32
      %72 = arith.cmpi ne, %71, %c0_i32_46 : i32
      %c0_i32_47 = arith.constant 0 : i32
      %73 = arith.cmpi slt, %71, %c0_i32_47 : i32
      %c0_i32_48 = arith.constant 0 : i32
      %74 = arith.cmpi slt, %70, %c0_i32_48 : i32
      %75 = arith.xori %73, %74 : i1
      %76 = arith.andi %75, %72 : i1
      %77 = arith.addi %71, %70 : i32
      %78 = arith.select %76, %77, %71 : i32
      %79 = arith.index_cast %78 : i32 to index
      %c0_49 = arith.constant 0 : index
      %c0_50 = arith.constant 0 : index
      %80 = vector.load %arg8[%79, %c0_49, %c0_50] : memref<5x16x128xbf16, #tpu.memory_space<vmem>>, vector<1x16x128xbf16>
      %81 = vector.shape_cast %80 : vector<1x16x128xbf16> to vector<16x128xbf16>
      %82 = tpu.concatenate %33, %49, %65, %81 in 0 : vector<16x128xbf16>, vector<16x128xbf16>, vector<16x128xbf16>, vector<16x128xbf16> -> vector<64x128xbf16>
      %c3 = arith.constant 3 : index
      %c0_51 = arith.constant 0 : index
      %c0_52 = arith.constant 0 : index
      %83 = vector.load %arg3[%c3, %c0_51, %c0_52] : memref<4x128x128xbf16, #tpu.memory_space<vmem>>, vector<1x128x128xbf16>
      %84 = vector.shape_cast %83 : vector<1x128x128xbf16> to vector<128x128xbf16>
      %cst = arith.constant dense<0.000000e+00> : vector<64x128xf32>
      %85 = tpu.matmul %82, %84, %cst {dimension_numbers = #tpu.dot_dimension_numbers<[1], [0], [0], [1], [0, 0, 1, 1], [], []>} : vector<64x128xbf16>, vector<128x128xbf16>, vector<64x128xf32> -> vector<64x128xf32>
      %86 = arith.addf %17, %85 : vector<64x128xf32>
      %87 = vector.shape_cast %86 : vector<64x128xf32> to vector<4x16x128xf32>
      %c0_i32_53 = arith.constant 0 : i32
      %88 = arith.addi %0, %c0_i32_53 : i32
      %89 = vector.extract_strided_slice %87 {offsets = [0, 0, 0], sizes = [1, 16, 128], strides = [1, 1, 1]} : vector<4x16x128xf32> to vector<1x16x128xf32>
      %90 = vector.shape_cast %89 : vector<1x16x128xf32> to vector<16x128xf32>
      %c1_i32_54 = arith.constant 1 : i32
      %91 = arith.subi %88, %c1_i32_54 : i32
      %c5_i32_55 = arith.constant 5 : i32
      %92 = arith.addi %91, %c5_i32_55 : i32
      %c5_i32_56 = arith.constant 5 : i32
      %c0_i32_57 = arith.constant 0 : i32
      %93 = arith.cmpi eq, %c5_i32_56, %c0_i32_57 : i32
      %c1_i32_58 = arith.constant 1 : i32
      %94 = arith.select %93, %c1_i32_58, %c5_i32_56 : i32
      %95 = arith.remsi %92, %94 : i32
      %c0_i32_59 = arith.constant 0 : i32
      %96 = arith.cmpi ne, %95, %c0_i32_59 : i32
      %c0_i32_60 = arith.constant 0 : i32
      %97 = arith.cmpi slt, %95, %c0_i32_60 : i32
      %c0_i32_61 = arith.constant 0 : i32
      %98 = arith.cmpi slt, %94, %c0_i32_61 : i32
      %99 = arith.xori %97, %98 : i1
      %100 = arith.andi %99, %96 : i1
      %101 = arith.addi %95, %94 : i32
      %102 = arith.select %100, %101, %95 : i32
      %103 = arith.index_cast %102 : i32 to index
      %c0_62 = arith.constant 0 : index
      %c0_63 = arith.constant 0 : index
      %104 = vector.load %arg8[%103, %c0_62, %c0_63] : memref<5x16x128xbf16, #tpu.memory_space<vmem>>, vector<1x16x128xbf16>
      %105 = vector.shape_cast %104 : vector<1x16x128xbf16> to vector<16x128xbf16>
      %c0_64 = arith.constant 0 : index
      %c0_65 = arith.constant 0 : index
      %c0_66 = arith.constant 0 : index
      %106 = vector.load %arg3[%c0_64, %c0_65, %c0_66] : memref<4x128x128xbf16, #tpu.memory_space<vmem>>, vector<1x128x128xbf16>
      %107 = vector.shape_cast %106 : vector<1x128x128xbf16> to vector<128x128xbf16>
      %cst_67 = arith.constant dense<0.000000e+00> : vector<16x128xf32>
      %108 = tpu.matmul %105, %107, %cst_67 {dimension_numbers = #tpu.dot_dimension_numbers<[1], [0], [0], [1], [0, 0, 1, 1], [], []>} : vector<16x128xbf16>, vector<128x128xbf16>, vector<16x128xf32> -> vector<16x128xf32>
      %109 = arith.addf %90, %108 : vector<16x128xf32>
      %c2_i32_68 = arith.constant 2 : i32
      %110 = arith.subi %88, %c2_i32_68 : i32
      %c5_i32_69 = arith.constant 5 : i32
      %111 = arith.addi %110, %c5_i32_69 : i32
      %c5_i32_70 = arith.constant 5 : i32
      %c0_i32_71 = arith.constant 0 : i32
      %112 = arith.cmpi eq, %c5_i32_70, %c0_i32_71 : i32
      %c1_i32_72 = arith.constant 1 : i32
      %113 = arith.select %112, %c1_i32_72, %c5_i32_70 : i32
      %114 = arith.remsi %111, %113 : i32
      %c0_i32_73 = arith.constant 0 : i32
      %115 = arith.cmpi ne, %114, %c0_i32_73 : i32
      %c0_i32_74 = arith.constant 0 : i32
      %116 = arith.cmpi slt, %114, %c0_i32_74 : i32
      %c0_i32_75 = arith.constant 0 : i32
      %117 = arith.cmpi slt, %113, %c0_i32_75 : i32
      %118 = arith.xori %116, %117 : i1
      %119 = arith.andi %118, %115 : i1
      %120 = arith.addi %114, %113 : i32
      %121 = arith.select %119, %120, %114 : i32
      %122 = arith.index_cast %121 : i32 to index
      %c0_76 = arith.constant 0 : index
      %c0_77 = arith.constant 0 : index
      %123 = vector.load %arg8[%122, %c0_76, %c0_77] : memref<5x16x128xbf16, #tpu.memory_space<vmem>>, vector<1x16x128xbf16>
      %124 = vector.shape_cast %123 : vector<1x16x128xbf16> to vector<16x128xbf16>
      %c1 = arith.constant 1 : index
      %c0_78 = arith.constant 0 : index
      %c0_79 = arith.constant 0 : index
      %125 = vector.load %arg3[%c1, %c0_78, %c0_79] : memref<4x128x128xbf16, #tpu.memory_space<vmem>>, vector<1x128x128xbf16>
      %126 = vector.shape_cast %125 : vector<1x128x128xbf16> to vector<128x128xbf16>
      %cst_80 = arith.constant dense<0.000000e+00> : vector<16x128xf32>
      %127 = tpu.matmul %124, %126, %cst_80 {dimension_numbers = #tpu.dot_dimension_numbers<[1], [0], [0], [1], [0, 0, 1, 1], [], []>} : vector<16x128xbf16>, vector<128x128xbf16>, vector<16x128xf32> -> vector<16x128xf32>
      %128 = arith.addf %109, %127 : vector<16x128xf32>
      %c3_i32_81 = arith.constant 3 : i32
      %129 = arith.subi %88, %c3_i32_81 : i32
      %c5_i32_82 = arith.constant 5 : i32
      %130 = arith.addi %129, %c5_i32_82 : i32
      %c5_i32_83 = arith.constant 5 : i32
      %c0_i32_84 = arith.constant 0 : i32
      %131 = arith.cmpi eq, %c5_i32_83, %c0_i32_84 : i32
      %c1_i32_85 = arith.constant 1 : i32
      %132 = arith.select %131, %c1_i32_85, %c5_i32_83 : i32
      %133 = arith.remsi %130, %132 : i32
      %c0_i32_86 = arith.constant 0 : i32
      %134 = arith.cmpi ne, %133, %c0_i32_86 : i32
      %c0_i32_87 = arith.constant 0 : i32
      %135 = arith.cmpi slt, %133, %c0_i32_87 : i32
      %c0_i32_88 = arith.constant 0 : i32
      %136 = arith.cmpi slt, %132, %c0_i32_88 : i32
      %137 = arith.xori %135, %136 : i1
      %138 = arith.andi %137, %134 : i1
      %139 = arith.addi %133, %132 : i32
      %140 = arith.select %138, %139, %133 : i32
      %141 = arith.index_cast %140 : i32 to index
      %c0_89 = arith.constant 0 : index
      %c0_90 = arith.constant 0 : index
      %142 = vector.load %arg8[%141, %c0_89, %c0_90] : memref<5x16x128xbf16, #tpu.memory_space<vmem>>, vector<1x16x128xbf16>
      %143 = vector.shape_cast %142 : vector<1x16x128xbf16> to vector<16x128xbf16>
      %c2 = arith.constant 2 : index
      %c0_91 = arith.constant 0 : index
      %c0_92 = arith.constant 0 : index
      %144 = vector.load %arg3[%c2, %c0_91, %c0_92] : memref<4x128x128xbf16, #tpu.memory_space<vmem>>, vector<1x128x128xbf16>
      %145 = vector.shape_cast %144 : vector<1x128x128xbf16> to vector<128x128xbf16>
      %cst_93 = arith.constant dense<0.000000e+00> : vector<16x128xf32>
      %146 = tpu.matmul %143, %145, %cst_93 {dimension_numbers = #tpu.dot_dimension_numbers<[1], [0], [0], [1], [0, 0, 1, 1], [], []>} : vector<16x128xbf16>, vector<128x128xbf16>, vector<16x128xf32> -> vector<16x128xf32>
      %147 = arith.addf %128, %146 : vector<16x128xf32>
      %c0_94 = arith.constant 0 : index
      %c0_95 = arith.constant 0 : index
      %148 = vector.load %arg7[%c0_94, %c0_95] : memref<16x128xf32, #tpu.memory_space<vmem>>, vector<16x128xf32>
      %149 = arith.mulf %148, %6 : vector<16x128xf32>
      %150 = arith.addf %149, %147 : vector<16x128xf32>
      %151 = arith.subf %150, %9 : vector<16x128xf32>
      %cst_96 = arith.constant 0.000000e+00 : f32
      %152 = vector.broadcast %cst_96 : f32 to vector<16x128xf32>
      %153 = arith.cmpf ogt, %151, %152 : vector<16x128xf32>
      %154 = arith.extui %153 : vector<16x128xi1> to vector<16x128xi32>
      %155 = arith.sitofp %154 : vector<16x128xi32> to vector<16x128xf32>
      %156 = arith.mulf %155, %9 : vector<16x128xf32>
      %157 = arith.subf %150, %156 : vector<16x128xf32>
      %c0_97 = arith.constant 0 : index
      %c0_98 = arith.constant 0 : index
      %158 = vector.load %arg7[%c0_97, %c0_98] : memref<16x128xf32, #tpu.memory_space<vmem>>, vector<16x128xf32>
      tpu.vector_store %arg7[%c0_97, %c0_98], %157 {strides = array<i32>} : memref<16x128xf32, #tpu.memory_space<vmem>>, vector<16x128xf32>,
      %159 = arith.truncf %155 : vector<16x128xf32> to vector<16x128xbf16>
      %c0_99 = arith.constant 0 : index
      %c0_100 = arith.constant 0 : index
      %c0_101 = arith.constant 0 : index
      %160 = vector.load %arg6[%c0_99, %c0_100, %c0_101] : memref<4x16x128xbf16, #tpu.memory_space<vmem>>, vector<1x16x128xbf16>
      %161 = vector.shape_cast %160 : vector<1x16x128xbf16> to vector<16x128xbf16>
      %162 = vector.shape_cast %159 : vector<16x128xbf16> to vector<1x16x128xbf16>
      tpu.vector_store %arg6[%c0_99, %c0_100, %c0_101], %162 {strides = array<i32>} : memref<4x16x128xbf16, #tpu.memory_space<vmem>>, vector<1x16x128xbf16>,
      %c5_i32_102 = arith.constant 5 : i32
      %c0_i32_103 = arith.constant 0 : i32
      %163 = arith.cmpi eq, %c5_i32_102, %c0_i32_103 : i32
      %c1_i32_104 = arith.constant 1 : i32
      %164 = arith.select %163, %c1_i32_104, %c5_i32_102 : i32
      %165 = arith.remsi %88, %164 : i32
      %c0_i32_105 = arith.constant 0 : i32
      %166 = arith.cmpi ne, %165, %c0_i32_105 : i32
      %c0_i32_106 = arith.constant 0 : i32
      %167 = arith.cmpi slt, %165, %c0_i32_106 : i32
      %c0_i32_107 = arith.constant 0 : i32
      %168 = arith.cmpi slt, %164, %c0_i32_107 : i32
      %169 = arith.xori %167, %168 : i1
      %170 = arith.andi %169, %166 : i1
      %171 = arith.addi %165, %164 : i32
      %172 = arith.select %170, %171, %165 : i32
      %173 = arith.index_cast %172 : i32 to index
      %c0_108 = arith.constant 0 : index
      %c0_109 = arith.constant 0 : index
      %174 = vector.load %arg8[%173, %c0_108, %c0_109] : memref<5x16x128xbf16, #tpu.memory_space<vmem>>, vector<1x16x128xbf16>
      %175 = vector.shape_cast %174 : vector<1x16x128xbf16> to vector<16x128xbf16>
      %176 = vector.shape_cast %159 : vector<16x128xbf16> to vector<1x16x128xbf16>
      tpu.vector_store %arg8[%173, %c0_108, %c0_109], %176 {strides = array<i32>} : memref<5x16x128xbf16, #tpu.memory_space<vmem>>, vector<1x16x128xbf16>,
      %c1_i32_110 = arith.constant 1 : i32
      %177 = arith.addi %0, %c1_i32_110 : i32
      %178 = vector.extract_strided_slice %87 {offsets = [1, 0, 0], sizes = [1, 16, 128], strides = [1, 1, 1]} : vector<4x16x128xf32> to vector<1x16x128xf32>
      %179 = vector.shape_cast %178 : vector<1x16x128xf32> to vector<16x128xf32>
      %c1_i32_111 = arith.constant 1 : i32
      %180 = arith.subi %177, %c1_i32_111 : i32
      %c5_i32_112 = arith.constant 5 : i32
      %181 = arith.addi %180, %c5_i32_112 : i32
      %c5_i32_113 = arith.constant 5 : i32
      %c0_i32_114 = arith.constant 0 : i32
      %182 = arith.cmpi eq, %c5_i32_113, %c0_i32_114 : i32
      %c1_i32_115 = arith.constant 1 : i32
      %183 = arith.select %182, %c1_i32_115, %c5_i32_113 : i32
      %184 = arith.remsi %181, %183 : i32
      %c0_i32_116 = arith.constant 0 : i32
      %185 = arith.cmpi ne, %184, %c0_i32_116 : i32
      %c0_i32_117 = arith.constant 0 : i32
      %186 = arith.cmpi slt, %184, %c0_i32_117 : i32
      %c0_i32_118 = arith.constant 0 : i32
      %187 = arith.cmpi slt, %183, %c0_i32_118 : i32
      %188 = arith.xori %186, %187 : i1
      %189 = arith.andi %188, %185 : i1
      %190 = arith.addi %184, %183 : i32
      %191 = arith.select %189, %190, %184 : i32
      %192 = arith.index_cast %191 : i32 to index
      %c0_119 = arith.constant 0 : index
      %c0_120 = arith.constant 0 : index
      %193 = vector.load %arg8[%192, %c0_119, %c0_120] : memref<5x16x128xbf16, #tpu.memory_space<vmem>>, vector<1x16x128xbf16>
      %194 = vector.shape_cast %193 : vector<1x16x128xbf16> to vector<16x128xbf16>
      %c0_121 = arith.constant 0 : index
      %c0_122 = arith.constant 0 : index
      %c0_123 = arith.constant 0 : index
      %195 = vector.load %arg3[%c0_121, %c0_122, %c0_123] : memref<4x128x128xbf16, #tpu.memory_space<vmem>>, vector<1x128x128xbf16>
      %196 = vector.shape_cast %195 : vector<1x128x128xbf16> to vector<128x128xbf16>
      %cst_124 = arith.constant dense<0.000000e+00> : vector<16x128xf32>
      %197 = tpu.matmul %194, %196, %cst_124 {dimension_numbers = #tpu.dot_dimension_numbers<[1], [0], [0], [1], [0, 0, 1, 1], [], []>} : vector<16x128xbf16>, vector<128x128xbf16>, vector<16x128xf32> -> vector<16x128xf32>
      %198 = arith.addf %179, %197 : vector<16x128xf32>
      %c2_i32_125 = arith.constant 2 : i32
      %199 = arith.subi %177, %c2_i32_125 : i32
      %c5_i32_126 = arith.constant 5 : i32
      %200 = arith.addi %199, %c5_i32_126 : i32
      %c5_i32_127 = arith.constant 5 : i32
      %c0_i32_128 = arith.constant 0 : i32
      %201 = arith.cmpi eq, %c5_i32_127, %c0_i32_128 : i32
      %c1_i32_129 = arith.constant 1 : i32
      %202 = arith.select %201, %c1_i32_129, %c5_i32_127 : i32
      %203 = arith.remsi %200, %202 : i32
      %c0_i32_130 = arith.constant 0 : i32
      %204 = arith.cmpi ne, %203, %c0_i32_130 : i32
      %c0_i32_131 = arith.constant 0 : i32
      %205 = arith.cmpi slt, %203, %c0_i32_131 : i32
      %c0_i32_132 = arith.constant 0 : i32
      %206 = arith.cmpi slt, %202, %c0_i32_132 : i32
      %207 = arith.xori %205, %206 : i1
      %208 = arith.andi %207, %204 : i1
      %209 = arith.addi %203, %202 : i32
      %210 = arith.select %208, %209, %203 : i32
      %211 = arith.index_cast %210 : i32 to index
      %c0_133 = arith.constant 0 : index
      %c0_134 = arith.constant 0 : index
      %212 = vector.load %arg8[%211, %c0_133, %c0_134] : memref<5x16x128xbf16, #tpu.memory_space<vmem>>, vector<1x16x128xbf16>
      %213 = vector.shape_cast %212 : vector<1x16x128xbf16> to vector<16x128xbf16>
      %c1_135 = arith.constant 1 : index
      %c0_136 = arith.constant 0 : index
      %c0_137 = arith.constant 0 : index
      %214 = vector.load %arg3[%c1_135, %c0_136, %c0_137] : memref<4x128x128xbf16, #tpu.memory_space<vmem>>, vector<1x128x128xbf16>
      %215 = vector.shape_cast %214 : vector<1x128x128xbf16> to vector<128x128xbf16>
      %cst_138 = arith.constant dense<0.000000e+00> : vector<16x128xf32>
      %216 = tpu.matmul %213, %215, %cst_138 {dimension_numbers = #tpu.dot_dimension_numbers<[1], [0], [0], [1], [0, 0, 1, 1], [], []>} : vector<16x128xbf16>, vector<128x128xbf16>, vector<16x128xf32> -> vector<16x128xf32>
      %217 = arith.addf %198, %216 : vector<16x128xf32>
      %c3_i32_139 = arith.constant 3 : i32
      %218 = arith.subi %177, %c3_i32_139 : i32
      %c5_i32_140 = arith.constant 5 : i32
      %219 = arith.addi %218, %c5_i32_140 : i32
      %c5_i32_141 = arith.constant 5 : i32
      %c0_i32_142 = arith.constant 0 : i32
      %220 = arith.cmpi eq, %c5_i32_141, %c0_i32_142 : i32
      %c1_i32_143 = arith.constant 1 : i32
      %221 = arith.select %220, %c1_i32_143, %c5_i32_141 : i32
      %222 = arith.remsi %219, %221 : i32
      %c0_i32_144 = arith.constant 0 : i32
      %223 = arith.cmpi ne, %222, %c0_i32_144 : i32
      %c0_i32_145 = arith.constant 0 : i32
      %224 = arith.cmpi slt, %222, %c0_i32_145 : i32
      %c0_i32_146 = arith.constant 0 : i32
      %225 = arith.cmpi slt, %221, %c0_i32_146 : i32
      %226 = arith.xori %224, %225 : i1
      %227 = arith.andi %226, %223 : i1
      %228 = arith.addi %222, %221 : i32
      %229 = arith.select %227, %228, %222 : i32
      %230 = arith.index_cast %229 : i32 to index
      %c0_147 = arith.constant 0 : index
      %c0_148 = arith.constant 0 : index
      %231 = vector.load %arg8[%230, %c0_147, %c0_148] : memref<5x16x128xbf16, #tpu.memory_space<vmem>>, vector<1x16x128xbf16>
      %232 = vector.shape_cast %231 : vector<1x16x128xbf16> to vector<16x128xbf16>
      %c2_149 = arith.constant 2 : index
      %c0_150 = arith.constant 0 : index
      %c0_151 = arith.constant 0 : index
      %233 = vector.load %arg3[%c2_149, %c0_150, %c0_151] : memref<4x128x128xbf16, #tpu.memory_space<vmem>>, vector<1x128x128xbf16>
      %234 = vector.shape_cast %233 : vector<1x128x128xbf16> to vector<128x128xbf16>
      %cst_152 = arith.constant dense<0.000000e+00> : vector<16x128xf32>
      %235 = tpu.matmul %232, %234, %cst_152 {dimension_numbers = #tpu.dot_dimension_numbers<[1], [0], [0], [1], [0, 0, 1, 1], [], []>} : vector<16x128xbf16>, vector<128x128xbf16>, vector<16x128xf32> -> vector<16x128xf32>
      %236 = arith.addf %217, %235 : vector<16x128xf32>
      %c0_153 = arith.constant 0 : index
      %c0_154 = arith.constant 0 : index
      %237 = vector.load %arg7[%c0_153, %c0_154] : memref<16x128xf32, #tpu.memory_space<vmem>>, vector<16x128xf32>
      %238 = arith.mulf %237, %6 : vector<16x128xf32>
      %239 = arith.addf %238, %236 : vector<16x128xf32>
      %240 = arith.subf %239, %9 : vector<16x128xf32>
      %cst_155 = arith.constant 0.000000e+00 : f32
      %241 = vector.broadcast %cst_155 : f32 to vector<16x128xf32>
      %242 = arith.cmpf ogt, %240, %241 : vector<16x128xf32>
      %243 = arith.extui %242 : vector<16x128xi1> to vector<16x128xi32>
      %244 = arith.sitofp %243 : vector<16x128xi32> to vector<16x128xf32>
      %245 = arith.mulf %244, %9 : vector<16x128xf32>
      %246 = arith.subf %239, %245 : vector<16x128xf32>
      %c0_156 = arith.constant 0 : index
      %c0_157 = arith.constant 0 : index
      %247 = vector.load %arg7[%c0_156, %c0_157] : memref<16x128xf32, #tpu.memory_space<vmem>>, vector<16x128xf32>
      tpu.vector_store %arg7[%c0_156, %c0_157], %246 {strides = array<i32>} : memref<16x128xf32, #tpu.memory_space<vmem>>, vector<16x128xf32>,
      %248 = arith.truncf %244 : vector<16x128xf32> to vector<16x128xbf16>
      %c1_158 = arith.constant 1 : index
      %c0_159 = arith.constant 0 : index
      %c0_160 = arith.constant 0 : index
      %249 = vector.load %arg6[%c1_158, %c0_159, %c0_160] : memref<4x16x128xbf16, #tpu.memory_space<vmem>>, vector<1x16x128xbf16>
      %250 = vector.shape_cast %249 : vector<1x16x128xbf16> to vector<16x128xbf16>
      %251 = vector.shape_cast %248 : vector<16x128xbf16> to vector<1x16x128xbf16>
      tpu.vector_store %arg6[%c1_158, %c0_159, %c0_160], %251 {strides = array<i32>} : memref<4x16x128xbf16, #tpu.memory_space<vmem>>, vector<1x16x128xbf16>,
      %c5_i32_161 = arith.constant 5 : i32
      %c0_i32_162 = arith.constant 0 : i32
      %252 = arith.cmpi eq, %c5_i32_161, %c0_i32_162 : i32
      %c1_i32_163 = arith.constant 1 : i32
      %253 = arith.select %252, %c1_i32_163, %c5_i32_161 : i32
      %254 = arith.remsi %177, %253 : i32
      %c0_i32_164 = arith.constant 0 : i32
      %255 = arith.cmpi ne, %254, %c0_i32_164 : i32
      %c0_i32_165 = arith.constant 0 : i32
      %256 = arith.cmpi slt, %254, %c0_i32_165 : i32
      %c0_i32_166 = arith.constant 0 : i32
      %257 = arith.cmpi slt, %253, %c0_i32_166 : i32
      %258 = arith.xori %256, %257 : i1
      %259 = arith.andi %258, %255 : i1
      %260 = arith.addi %254, %253 : i32
      %261 = arith.select %259, %260, %254 : i32
      %262 = arith.index_cast %261 : i32 to index
      %c0_167 = arith.constant 0 : index
      %c0_168 = arith.constant 0 : index
      %263 = vector.load %arg8[%262, %c0_167, %c0_168] : memref<5x16x128xbf16, #tpu.memory_space<vmem>>, vector<1x16x128xbf16>
      %264 = vector.shape_cast %263 : vector<1x16x128xbf16> to vector<16x128xbf16>
      %265 = vector.shape_cast %248 : vector<16x128xbf16> to vector<1x16x128xbf16>
      tpu.vector_store %arg8[%262, %c0_167, %c0_168], %265 {strides = array<i32>} : memref<5x16x128xbf16, #tpu.memory_space<vmem>>, vector<1x16x128xbf16>,
      %c2_i32_169 = arith.constant 2 : i32
      %266 = arith.addi %0, %c2_i32_169 : i32
      %267 = vector.extract_strided_slice %87 {offsets = [2, 0, 0], sizes = [1, 16, 128], strides = [1, 1, 1]} : vector<4x16x128xf32> to vector<1x16x128xf32>
      %268 = vector.shape_cast %267 : vector<1x16x128xf32> to vector<16x128xf32>
      %c1_i32_170 = arith.constant 1 : i32
      %269 = arith.subi %266, %c1_i32_170 : i32
      %c5_i32_171 = arith.constant 5 : i32
      %270 = arith.addi %269, %c5_i32_171 : i32
      %c5_i32_172 = arith.constant 5 : i32
      %c0_i32_173 = arith.constant 0 : i32
      %271 = arith.cmpi eq, %c5_i32_172, %c0_i32_173 : i32
      %c1_i32_174 = arith.constant 1 : i32
      %272 = arith.select %271, %c1_i32_174, %c5_i32_172 : i32
      %273 = arith.remsi %270, %272 : i32
      %c0_i32_175 = arith.constant 0 : i32
      %274 = arith.cmpi ne, %273, %c0_i32_175 : i32
      %c0_i32_176 = arith.constant 0 : i32
      %275 = arith.cmpi slt, %273, %c0_i32_176 : i32
      %c0_i32_177 = arith.constant 0 : i32
      %276 = arith.cmpi slt, %272, %c0_i32_177 : i32
      %277 = arith.xori %275, %276 : i1
      %278 = arith.andi %277, %274 : i1
      %279 = arith.addi %273, %272 : i32
      %280 = arith.select %278, %279, %273 : i32
      %281 = arith.index_cast %280 : i32 to index
      %c0_178 = arith.constant 0 : index
      %c0_179 = arith.constant 0 : index
      %282 = vector.load %arg8[%281, %c0_178, %c0_179] : memref<5x16x128xbf16, #tpu.memory_space<vmem>>, vector<1x16x128xbf16>
      %283 = vector.shape_cast %282 : vector<1x16x128xbf16> to vector<16x128xbf16>
      %c0_180 = arith.constant 0 : index
      %c0_181 = arith.constant 0 : index
      %c0_182 = arith.constant 0 : index
      %284 = vector.load %arg3[%c0_180, %c0_181, %c0_182] : memref<4x128x128xbf16, #tpu.memory_space<vmem>>, vector<1x128x128xbf16>
      %285 = vector.shape_cast %284 : vector<1x128x128xbf16> to vector<128x128xbf16>
      %cst_183 = arith.constant dense<0.000000e+00> : vector<16x128xf32>
      %286 = tpu.matmul %283, %285, %cst_183 {dimension_numbers = #tpu.dot_dimension_numbers<[1], [0], [0], [1], [0, 0, 1, 1], [], []>} : vector<16x128xbf16>, vector<128x128xbf16>, vector<16x128xf32> -> vector<16x128xf32>
      %287 = arith.addf %268, %286 : vector<16x128xf32>
      %c2_i32_184 = arith.constant 2 : i32
      %288 = arith.subi %266, %c2_i32_184 : i32
      %c5_i32_185 = arith.constant 5 : i32
      %289 = arith.addi %288, %c5_i32_185 : i32
      %c5_i32_186 = arith.constant 5 : i32
      %c0_i32_187 = arith.constant 0 : i32
      %290 = arith.cmpi eq, %c5_i32_186, %c0_i32_187 : i32
      %c1_i32_188 = arith.constant 1 : i32
      %291 = arith.select %290, %c1_i32_188, %c5_i32_186 : i32
      %292 = arith.remsi %289, %291 : i32
      %c0_i32_189 = arith.constant 0 : i32
      %293 = arith.cmpi ne, %292, %c0_i32_189 : i32
      %c0_i32_190 = arith.constant 0 : i32
      %294 = arith.cmpi slt, %292, %c0_i32_190 : i32
      %c0_i32_191 = arith.constant 0 : i32
      %295 = arith.cmpi slt, %291, %c0_i32_191 : i32
      %296 = arith.xori %294, %295 : i1
      %297 = arith.andi %296, %293 : i1
      %298 = arith.addi %292, %291 : i32
      %299 = arith.select %297, %298, %292 : i32
      %300 = arith.index_cast %299 : i32 to index
      %c0_192 = arith.constant 0 : index
      %c0_193 = arith.constant 0 : index
      %301 = vector.load %arg8[%300, %c0_192, %c0_193] : memref<5x16x128xbf16, #tpu.memory_space<vmem>>, vector<1x16x128xbf16>
      %302 = vector.shape_cast %301 : vector<1x16x128xbf16> to vector<16x128xbf16>
      %c1_194 = arith.constant 1 : index
      %c0_195 = arith.constant 0 : index
      %c0_196 = arith.constant 0 : index
      %303 = vector.load %arg3[%c1_194, %c0_195, %c0_196] : memref<4x128x128xbf16, #tpu.memory_space<vmem>>, vector<1x128x128xbf16>
      %304 = vector.shape_cast %303 : vector<1x128x128xbf16> to vector<128x128xbf16>
      %cst_197 = arith.constant dense<0.000000e+00> : vector<16x128xf32>
      %305 = tpu.matmul %302, %304, %cst_197 {dimension_numbers = #tpu.dot_dimension_numbers<[1], [0], [0], [1], [0, 0, 1, 1], [], []>} : vector<16x128xbf16>, vector<128x128xbf16>, vector<16x128xf32> -> vector<16x128xf32>
      %306 = arith.addf %287, %305 : vector<16x128xf32>
      %c3_i32_198 = arith.constant 3 : i32
      %307 = arith.subi %266, %c3_i32_198 : i32
      %c5_i32_199 = arith.constant 5 : i32
      %308 = arith.addi %307, %c5_i32_199 : i32
      %c5_i32_200 = arith.constant 5 : i32
      %c0_i32_201 = arith.constant 0 : i32
      %309 = arith.cmpi eq, %c5_i32_200, %c0_i32_201 : i32
      %c1_i32_202 = arith.constant 1 : i32
      %310 = arith.select %309, %c1_i32_202, %c5_i32_200 : i32
      %311 = arith.remsi %308, %310 : i32
      %c0_i32_203 = arith.constant 0 : i32
      %312 = arith.cmpi ne, %311, %c0_i32_203 : i32
      %c0_i32_204 = arith.constant 0 : i32
      %313 = arith.cmpi slt, %311, %c0_i32_204 : i32
      %c0_i32_205 = arith.constant 0 : i32
      %314 = arith.cmpi slt, %310, %c0_i32_205 : i32
      %315 = arith.xori %313, %314 : i1
      %316 = arith.andi %315, %312 : i1
      %317 = arith.addi %311, %310 : i32
      %318 = arith.select %316, %317, %311 : i32
      %319 = arith.index_cast %318 : i32 to index
      %c0_206 = arith.constant 0 : index
      %c0_207 = arith.constant 0 : index
      %320 = vector.load %arg8[%319, %c0_206, %c0_207] : memref<5x16x128xbf16, #tpu.memory_space<vmem>>, vector<1x16x128xbf16>
      %321 = vector.shape_cast %320 : vector<1x16x128xbf16> to vector<16x128xbf16>
      %c2_208 = arith.constant 2 : index
      %c0_209 = arith.constant 0 : index
      %c0_210 = arith.constant 0 : index
      %322 = vector.load %arg3[%c2_208, %c0_209, %c0_210] : memref<4x128x128xbf16, #tpu.memory_space<vmem>>, vector<1x128x128xbf16>
      %323 = vector.shape_cast %322 : vector<1x128x128xbf16> to vector<128x128xbf16>
      %cst_211 = arith.constant dense<0.000000e+00> : vector<16x128xf32>
      %324 = tpu.matmul %321, %323, %cst_211 {dimension_numbers = #tpu.dot_dimension_numbers<[1], [0], [0], [1], [0, 0, 1, 1], [], []>} : vector<16x128xbf16>, vector<128x128xbf16>, vector<16x128xf32> -> vector<16x128xf32>
      %325 = arith.addf %306, %324 : vector<16x128xf32>
      %c0_212 = arith.constant 0 : index
      %c0_213 = arith.constant 0 : index
      %326 = vector.load %arg7[%c0_212, %c0_213] : memref<16x128xf32, #tpu.memory_space<vmem>>, vector<16x128xf32>
      %327 = arith.mulf %326, %6 : vector<16x128xf32>
      %328 = arith.addf %327, %325 : vector<16x128xf32>
      %329 = arith.subf %328, %9 : vector<16x128xf32>
      %cst_214 = arith.constant 0.000000e+00 : f32
      %330 = vector.broadcast %cst_214 : f32 to vector<16x128xf32>
      %331 = arith.cmpf ogt, %329, %330 : vector<16x128xf32>
      %332 = arith.extui %331 : vector<16x128xi1> to vector<16x128xi32>
      %333 = arith.sitofp %332 : vector<16x128xi32> to vector<16x128xf32>
      %334 = arith.mulf %333, %9 : vector<16x128xf32>
      %335 = arith.subf %328, %334 : vector<16x128xf32>
      %c0_215 = arith.constant 0 : index
      %c0_216 = arith.constant 0 : index
      %336 = vector.load %arg7[%c0_215, %c0_216] : memref<16x128xf32, #tpu.memory_space<vmem>>, vector<16x128xf32>
      tpu.vector_store %arg7[%c0_215, %c0_216], %335 {strides = array<i32>} : memref<16x128xf32, #tpu.memory_space<vmem>>, vector<16x128xf32>,
      %337 = arith.truncf %333 : vector<16x128xf32> to vector<16x128xbf16>
      %c2_217 = arith.constant 2 : index
      %c0_218 = arith.constant 0 : index
      %c0_219 = arith.constant 0 : index
      %338 = vector.load %arg6[%c2_217, %c0_218, %c0_219] : memref<4x16x128xbf16, #tpu.memory_space<vmem>>, vector<1x16x128xbf16>
      %339 = vector.shape_cast %338 : vector<1x16x128xbf16> to vector<16x128xbf16>
      %340 = vector.shape_cast %337 : vector<16x128xbf16> to vector<1x16x128xbf16>
      tpu.vector_store %arg6[%c2_217, %c0_218, %c0_219], %340 {strides = array<i32>} : memref<4x16x128xbf16, #tpu.memory_space<vmem>>, vector<1x16x128xbf16>,
      %c5_i32_220 = arith.constant 5 : i32
      %c0_i32_221 = arith.constant 0 : i32
      %341 = arith.cmpi eq, %c5_i32_220, %c0_i32_221 : i32
      %c1_i32_222 = arith.constant 1 : i32
      %342 = arith.select %341, %c1_i32_222, %c5_i32_220 : i32
      %343 = arith.remsi %266, %342 : i32
      %c0_i32_223 = arith.constant 0 : i32
      %344 = arith.cmpi ne, %343, %c0_i32_223 : i32
      %c0_i32_224 = arith.constant 0 : i32
      %345 = arith.cmpi slt, %343, %c0_i32_224 : i32
      %c0_i32_225 = arith.constant 0 : i32
      %346 = arith.cmpi slt, %342, %c0_i32_225 : i32
      %347 = arith.xori %345, %346 : i1
      %348 = arith.andi %347, %344 : i1
      %349 = arith.addi %343, %342 : i32
      %350 = arith.select %348, %349, %343 : i32
      %351 = arith.index_cast %350 : i32 to index
      %c0_226 = arith.constant 0 : index
      %c0_227 = arith.constant 0 : index
      %352 = vector.load %arg8[%351, %c0_226, %c0_227] : memref<5x16x128xbf16, #tpu.memory_space<vmem>>, vector<1x16x128xbf16>
      %353 = vector.shape_cast %352 : vector<1x16x128xbf16> to vector<16x128xbf16>
      %354 = vector.shape_cast %337 : vector<16x128xbf16> to vector<1x16x128xbf16>
      tpu.vector_store %arg8[%351, %c0_226, %c0_227], %354 {strides = array<i32>} : memref<5x16x128xbf16, #tpu.memory_space<vmem>>, vector<1x16x128xbf16>,
      %c3_i32_228 = arith.constant 3 : i32
      %355 = arith.addi %0, %c3_i32_228 : i32
      %356 = vector.extract_strided_slice %87 {offsets = [3, 0, 0], sizes = [1, 16, 128], strides = [1, 1, 1]} : vector<4x16x128xf32> to vector<1x16x128xf32>
      %357 = vector.shape_cast %356 : vector<1x16x128xf32> to vector<16x128xf32>
      %c1_i32_229 = arith.constant 1 : i32
      %358 = arith.subi %355, %c1_i32_229 : i32
      %c5_i32_230 = arith.constant 5 : i32
      %359 = arith.addi %358, %c5_i32_230 : i32
      %c5_i32_231 = arith.constant 5 : i32
      %c0_i32_232 = arith.constant 0 : i32
      %360 = arith.cmpi eq, %c5_i32_231, %c0_i32_232 : i32
      %c1_i32_233 = arith.constant 1 : i32
      %361 = arith.select %360, %c1_i32_233, %c5_i32_231 : i32
      %362 = arith.remsi %359, %361 : i32
      %c0_i32_234 = arith.constant 0 : i32
      %363 = arith.cmpi ne, %362, %c0_i32_234 : i32
      %c0_i32_235 = arith.constant 0 : i32
      %364 = arith.cmpi slt, %362, %c0_i32_235 : i32
      %c0_i32_236 = arith.constant 0 : i32
      %365 = arith.cmpi slt, %361, %c0_i32_236 : i32
      %366 = arith.xori %364, %365 : i1
      %367 = arith.andi %366, %363 : i1
      %368 = arith.addi %362, %361 : i32
      %369 = arith.select %367, %368, %362 : i32
      %370 = arith.index_cast %369 : i32 to index
      %c0_237 = arith.constant 0 : index
      %c0_238 = arith.constant 0 : index
      %371 = vector.load %arg8[%370, %c0_237, %c0_238] : memref<5x16x128xbf16, #tpu.memory_space<vmem>>, vector<1x16x128xbf16>
      %372 = vector.shape_cast %371 : vector<1x16x128xbf16> to vector<16x128xbf16>
      %c0_239 = arith.constant 0 : index
      %c0_240 = arith.constant 0 : index
      %c0_241 = arith.constant 0 : index
      %373 = vector.load %arg3[%c0_239, %c0_240, %c0_241] : memref<4x128x128xbf16, #tpu.memory_space<vmem>>, vector<1x128x128xbf16>
      %374 = vector.shape_cast %373 : vector<1x128x128xbf16> to vector<128x128xbf16>
      %cst_242 = arith.constant dense<0.000000e+00> : vector<16x128xf32>
      %375 = tpu.matmul %372, %374, %cst_242 {dimension_numbers = #tpu.dot_dimension_numbers<[1], [0], [0], [1], [0, 0, 1, 1], [], []>} : vector<16x128xbf16>, vector<128x128xbf16>, vector<16x128xf32> -> vector<16x128xf32>
      %376 = arith.addf %357, %375 : vector<16x128xf32>
      %c2_i32_243 = arith.constant 2 : i32
      %377 = arith.subi %355, %c2_i32_243 : i32
      %c5_i32_244 = arith.constant 5 : i32
      %378 = arith.addi %377, %c5_i32_244 : i32
      %c5_i32_245 = arith.constant 5 : i32
      %c0_i32_246 = arith.constant 0 : i32
      %379 = arith.cmpi eq, %c5_i32_245, %c0_i32_246 : i32
      %c1_i32_247 = arith.constant 1 : i32
      %380 = arith.select %379, %c1_i32_247, %c5_i32_245 : i32
      %381 = arith.remsi %378, %380 : i32
      %c0_i32_248 = arith.constant 0 : i32
      %382 = arith.cmpi ne, %381, %c0_i32_248 : i32
      %c0_i32_249 = arith.constant 0 : i32
      %383 = arith.cmpi slt, %381, %c0_i32_249 : i32
      %c0_i32_250 = arith.constant 0 : i32
      %384 = arith.cmpi slt, %380, %c0_i32_250 : i32
      %385 = arith.xori %383, %384 : i1
      %386 = arith.andi %385, %382 : i1
      %387 = arith.addi %381, %380 : i32
      %388 = arith.select %386, %387, %381 : i32
      %389 = arith.index_cast %388 : i32 to index
      %c0_251 = arith.constant 0 : index
      %c0_252 = arith.constant 0 : index
      %390 = vector.load %arg8[%389, %c0_251, %c0_252] : memref<5x16x128xbf16, #tpu.memory_space<vmem>>, vector<1x16x128xbf16>
      %391 = vector.shape_cast %390 : vector<1x16x128xbf16> to vector<16x128xbf16>
      %c1_253 = arith.constant 1 : index
      %c0_254 = arith.constant 0 : index
      %c0_255 = arith.constant 0 : index
      %392 = vector.load %arg3[%c1_253, %c0_254, %c0_255] : memref<4x128x128xbf16, #tpu.memory_space<vmem>>, vector<1x128x128xbf16>
      %393 = vector.shape_cast %392 : vector<1x128x128xbf16> to vector<128x128xbf16>
      %cst_256 = arith.constant dense<0.000000e+00> : vector<16x128xf32>
      %394 = tpu.matmul %391, %393, %cst_256 {dimension_numbers = #tpu.dot_dimension_numbers<[1], [0], [0], [1], [0, 0, 1, 1], [], []>} : vector<16x128xbf16>, vector<128x128xbf16>, vector<16x128xf32> -> vector<16x128xf32>
      %395 = arith.addf %376, %394 : vector<16x128xf32>
      %c3_i32_257 = arith.constant 3 : i32
      %396 = arith.subi %355, %c3_i32_257 : i32
      %c5_i32_258 = arith.constant 5 : i32
      %397 = arith.addi %396, %c5_i32_258 : i32
      %c5_i32_259 = arith.constant 5 : i32
      %c0_i32_260 = arith.constant 0 : i32
      %398 = arith.cmpi eq, %c5_i32_259, %c0_i32_260 : i32
      %c1_i32_261 = arith.constant 1 : i32
      %399 = arith.select %398, %c1_i32_261, %c5_i32_259 : i32
      %400 = arith.remsi %397, %399 : i32
      %c0_i32_262 = arith.constant 0 : i32
      %401 = arith.cmpi ne, %400, %c0_i32_262 : i32
      %c0_i32_263 = arith.constant 0 : i32
      %402 = arith.cmpi slt, %400, %c0_i32_263 : i32
      %c0_i32_264 = arith.constant 0 : i32
      %403 = arith.cmpi slt, %399, %c0_i32_264 : i32
      %404 = arith.xori %402, %403 : i1
      %405 = arith.andi %404, %401 : i1
      %406 = arith.addi %400, %399 : i32
      %407 = arith.select %405, %406, %400 : i32
      %408 = arith.index_cast %407 : i32 to index
      %c0_265 = arith.constant 0 : index
      %c0_266 = arith.constant 0 : index
      %409 = vector.load %arg8[%408, %c0_265, %c0_266] : memref<5x16x128xbf16, #tpu.memory_space<vmem>>, vector<1x16x128xbf16>
      %410 = vector.shape_cast %409 : vector<1x16x128xbf16> to vector<16x128xbf16>
      %c2_267 = arith.constant 2 : index
      %c0_268 = arith.constant 0 : index
      %c0_269 = arith.constant 0 : index
      %411 = vector.load %arg3[%c2_267, %c0_268, %c0_269] : memref<4x128x128xbf16, #tpu.memory_space<vmem>>, vector<1x128x128xbf16>
      %412 = vector.shape_cast %411 : vector<1x128x128xbf16> to vector<128x128xbf16>
      %cst_270 = arith.constant dense<0.000000e+00> : vector<16x128xf32>
      %413 = tpu.matmul %410, %412, %cst_270 {dimension_numbers = #tpu.dot_dimension_numbers<[1], [0], [0], [1], [0, 0, 1, 1], [], []>} : vector<16x128xbf16>, vector<128x128xbf16>, vector<16x128xf32> -> vector<16x128xf32>
      %414 = arith.addf %395, %413 : vector<16x128xf32>
      %c0_271 = arith.constant 0 : index
      %c0_272 = arith.constant 0 : index
      %415 = vector.load %arg7[%c0_271, %c0_272] : memref<16x128xf32, #tpu.memory_space<vmem>>, vector<16x128xf32>
      %416 = arith.mulf %415, %6 : vector<16x128xf32>
      %417 = arith.addf %416, %414 : vector<16x128xf32>
      %418 = arith.subf %417, %9 : vector<16x128xf32>
      %cst_273 = arith.constant 0.000000e+00 : f32
      %419 = vector.broadcast %cst_273 : f32 to vector<16x128xf32>
      %420 = arith.cmpf ogt, %418, %419 : vector<16x128xf32>
      %421 = arith.extui %420 : vector<16x128xi1> to vector<16x128xi32>
      %422 = arith.sitofp %421 : vector<16x128xi32> to vector<16x128xf32>
      %423 = arith.mulf %422, %9 : vector<16x128xf32>
      %424 = arith.subf %417, %423 : vector<16x128xf32>
      %c0_274 = arith.constant 0 : index
      %c0_275 = arith.constant 0 : index
      %425 = vector.load %arg7[%c0_274, %c0_275] : memref<16x128xf32, #tpu.memory_space<vmem>>, vector<16x128xf32>
      tpu.vector_store %arg7[%c0_274, %c0_275], %424 {strides = array<i32>} : memref<16x128xf32, #tpu.memory_space<vmem>>, vector<16x128xf32>,
      %426 = arith.truncf %422 : vector<16x128xf32> to vector<16x128xbf16>
      %c3_276 = arith.constant 3 : index
      %c0_277 = arith.constant 0 : index
      %c0_278 = arith.constant 0 : index
      %427 = vector.load %arg6[%c3_276, %c0_277, %c0_278] : memref<4x16x128xbf16, #tpu.memory_space<vmem>>, vector<1x16x128xbf16>
      %428 = vector.shape_cast %427 : vector<1x16x128xbf16> to vector<16x128xbf16>
      %429 = vector.shape_cast %426 : vector<16x128xbf16> to vector<1x16x128xbf16>
      tpu.vector_store %arg6[%c3_276, %c0_277, %c0_278], %429 {strides = array<i32>} : memref<4x16x128xbf16, #tpu.memory_space<vmem>>, vector<1x16x128xbf16>,
      %c5_i32_279 = arith.constant 5 : i32
      %c0_i32_280 = arith.constant 0 : i32
      %430 = arith.cmpi eq, %c5_i32_279, %c0_i32_280 : i32
      %c1_i32_281 = arith.constant 1 : i32
      %431 = arith.select %430, %c1_i32_281, %c5_i32_279 : i32
      %432 = arith.remsi %355, %431 : i32
      %c0_i32_282 = arith.constant 0 : i32
      %433 = arith.cmpi ne, %432, %c0_i32_282 : i32
      %c0_i32_283 = arith.constant 0 : i32
      %434 = arith.cmpi slt, %432, %c0_i32_283 : i32
      %c0_i32_284 = arith.constant 0 : i32
      %435 = arith.cmpi slt, %431, %c0_i32_284 : i32
      %436 = arith.xori %434, %435 : i1
      %437 = arith.andi %436, %433 : i1
      %438 = arith.addi %432, %431 : i32
      %439 = arith.select %437, %438, %432 : i32
      %440 = arith.index_cast %439 : i32 to index
      %c0_285 = arith.constant 0 : index
      %c0_286 = arith.constant 0 : index
      %441 = vector.load %arg8[%440, %c0_285, %c0_286] : memref<5x16x128xbf16, #tpu.memory_space<vmem>>, vector<1x16x128xbf16>
      %442 = vector.shape_cast %441 : vector<1x16x128xbf16> to vector<16x128xbf16>
      %443 = vector.shape_cast %426 : vector<16x128xbf16> to vector<1x16x128xbf16>
      tpu.vector_store %arg8[%440, %c0_285, %c0_286], %443 {strides = array<i32>} : memref<5x16x128xbf16, #tpu.memory_space<vmem>>, vector<1x16x128xbf16>,
    } else {
    }
    return
  }
  func.func @transform_0(%arg0: i32, %arg1: i32) -> (i32, i32, i32) {
    %c0_i32 = arith.constant 0 : i32
    %c0_i32_0 = arith.constant 0 : i32
    return %arg1, %arg0, %c0_i32 : i32, i32, i32
  }
  func.func @transform_1(%arg0: i32, %arg1: i32) -> (i32, i32, i32) {
    %c0_i32 = arith.constant 0 : i32
    %c0_i32_0 = arith.constant 0 : i32
    %c0_i32_1 = arith.constant 0 : i32
    %c0_i32_2 = arith.constant 0 : i32
    return %c0_i32, %c0_i32_0, %c0_i32_1 : i32, i32, i32
  }
  func.func @transform_2(%arg0: i32, %arg1: i32) -> (i32, i32) {
    %c0_i32 = arith.constant 0 : i32
    %c0_i32_0 = arith.constant 0 : i32
    %c0_i32_1 = arith.constant 0 : i32
    return %c0_i32, %c0_i32_0 : i32, i32
  }
  func.func @transform_3(%arg0: i32, %arg1: i32) -> (i32, i32) {
    %c0_i32 = arith.constant 0 : i32
    %c0_i32_0 = arith.constant 0 : i32
    %c0_i32_1 = arith.constant 0 : i32
    return %c0_i32, %c0_i32_0 : i32, i32
  }
  func.func @transform_4(%arg0: i32, %arg1: i32) -> (i32, i32, i32) {
    %c0_i32 = arith.constant 0 : i32
    %c0_i32_0 = arith.constant 0 : i32
    return %arg1, %arg0, %c0_i32 : i32, i32, i32
  }
}

</mosaic_0001>

<llo_original>
// kernel: tpu_custom_call.1
$region0: #{tpu_custom_call.1}
  #allocation0 [shape = 'u32[]', space=smem, size = 0x4, offset = 0x4, fixed_abs, tag = 'smem constant byte address 0x4 - core index']
  #allocation1 [shape = 'u32[144,128]{1,0:T(1,128)}', space=vmem, size = 0x12000, scoped, tag = 'internal scratch']
  #allocation2 [shape = 'f32[16,128]{1,0:T(8,128)}', space=vmem, size = 0x2000, scoped, tag = 'scratch operand']
  #allocation3 [shape = 'bf16[5,16,128]{2,1,0:T(8,128)(2,1)}', space=vmem, size = 0x5000, scoped, tag = 'scratch operand']
  %s0 = inlined_call_operand.hbm [shape: f32[16,16,128], index: 0, kind: input, shape index: {}]
  %s1 = inlined_call_operand.hbm [shape: bf16[4,128,128], index: 1, kind: input, shape index: {}]
  %s2 = inlined_call_operand.vmem [shape: f32[1,128], index: 2, kind: input, shape index: {}]
  %s3 = inlined_call_operand.vmem [shape: f32[1,128], index: 3, kind: input, shape index: {}]
  %s4 = inlined_call_operand.hbm [shape: bf16[16,16,128], index: 4, kind: output, shape index: {}]
  %s5 = sld [smem:[#allocation0]]
  $region69: #{tpu_custom_call.1} parent=0
    _
  %s7 = ssub.s32 1, %s5
  %s8 = scalar_select 0, %s7, %s5
  $region1: #{tpu_custom_call.1} parent=0
    #allocation4 [shape = 'u8[65536]{0}', space=vmem, size = 0x10000, scoped, tag = 'input window, operand 0']
    #allocation5 [shape = 's32[2]{0}', space=sflag, size = 0x8, scoped, tag = 'scoped memory for tpu_custom_call.1']
    #allocation6 [shape = 's32[2]{0}', space=sflag, size = 0x8, scoped, tag = 'scoped memory for tpu_custom_call.1']
    #allocation7 [shape = 'u8[131072]{0}', space=vmem, size = 0x20000, scoped, tag = 'input window, operand 1, single buffered']
    #allocation8 [shape = 's32[1]{0}', space=sflag, size = 0x4, scoped, tag = 'scoped memory for tpu_custom_call.1']
    #allocation9 [shape = 'u8[32768]{0}', space=vmem, size = 0x8000, scoped, tag = 'output window, operand 0']
    %9 = vsyncpa [#allocation5], 0
    %s10 = scalar_lea.sflag [#allocation5], 1
    %11 = vsyncpa %s10, 0
    %12 = vsyncpa [#allocation8], 0
    %13 = vsyncpa [#allocation6], 0
    %s14 = scalar_lea.sflag [#allocation6], 1
    %15 = vsyncpa %s14, 0
    loop: start=0, step=1, limit=6
    $region2: #{tpu_custom_call.1} parent=1 // loop_pre_header
      _
    $region3: #{tpu_custom_call.1} parent=1 // loop_header
      %s17 = sphi 0, %s21
      %p18 = scmp.ge.s32.totalorder %s17, 6
      %s24 = sphi 0, %s36
      %s25 = sphi 0, %s32
      %s26 = sphi 0, %s24
      %s27 = sphi 0, %s25
      %s28 = sphi 0, %s26
      %s29 = sphi 0, %s27
      %s41 = sphi 0, %s43
      %s44 = sphi 0, %s41
      %s45 = sphi 0, %s44
      %s61 = sphi 0, %s45
      %s65 = sphi 0, %s65
      %s67 = sphi 0, %s65
      %s68 = sphi 0, %s67
      %s82 = sphi 0, %s68
      %s86 = sphi 0, %s86
      %s88 = sphi 0, %s86
      %s89 = sphi 0, %s88
      %s103 = sphi 0, %s89
      %s107 = sphi 0, %s107
      %s109 = sphi 0, %s107
      %s110 = sphi 0, %s109
      %s124 = sphi 0, %s110
      %s132 = sphi 0, %s134
      %s135 = sphi 0, %s132
      %s136 = sphi 0, %s135
      %s152 = sphi 0, %s136
    $region4: #{tpu_custom_call.1} parent=1 // loop_header_branch
      %20 = sbr.rel (%p18) target = $region8
    $region5: #{tpu_custom_call.1} parent=1 // loop_body
      %s22 = ssub.s32 %s17, 1
      %s23 = ssub.s32 %s17, 2
      %s30 = sadd.s32 1, %s25
      %p31 = scmp.ge.s32.totalorder %s30, 4
      %s32 = scalar_select %p31, 0, %s30
      %s33 = sadd.s32 1, %s24
      %s34 = scalar_select %p31, %s33, %s24
      %p35 = scmp.ge.s32.totalorder %s34, 1
      %s36 = scalar_select %p35, 0, %s34
      %s37 = ssub.s32 %s25, %s32
      %s38 = ssub.s32 %s24, %s36
      %s39 = sor.u32 %s37, %s38
      %p40 = scmp.eq.s32.totalorder %s39, 0
      %s42 = sadd.s32 %s41, 1
      %s43 = scalar_select %p40, %s41, %s42
      %p46 = pneg %p40
      %p47 = scmp.eq.s32.totalorder %s17, 3
      %p48 = por %p46, %p47
      %p49 = scmp.ne.s32.totalorder %s41, %s44
      %p50 = scmp.eq.s32.totalorder %s17, 0
      %p51 = por %p49, %p50
      %p52 = scmp.ne.s32.totalorder %s41, %s44
      %p53 = scmp.eq.s32.totalorder %s22, 3
      %p54 = por %p52, %p53
      %p55 = scmp.ne.s32.totalorder %s44, %s45
      %p56 = scmp.eq.s32.totalorder %s22, 0
      %p57 = por %p55, %p56
      %p58 = scmp.ne.s32.totalorder %s44, %s45
      %p59 = scmp.eq.s32.totalorder %s23, 3
      %p60 = por %p58, %p59
      %p62 = scmp.ne.s32.totalorder %s45, %s61
      %p63 = scmp.eq.s32.totalorder %s23, 0
      %p64 = por %p62, %p63
      %s66 = sadd.s32 %s65, 1
      %p69 = scmp.eq.s32.totalorder %s17, 3
      %p70 = scmp.ne.s32.totalorder %s65, %s67
      %p71 = scmp.eq.s32.totalorder %s17, 0
      %p72 = por %p70, %p71
      %p73 = scmp.ne.s32.totalorder %s65, %s67
      %p74 = scmp.eq.s32.totalorder %s22, 3
      %p75 = por %p73, %p74
      %p76 = scmp.ne.s32.totalorder %s67, %s68
      %p77 = scmp.eq.s32.totalorder %s22, 0
      %p78 = por %p76, %p77
      %p79 = scmp.ne.s32.totalorder %s67, %s68
      %p80 = scmp.eq.s32.totalorder %s23, 3
      %p81 = por %p79, %p80
      %p83 = scmp.ne.s32.totalorder %s68, %s82
      %p84 = scmp.eq.s32.totalorder %s23, 0
      %p85 = por %p83, %p84
      %s87 = sadd.s32 %s86, 1
      %p90 = scmp.eq.s32.totalorder %s17, 3
      %p91 = scmp.ne.s32.totalorder %s86, %s88
      %p92 = scmp.eq.s32.totalorder %s17, 0
      %p93 = por %p91, %p92
      %p94 = scmp.ne.s32.totalorder %s86, %s88
      %p95 = scmp.eq.s32.totalorder %s22, 3
      %p96 = por %p94, %p95
      %p97 = scmp.ne.s32.totalorder %s88, %s89
      %p98 = scmp.eq.s32.totalorder %s22, 0
      %p99 = por %p97, %p98
      %p100 = scmp.ne.s32.totalorder %s88, %s89
      %p101 = scmp.eq.s32.totalorder %s23, 3
      %p102 = por %p100, %p101
      %p104 = scmp.ne.s32.totalorder %s89, %s103
      %p105 = scmp.eq.s32.totalorder %s23, 0
      %p106 = por %p104, %p105
      %s108 = sadd.s32 %s107, 1
      %p111 = scmp.eq.s32.totalorder %s17, 3
      %p112 = scmp.ne.s32.totalorder %s107, %s109
      %p113 = scmp.eq.s32.totalorder %s17, 0
      %p114 = por %p112, %p113
      %p115 = scmp.ne.s32.totalorder %s107, %s109
      %p116 = scmp.eq.s32.totalorder %s22, 3
      %p117 = por %p115, %p116
      %p118 = scmp.ne.s32.totalorder %s109, %s110
      %p119 = scmp.eq.s32.totalorder %s22, 0
      %p120 = por %p118, %p119
      %p121 = scmp.ne.s32.totalorder %s109, %s110
      %p122 = scmp.eq.s32.totalorder %s23, 3
      %p123 = por %p121, %p122
      %p125 = scmp.ne.s32.totalorder %s110, %s124
      %p126 = scmp.eq.s32.totalorder %s23, 0
      %p127 = por %p125, %p126
      %s128 = ssub.s32 %s25, %s32
      %s129 = ssub.s32 %s24, %s36
      %s130 = sor.u32 %s128, %s129
      %p131 = scmp.eq.s32.totalorder %s130, 0
      %s133 = sadd.s32 %s132, 1
      %s134 = scalar_select %p131, %s132, %s133
      %p137 = pneg %p131
      %p138 = scmp.eq.s32.totalorder %s17, 3
      %p139 = por %p137, %p138
      %p140 = scmp.ne.s32.totalorder %s132, %s135
      %p141 = scmp.eq.s32.totalorder %s17, 0
      %p142 = por %p140, %p141
      %p143 = scmp.ne.s32.totalorder %s132, %s135
      %p144 = scmp.eq.s32.totalorder %s22, 3
      %p145 = por %p143, %p144
      %p146 = scmp.ne.s32.totalorder %s135, %s136
      %p147 = scmp.eq.s32.totalorder %s22, 0
      %p148 = por %p146, %p147
      %p149 = scmp.ne.s32.totalorder %s135, %s136
      %p150 = scmp.eq.s32.totalorder %s23, 3
      %p151 = por %p149, %p150
      %p153 = scmp.ne.s32.totalorder %s136, %s152
      %p154 = scmp.eq.s32.totalorder %s23, 0
      %p155 = por %p153, %p154
      %p156 = scmp.le.s32.totalorder 1, %s17
      %p157 = scmp.lt.s32.totalorder %s17, 5
      %p158 = pnand %p156, %p157
      %p159 = pneg %p158
      // Predicated region
      $region9: #{tpu_custom_call.1} parent=5 // pred_check
        _
      $region10: #{tpu_custom_call.1} parent=5 // pred_check_branch
        %161 = sbr.rel (%p158) target = $region12
      $region11: #{tpu_custom_call.1} parent=5 // pred_region
        %s162 = ssub.s32 %s17, 1
        // Predicated region
        $region13: #{tpu_custom_call.1} parent=11 // pred_check
          %p163 = pneg %p78
        $region14: #{tpu_custom_call.1} parent=11 // pred_check_branch
          %165 = sbr.rel (%p163) target = $region16
        $region15: #{tpu_custom_call.1} parent=11 // pred_region
          %s167 = ssub.s32 4096, 4096
          %168 = vsyncadd [#allocation8], %s167
          %s169 = sshll.u32 [#allocation7], 4
          %s170 = int_to_ptr.vmem [resolvable:$true] %s169
          %175 = dma.hbm_to_vmem [thread:$0]  %s1, 4096, %s170, [#allocation8], 64, 64, 4
        $region16: #{tpu_custom_call.1} parent=11 // pred_fallthru
          _
        // Predicated region
        $region17: #{tpu_custom_call.1} parent=11 // pred_check
          %p176 = pneg %p99
        $region18: #{tpu_custom_call.1} parent=11 // pred_check_branch
          %178 = sbr.rel (%p176) target = $region20
        $region19: #{tpu_custom_call.1} parent=11 // pred_region
          _
        $region20: #{tpu_custom_call.1} parent=11 // pred_fallthru
          _
        // Predicated region
        $region21: #{tpu_custom_call.1} parent=11 // pred_check
          %p179 = pneg %p120
        $region22: #{tpu_custom_call.1} parent=11 // pred_check_branch
          %181 = sbr.rel (%p179) target = $region24
        $region23: #{tpu_custom_call.1} parent=11 // pred_region
          _
        $region24: #{tpu_custom_call.1} parent=11 // pred_fallthru
          _
      $region12: #{tpu_custom_call.1} parent=5 // pred_fallthru
        _
      %p182 = scmp.lt.s32.totalorder %s17, 4
      // Predicated region
      $region25: #{tpu_custom_call.1} parent=5 // pred_check
        %p183 = pneg %p182
      $region26: #{tpu_custom_call.1} parent=5 // pred_check_branch
        %185 = sbr.rel (%p183) target = $region28
      $region27: #{tpu_custom_call.1} parent=5 // pred_region
        // Predicated region
        $region29: #{tpu_custom_call.1} parent=27 // pred_check
          %p186 = pneg %p51
        $region30: #{tpu_custom_call.1} parent=27 // pred_check_branch
          %188 = sbr.rel (%p186) target = $region32
        $region31: #{tpu_custom_call.1} parent=27 // pred_region
          %s189 = sand.u32 %s41, 1
          %s190 = scalar_lea.sflag [#allocation5], %s189
          %s191 = sand.u32 %s41, 1
          %s192 = smul.addr %s191, 64
          %s193 = scalar_lea.vmem [#allocation4], %s192
          %s194 = smul.u32 4, %s25
          %s195 = smul.u32 2, %s24
          %s197 = ssub.s32 1024, 1024
          %198 = vsyncadd %s190, %s197
          %s199 = smul.addr %s194, 2
          %s200 = sadd.s32 %s195, %s199
          %s201 = smul.addr %s200, 128
          %s202 = scalar_lea.hbm %s0, %s201
          %s203 = sshll.u32 %s193, 4
          %s204 = int_to_ptr.vmem [resolvable:$true] %s203
          %209 = dma.hbm_to_vmem [thread:$0]  %s202, 1024, %s204, %s190, 128, 128, 8
        $region32: #{tpu_custom_call.1} parent=27 // pred_fallthru
          _
      $region28: #{tpu_custom_call.1} parent=5 // pred_fallthru
        _
      %p210 = scmp.le.s32.totalorder 1, %s17
      %p211 = scmp.lt.s32.totalorder %s17, 5
      %p212 = pnand %p210, %p211
      %p213 = pneg %p212
      // Predicated region
      $region33: #{tpu_custom_call.1} parent=5 // pred_check
        _
      $region34: #{tpu_custom_call.1} parent=5 // pred_check_branch
        %215 = sbr.rel (%p212) target = $region36
      $region35: #{tpu_custom_call.1} parent=5 // pred_region
        %s216 = ssub.s32 %s17, 1
        %s217 = sand.u32 %s44, 1
        %s218 = scalar_lea.sflag [#allocation5], %s217
        %s219 = sand.u32 %s44, 1
        %s220 = smul.addr %s219, 64
        %s221 = scalar_lea.vmem [#allocation4], %s220
        // Predicated region
        $region37: #{tpu_custom_call.1} parent=35 // pred_check
          %p222 = pneg %p57
        $region38: #{tpu_custom_call.1} parent=35 // pred_check_branch
          %224 = sbr.rel (%p222) target = $region40
        $region39: #{tpu_custom_call.1} parent=35 // pred_region
          %225 = dma.done %s218, 1024
        $region40: #{tpu_custom_call.1} parent=35 // pred_fallthru
          _
        // Predicated region
        $region41: #{tpu_custom_call.1} parent=35 // pred_check
          %p226 = pneg %p78
        $region42: #{tpu_custom_call.1} parent=35 // pred_check_branch
          %228 = sbr.rel (%p226) target = $region44
        $region43: #{tpu_custom_call.1} parent=35 // pred_region
          %229 = dma.done [#allocation8], 4096
        $region44: #{tpu_custom_call.1} parent=35 // pred_fallthru
          _
        %s230 = sand.u32 %s44, 1
        %s231 = scalar_lea.sflag [#allocation5], %s230
        %s232 = sand.u32 %s44, 1
        %s233 = smul.addr %s232, 64
        %s234 = scalar_lea.vmem [#allocation4], %s233
        %p235 = pneg %p57
        %p236 = pneg %p54
        %p237 = pneg %p78
        %p238 = pneg %p75
        %p239 = pneg %p99
        %p240 = pneg %p96
        %p241 = pneg %p120
        %p242 = pneg %p117
        %p243 = pneg %p148
        %p244 = pneg %p145
        %s245 = sand.u32 %s135, 1
        %s246 = scalar_lea.sflag [#allocation6], %s245
        %s247 = sand.u32 %s135, 1
        %s248 = smul.addr %s247, 32
        %s249 = scalar_lea.vmem [#allocation9], %s248
        %s250 = smul.u32 4, %s27
        %s251 = smul.u32 2, %s26
        %s252 = smul.u32 4, %s27
        %s253 = smul.u32 2, %s26
        %s255 = smul.u32 %s27, 4
        %p256 = scmp.eq.s32.totalorder %s27, 0
        // Predicated region
        $region45: #{tpu_custom_call.1} parent=35 // pred_check
          %p257 = pneg %p256
        $region46: #{tpu_custom_call.1} parent=35 // pred_check_branch
          %259 = sbr.rel (%p257) target = $region48
        $region47: #{tpu_custom_call.1} parent=35 // pred_region
          %260 = vst [vmem:[#allocation2] sm:$0xff] 0.0
          %261 = vst [vmem:[#allocation2 + $0x8] sm:$0xff] 0.0
          %262 = vst [vmem:[#allocation3] sm:$0xf] 0
          %263 = vst [vmem:[#allocation3 + $0x4] sm:$0xf] 0
          %264 = vst [vmem:[#allocation3 + $0x8] sm:$0xf] 0
          %265 = vst [vmem:[#allocation3 + $0xc] sm:$0xf] 0
          %266 = vst [vmem:[#allocation3 + $0x10] sm:$0xf] 0
          %267 = vst [vmem:[#allocation3 + $0x14] sm:$0xf] 0
          %268 = vst [vmem:[#allocation3 + $0x18] sm:$0xf] 0
          %269 = vst [vmem:[#allocation3 + $0x1c] sm:$0xf] 0
          %270 = vst [vmem:[#allocation3 + $0x20] sm:$0xf] 0
          %271 = vst [vmem:[#allocation3 + $0x24] sm:$0xf] 0
        $region48: #{tpu_custom_call.1} parent=35 // pred_fallthru
          _
        %v272 = vld [vmem:[%s2] sm:$0x1]
        %v274 = vlaneseq
        %v275 = vshrl.u32 %v274, 7
        %v276 = vsub.s32 0, %v275
        %v277 = vrot.slane %v272, %v276
        %v279 = vld [vmem:[%s3] sm:$0x1]
        %v281 = vlaneseq
        %v282 = vshrl.u32 %v281, 7
        %v283 = vsub.s32 0, %v282
        %v284 = vrot.slane %v279, %v283
        %p286 = scmp.le.s32.totalorder %s255, 4
        // Predicated region
        $region49: #{tpu_custom_call.1} parent=35 // pred_check
          %p287 = pneg %p286
        $region50: #{tpu_custom_call.1} parent=35 // pred_check_branch
          %289 = sbr.rel (%p287) target = $region52
        $region51: #{tpu_custom_call.1} parent=35 // pred_region
          %v290 = vld [vmem:[%s221] sm:$0xff]
          %v291 = vld [vmem:[%s221 + $0x8] sm:$0xff]
          %v292 = vld [vmem:[%s221 + $0x10] sm:$0xff]
          %v293 = vld [vmem:[%s221 + $0x18] sm:$0xff]
          %v294 = vld [vmem:[%s221 + $0x20] sm:$0xff]
          %v295 = vld [vmem:[%s221 + $0x28] sm:$0xff]
          %v296 = vld [vmem:[%s221 + $0x30] sm:$0xff]
          %v297 = vld [vmem:[%s221 + $0x38] sm:$0xff]
          %s298 = sadd.s32 %s255, 1
          %p299 = scmp.lt.s32.totalorder %s298, 0
          %s300 = ssub.s32 0, %s298
          %s301 = scalar_select %p299, %s300, %s298
          %s302 = sdiv.u32.pop %s301, 5
          %s303 = srem.u32.pop %s301, 5
          %s304 = ssub.s32 0, %s303
          %s305 = scalar_select %p299, %s304, %s303
          %p306 = scmp.ne.s32.totalorder %s305, 0
          %p307 = scmp.lt.s32.totalorder %s305, 0
          %p308 = pnand %p307, %p306
          %p309 = pneg %p308
          %s310 = sadd.s32 %s305, 5
          %s311 = scalar_select %p309, %s310, %s305
          %s312 = smul.u32 %s311, 2
          %s313 = smul.addr %s312, 4
          %s314 = scalar_lea.vmem [#allocation3], %s313
          %v315 = vld [vmem:[%s314] sm:$0xf]
          %v316 = vld [vmem:[%s314 + $0x4] sm:$0xf]
          %p317 = scmp.gt.s32.totalorder %s255, 4
          %s318 = scalar_select %p317, 1, 0
          %v319 = vstv %s318
          %vm320 = vcmp.eq.s32.totalorder %v319, 1
          %v321 = vsel %vm320, %v315, 0
          %v322 = vsel %vm320, %v316, 0
          %s323 = sadd.s32 %s255, 2
          %p324 = scmp.lt.s32.totalorder %s323, 0
          %s325 = ssub.s32 0, %s323
          %s326 = scalar_select %p324, %s325, %s323
          %s327 = sdiv.u32.pop %s326, 5
          %s328 = srem.u32.pop %s326, 5
          %s329 = ssub.s32 0, %s328
          %s330 = scalar_select %p324, %s329, %s328
          %p331 = scmp.ne.s32.totalorder %s330, 0
          %p332 = scmp.lt.s32.totalorder %s330, 0
          %p333 = pnand %p332, %p331
          %p334 = pneg %p333
          %s335 = sadd.s32 %s330, 5
          %s336 = scalar_select %p334, %s335, %s330
          %s337 = smul.u32 %s336, 2
          %s338 = smul.addr %s337, 4
          %s339 = scalar_lea.vmem [#allocation3], %s338
          %v340 = vld [vmem:[%s339] sm:$0xf]
          %v341 = vld [vmem:[%s339 + $0x4] sm:$0xf]
          %p342 = scmp.gt.s32.totalorder %s298, 4
          %s343 = scalar_select %p342, 1, 0
          %v344 = vstv %s343
          %vm345 = vcmp.eq.s32.totalorder %v344, 1
          %v346 = vsel %vm345, %v340, 0
          %v347 = vsel %vm345, %v341, 0
          %s348 = sadd.s32 %s255, 3
          %p349 = scmp.lt.s32.totalorder %s348, 0
          %s350 = ssub.s32 0, %s348
          %s351 = scalar_select %p349, %s350, %s348
          %s352 = sdiv.u32.pop %s351, 5
          %s353 = srem.u32.pop %s351, 5
          %s354 = ssub.s32 0, %s353
          %s355 = scalar_select %p349, %s354, %s353
          %p356 = scmp.ne.s32.totalorder %s355, 0
          %p357 = scmp.lt.s32.totalorder %s355, 0
          %p358 = pnand %p357, %p356
          %p359 = pneg %p358
          %s360 = sadd.s32 %s355, 5
          %s361 = scalar_select %p359, %s360, %s355
          %s362 = smul.u32 %s361, 2
          %s363 = smul.addr %s362, 4
          %s364 = scalar_lea.vmem [#allocation3], %s363
          %v365 = vld [vmem:[%s364] sm:$0xf]
          %v366 = vld [vmem:[%s364 + $0x4] sm:$0xf]
          %p367 = scmp.gt.s32.totalorder %s323, 4
          %s368 = scalar_select %p367, 1, 0
          %v369 = vstv %s368
          %vm370 = vcmp.eq.s32.totalorder %v369, 1
          %v371 = vsel %vm370, %v365, 0
          %v372 = vsel %vm370, %v366, 0
          %s373 = sadd.s32 %s255, 4
          %p374 = scmp.lt.s32.totalorder %s373, 0
          %s375 = ssub.s32 0, %s373
          %s376 = scalar_select %p374, %s375, %s373
          %s377 = sdiv.u32.pop %s376, 5
          %s378 = srem.u32.pop %s376, 5
          %s379 = ssub.s32 0, %s378
          %s380 = scalar_select %p374, %s379, %s378
          %p381 = scmp.ne.s32.totalorder %s380, 0
          %p382 = scmp.lt.s32.totalorder %s380, 0
          %p383 = pnand %p382, %p381
          %p384 = pneg %p383
          %s385 = sadd.s32 %s380, 5
          %s386 = scalar_select %p384, %s385, %s380
          %s387 = smul.u32 %s386, 2
          %s388 = smul.addr %s387, 4
          %s389 = scalar_lea.vmem [#allocation3], %s388
          %v390 = vld [vmem:[%s389] sm:$0xf]
          %v391 = vld [vmem:[%s389 + $0x4] sm:$0xf]
          %p392 = scmp.gt.s32.totalorder %s348, 4
          %s393 = scalar_select %p392, 1, 0
          %v394 = vstv %s393
          %vm395 = vcmp.eq.s32.totalorder %v394, 1
          %v396 = vsel %vm395, %v390, 0
          %v397 = vsel %vm395, %v391, 0
          %v400 = vunpack.c.l.b16 %v321
          %v401 = vunpack.c.l.b16 %v322
          %v402 = vpack.c.b16 %v401, %v400
          %v406 = vunpack.c.l.b16 %v346
          %v407 = vunpack.c.l.b16 %v347
          %v408 = vpack.c.b16 %v407, %v406
          %v412 = vunpack.c.l.b16 %v371
          %v413 = vunpack.c.l.b16 %v372
          %v414 = vpack.c.b16 %v413, %v412
          %v418 = vunpack.c.l.b16 %v396
          %v419 = vunpack.c.l.b16 %v397
          %v420 = vpack.c.b16 %v419, %v418
          %s422 = scalar_lea.vmem [#allocation7], 192
          %v423 = vld [vmem:[%s422] sm:$0xf]
          %v424 = vld [vmem:[%s422 + $0x4] sm:$0xf]
          %v425 = vld [vmem:[%s422 + $0x8] sm:$0xf]
          %v426 = vld [vmem:[%s422 + $0xc] sm:$0xf]
          %v427 = vld [vmem:[%s422 + $0x10] sm:$0xf]
          %v428 = vld [vmem:[%s422 + $0x14] sm:$0xf]
          %v429 = vld [vmem:[%s422 + $0x18] sm:$0xf]
          %v430 = vld [vmem:[%s422 + $0x1c] sm:$0xf]
          %v431 = vld [vmem:[%s422 + $0x20] sm:$0xf]
          %v432 = vld [vmem:[%s422 + $0x24] sm:$0xf]
          %v433 = vld [vmem:[%s422 + $0x28] sm:$0xf]
          %v434 = vld [vmem:[%s422 + $0x2c] sm:$0xf]
          %v435 = vld [vmem:[%s422 + $0x30] sm:$0xf]
          %v436 = vld [vmem:[%s422 + $0x34] sm:$0xf]
          %v437 = vld [vmem:[%s422 + $0x38] sm:$0xf]
          %v438 = vld [vmem:[%s422 + $0x3c] sm:$0xf]
          %v455 = vunpack.c.l.b16 %v423
          %v456 = vunpack.c.l.b16 %v424
          %v457 = vunpack.c.l.b16 %v425
          %v458 = vunpack.c.l.b16 %v426
          %v459 = vunpack.c.l.b16 %v427
          %v460 = vunpack.c.l.b16 %v428
          %v461 = vunpack.c.l.b16 %v429
          %v462 = vunpack.c.l.b16 %v430
          %v463 = vunpack.c.l.b16 %v431
          %v464 = vunpack.c.l.b16 %v432
          %v465 = vunpack.c.l.b16 %v433
          %v466 = vunpack.c.l.b16 %v434
          %v467 = vunpack.c.l.b16 %v435
          %v468 = vunpack.c.l.b16 %v436
          %v469 = vunpack.c.l.b16 %v437
          %v470 = vunpack.c.l.b16 %v438
          %v471 = vpack.c.b16 %v456, %v455
          %v472 = vpack.c.b16 %v458, %v457
          %v473 = vpack.c.b16 %v460, %v459
          %v474 = vpack.c.b16 %v462, %v461
          %v475 = vpack.c.b16 %v464, %v463
          %v476 = vpack.c.b16 %v466, %v465
          %v477 = vpack.c.b16 %v468, %v467
          %v478 = vpack.c.b16 %v470, %v469
          %487 = vmatprep.subr.bf16.mxu0 0
          %488 = vmatpush1.bf16.msra.mxu0 %v478
          %489 = vmatprep.subr.bf16.mxu0 0
          %490 = vmatpush1.bf16.msra.mxu0 %v477
          %491 = vmatprep.subr.bf16.mxu0 0
          %492 = vmatpush1.bf16.msra.mxu0 %v476
          %493 = vmatprep.subr.bf16.mxu0 0
          %494 = vmatpush1.bf16.msra.mxu0 %v475
          %495 = vmatprep.subr.bf16.mxu0 0
          %496 = vmatpush1.bf16.msra.mxu0 %v474
          %497 = vmatprep.subr.bf16.mxu0 0
          %498 = vmatpush1.bf16.msra.mxu0 %v473
          %499 = vmatprep.subr.bf16.mxu0 0
          %500 = vmatpush1.bf16.msra.mxu0 %v472
          %501 = vmatprep.subr.bf16.mxu0 0
          %502 = vmatpush1.bf16.msra.mxu0 %v471
          %503 = vmatprep.subr.bf16.mxu0 0
          %504 = vmatpush2.bf16.msra.mxu0 0
          %505 = vmatprep.subr.bf16.mxu0 0
          %506 = vmatpush2.bf16.msra.mxu0 0
          %507 = vmatprep.subr.bf16.mxu0 0
          %508 = vmatpush2.bf16.msra.mxu0 0
          %509 = vmatprep.subr.bf16.mxu0 0
          %510 = vmatpush2.bf16.msra.mxu0 0
          %511 = vmatprep.subr.bf16.mxu0 0
          %512 = vmatpush2.bf16.msra.mxu0 0
          %513 = vmatprep.subr.bf16.mxu0 0
          %514 = vmatpush2.bf16.msra.mxu0 0
          %515 = vmatprep.subr.bf16.mxu0 0
          %516 = vmatpush2.bf16.msra.mxu0 0
          %517 = vmatprep.subr.bf16.mxu0 0
          %518 = vmatpush2.bf16.msra.mxu0 0
          %519 = vmatprep.mubr.bf16.mxu0 0
          %520 = vmatmul.mubr.bf16.gmra.mxu0 %v402
          %v521 = vpop.f32.mrf.mxu0
          %v522 = vadd.f32 0.0, %v521
          %v523 = vpop.f32.mrf.mxu0
          %v524 = vpop.f32.mrf.mxu0
          %v525 = vadd.f32 0.0, %v524
          %v526 = vpop.f32.mrf.mxu0
          %527 = vmatprep.mubr.bf16.mxu0 0
          %528 = vmatmul.mubr.bf16.gmra.mxu0 %v408
          %v529 = vpop.f32.mrf.mxu0
          %v530 = vadd.f32 0.0, %v529
          %v531 = vpop.f32.mrf.mxu0
          %v532 = vpop.f32.mrf.mxu0
          %v533 = vadd.f32 0.0, %v532
          %v534 = vpop.f32.mrf.mxu0
          %535 = vmatprep.mubr.bf16.mxu0 0
          %536 = vmatmul.mubr.bf16.gmra.mxu0 %v414
          %v537 = vpop.f32.mrf.mxu0
          %v538 = vadd.f32 0.0, %v537
          %v539 = vpop.f32.mrf.mxu0
          %v540 = vpop.f32.mrf.mxu0
          %v541 = vadd.f32 0.0, %v540
          %v542 = vpop.f32.mrf.mxu0
          %543 = vmatprep.mubr.bf16.mxu0 0
          %544 = vmatmul.mubr.bf16.gmra.mxu0 %v420
          %v545 = vpop.f32.mrf.mxu0
          %v546 = vadd.f32 0.0, %v545
          %v547 = vpop.f32.mrf.mxu0
          %v548 = vpop.f32.mrf.mxu0
          %v549 = vadd.f32 0.0, %v548
          %v550 = vpop.f32.mrf.mxu0
          %551 = vdwg.mxu0
          %v552 = vadd.f32 %v290, %v522
          %v553 = vadd.f32 %v291, %v525
          %v554 = vadd.f32 %v292, %v530
          %v555 = vadd.f32 %v293, %v533
          %v556 = vadd.f32 %v294, %v538
          %v557 = vadd.f32 %v295, %v541
          %v558 = vadd.f32 %v296, %v546
          %v559 = vadd.f32 %v297, %v549
          %p560 = scmp.gt.s32.totalorder %s255, 1
          %s561 = scalar_select %p560, 1, 0
          %v562 = vstv %s561
          %vm563 = vcmp.eq.s32.totalorder %v562, 1
          %v564 = vsel %vm563, %v390, 0
          %v565 = vsel %vm563, %v391, 0
          %v566 = vld [vmem:[#allocation7] sm:$0xf]
          %v567 = vld [vmem:[#allocation7 + $0x4] sm:$0xf]
          %v568 = vld [vmem:[#allocation7 + $0x8] sm:$0xf]
          %v569 = vld [vmem:[#allocation7 + $0xc] sm:$0xf]
          %v570 = vld [vmem:[#allocation7 + $0x10] sm:$0xf]
          %v571 = vld [vmem:[#allocation7 + $0x14] sm:$0xf]
          %v572 = vld [vmem:[#allocation7 + $0x18] sm:$0xf]
          %v573 = vld [vmem:[#allocation7 + $0x1c] sm:$0xf]
          %v574 = vld [vmem:[#allocation7 + $0x20] sm:$0xf]
          %v575 = vld [vmem:[#allocation7 + $0x24] sm:$0xf]
          %v576 = vld [vmem:[#allocation7 + $0x28] sm:$0xf]
          %v577 = vld [vmem:[#allocation7 + $0x2c] sm:$0xf]
          %v578 = vld [vmem:[#allocation7 + $0x30] sm:$0xf]
          %v579 = vld [vmem:[#allocation7 + $0x34] sm:$0xf]
          %v580 = vld [vmem:[#allocation7 + $0x38] sm:$0xf]
          %v581 = vld [vmem:[#allocation7 + $0x3c] sm:$0xf]
          %v584 = vunpack.c.l.b16 %v564
          %v585 = vunpack.c.l.b16 %v565
          %v586 = vpack.c.b16 %v585, %v584
          %v604 = vunpack.c.l.b16 %v566
          %v605 = vunpack.c.l.b16 %v567
          %v606 = vunpack.c.l.b16 %v568
          %v607 = vunpack.c.l.b16 %v569
          %v608 = vunpack.c.l.b16 %v570
          %v609 = vunpack.c.l.b16 %v571
          %v610 = vunpack.c.l.b16 %v572
          %v611 = vunpack.c.l.b16 %v573
          %v612 = vunpack.c.l.b16 %v574
          %v613 = vunpack.c.l.b16 %v575
          %v614 = vunpack.c.l.b16 %v576
          %v615 = vunpack.c.l.b16 %v577
          %v616 = vunpack.c.l.b16 %v578
          %v617 = vunpack.c.l.b16 %v579
          %v618 = vunpack.c.l.b16 %v580
          %v619 = vunpack.c.l.b16 %v581
          %v620 = vpack.c.b16 %v605, %v604
          %v621 = vpack.c.b16 %v607, %v606
          %v622 = vpack.c.b16 %v609, %v608
          %v623 = vpack.c.b16 %v611, %v610
          %v624 = vpack.c.b16 %v613, %v612
          %v625 = vpack.c.b16 %v615, %v614
          %v626 = vpack.c.b16 %v617, %v616
          %v627 = vpack.c.b16 %v619, %v618
          %636 = vmatprep.subr.bf16.mxu0 0
          %637 = vmatpush1.bf16.msra.mxu0 %v627
          %638 = vmatprep.subr.bf16.mxu0 0
          %639 = vmatpush1.bf16.msra.mxu0 %v626
          %640 = vmatprep.subr.bf16.mxu0 0
          %641 = vmatpush1.bf16.msra.mxu0 %v625
          %642 = vmatprep.subr.bf16.mxu0 0
          %643 = vmatpush1.bf16.msra.mxu0 %v624
          %644 = vmatprep.subr.bf16.mxu0 0
          %645 = vmatpush1.bf16.msra.mxu0 %v623
          %646 = vmatprep.subr.bf16.mxu0 0
          %647 = vmatpush1.bf16.msra.mxu0 %v622
          %648 = vmatprep.subr.bf16.mxu0 0
          %649 = vmatpush1.bf16.msra.mxu0 %v621
          %650 = vmatprep.subr.bf16.mxu0 0
          %651 = vmatpush1.bf16.msra.mxu0 %v620
          %652 = vmatprep.subr.bf16.mxu0 0
          %653 = vmatpush2.bf16.msra.mxu0 0
          %654 = vmatprep.subr.bf16.mxu0 0
          %655 = vmatpush2.bf16.msra.mxu0 0
          %656 = vmatprep.subr.bf16.mxu0 0
          %657 = vmatpush2.bf16.msra.mxu0 0
          %658 = vmatprep.subr.bf16.mxu0 0
          %659 = vmatpush2.bf16.msra.mxu0 0
          %660 = vmatprep.subr.bf16.mxu0 0
          %661 = vmatpush2.bf16.msra.mxu0 0
          %662 = vmatprep.subr.bf16.mxu0 0
          %663 = vmatpush2.bf16.msra.mxu0 0
          %664 = vmatprep.subr.bf16.mxu0 0
          %665 = vmatpush2.bf16.msra.mxu0 0
          %666 = vmatprep.subr.bf16.mxu0 0
          %667 = vmatpush2.bf16.msra.mxu0 0
          %668 = vmatprep.mubr.bf16.mxu0 0
          %669 = vmatmul.mubr.bf16.gmra.mxu0 %v586
          %v670 = vpop.f32.mrf.mxu0
          %v671 = vadd.f32 0.0, %v670
          %v672 = vpop.f32.mrf.mxu0
          %v673 = vpop.f32.mrf.mxu0
          %v674 = vadd.f32 0.0, %v673
          %v675 = vpop.f32.mrf.mxu0
          %676 = vdwg.mxu0
          %v677 = vadd.f32 %v552, %v671
          %v678 = vadd.f32 %v553, %v674
          %p679 = scmp.gt.s32.totalorder %s255, 2
          %s680 = scalar_select %p679, 1, 0
          %v681 = vstv %s680
          %vm682 = vcmp.eq.s32.totalorder %v681, 1
          %v683 = vsel %vm682, %v365, 0
          %v684 = vsel %vm682, %v366, 0
          %s685 = scalar_lea.vmem [#allocation7], 64
          %v686 = vld [vmem:[%s685] sm:$0xf]
          %v687 = vld [vmem:[%s685 + $0x4] sm:$0xf]
          %v688 = vld [vmem:[%s685 + $0x8] sm:$0xf]
          %v689 = vld [vmem:[%s685 + $0xc] sm:$0xf]
          %v690 = vld [vmem:[%s685 + $0x10] sm:$0xf]
          %v691 = vld [vmem:[%s685 + $0x14] sm:$0xf]
          %v692 = vld [vmem:[%s685 + $0x18] sm:$0xf]
          %v693 = vld [vmem:[%s685 + $0x1c] sm:$0xf]
          %v694 = vld [vmem:[%s685 + $0x20] sm:$0xf]
          %v695 = vld [vmem:[%s685 + $0x24] sm:$0xf]
          %v696 = vld [vmem:[%s685 + $0x28] sm:$0xf]
          %v697 = vld [vmem:[%s685 + $0x2c] sm:$0xf]
          %v698 = vld [vmem:[%s685 + $0x30] sm:$0xf]
          %v699 = vld [vmem:[%s685 + $0x34] sm:$0xf]
          %v700 = vld [vmem:[%s685 + $0x38] sm:$0xf]
          %v701 = vld [vmem:[%s685 + $0x3c] sm:$0xf]
          %v704 = vunpack.c.l.b16 %v683
          %v705 = vunpack.c.l.b16 %v684
          %v706 = vpack.c.b16 %v705, %v704
          %v724 = vunpack.c.l.b16 %v686
          %v725 = vunpack.c.l.b16 %v687
          %v726 = vunpack.c.l.b16 %v688
          %v727 = vunpack.c.l.b16 %v689
          %v728 = vunpack.c.l.b16 %v690
          %v729 = vunpack.c.l.b16 %v691
          %v730 = vunpack.c.l.b16 %v692
          %v731 = vunpack.c.l.b16 %v693
          %v732 = vunpack.c.l.b16 %v694
          %v733 = vunpack.c.l.b16 %v695
          %v734 = vunpack.c.l.b16 %v696
          %v735 = vunpack.c.l.b16 %v697
          %v736 = vunpack.c.l.b16 %v698
          %v737 = vunpack.c.l.b16 %v699
          %v738 = vunpack.c.l.b16 %v700
          %v739 = vunpack.c.l.b16 %v701
          %v740 = vpack.c.b16 %v725, %v724
          %v741 = vpack.c.b16 %v727, %v726
          %v742 = vpack.c.b16 %v729, %v728
          %v743 = vpack.c.b16 %v731, %v730
          %v744 = vpack.c.b16 %v733, %v732
          %v745 = vpack.c.b16 %v735, %v734
          %v746 = vpack.c.b16 %v737, %v736
          %v747 = vpack.c.b16 %v739, %v738
          %756 = vmatprep.subr.bf16.mxu0 0
          %757 = vmatpush1.bf16.msra.mxu0 %v747
          %758 = vmatprep.subr.bf16.mxu0 0
          %759 = vmatpush1.bf16.msra.mxu0 %v746
          %760 = vmatprep.subr.bf16.mxu0 0
          %761 = vmatpush1.bf16.msra.mxu0 %v745
          %762 = vmatprep.subr.bf16.mxu0 0
          %763 = vmatpush1.bf16.msra.mxu0 %v744
          %764 = vmatprep.subr.bf16.mxu0 0
          %765 = vmatpush1.bf16.msra.mxu0 %v743
          %766 = vmatprep.subr.bf16.mxu0 0
          %767 = vmatpush1.bf16.msra.mxu0 %v742
          %768 = vmatprep.subr.bf16.mxu0 0
          %769 = vmatpush1.bf16.msra.mxu0 %v741
          %770 = vmatprep.subr.bf16.mxu0 0
          %771 = vmatpush1.bf16.msra.mxu0 %v740
          %772 = vmatprep.subr.bf16.mxu0 0
          %773 = vmatpush2.bf16.msra.mxu0 0
          %774 = vmatprep.subr.bf16.mxu0 0
          %775 = vmatpush2.bf16.msra.mxu0 0
          %776 = vmatprep.subr.bf16.mxu0 0
          %777 = vmatpush2.bf16.msra.mxu0 0
          %778 = vmatprep.subr.bf16.mxu0 0
          %779 = vmatpush2.bf16.msra.mxu0 0
          %780 = vmatprep.subr.bf16.mxu0 0
          %781 = vmatpush2.bf16.msra.mxu0 0
          %782 = vmatprep.subr.bf16.mxu0 0
          %783 = vmatpush2.bf16.msra.mxu0 0
          %784 = vmatprep.subr.bf16.mxu0 0
          %785 = vmatpush2.bf16.msra.mxu0 0
          %786 = vmatprep.subr.bf16.mxu0 0
          %787 = vmatpush2.bf16.msra.mxu0 0
          %788 = vmatprep.mubr.bf16.mxu0 0
          %789 = vmatmul.mubr.bf16.gmra.mxu0 %v706
          %v790 = vpop.f32.mrf.mxu0
          %v791 = vadd.f32 0.0, %v790
          %v792 = vpop.f32.mrf.mxu0
          %v793 = vpop.f32.mrf.mxu0
          %v794 = vadd.f32 0.0, %v793
          %v795 = vpop.f32.mrf.mxu0
          %796 = vdwg.mxu0
          %v797 = vadd.f32 %v677, %v791
          %v798 = vadd.f32 %v678, %v794
          %p799 = scmp.gt.s32.totalorder %s255, 3
          %s800 = scalar_select %p799, 1, 0
          %v801 = vstv %s800
          %vm802 = vcmp.eq.s32.totalorder %v801, 1
          %v803 = vsel %vm802, %v340, 0
          %v804 = vsel %vm802, %v341, 0
          %s805 = scalar_lea.vmem [#allocation7], 128
          %v806 = vld [vmem:[%s805] sm:$0xf]
          %v807 = vld [vmem:[%s805 + $0x4] sm:$0xf]
          %v808 = vld [vmem:[%s805 + $0x8] sm:$0xf]
          %v809 = vld [vmem:[%s805 + $0xc] sm:$0xf]
          %v810 = vld [vmem:[%s805 + $0x10] sm:$0xf]
          %v811 = vld [vmem:[%s805 + $0x14] sm:$0xf]
          %v812 = vld [vmem:[%s805 + $0x18] sm:$0xf]
          %v813 = vld [vmem:[%s805 + $0x1c] sm:$0xf]
          %v814 = vld [vmem:[%s805 + $0x20] sm:$0xf]
          %v815 = vld [vmem:[%s805 + $0x24] sm:$0xf]
          %v816 = vld [vmem:[%s805 + $0x28] sm:$0xf]
          %v817 = vld [vmem:[%s805 + $0x2c] sm:$0xf]
          %v818 = vld [vmem:[%s805 + $0x30] sm:$0xf]
          %v819 = vld [vmem:[%s805 + $0x34] sm:$0xf]
          %v820 = vld [vmem:[%s805 + $0x38] sm:$0xf]
          %v821 = vld [vmem:[%s805 + $0x3c] sm:$0xf]
          %v824 = vunpack.c.l.b16 %v803
          %v825 = vunpack.c.l.b16 %v804
          %v826 = vpack.c.b16 %v825, %v824
          %v844 = vunpack.c.l.b16 %v806
          %v845 = vunpack.c.l.b16 %v807
          %v846 = vunpack.c.l.b16 %v808
          %v847 = vunpack.c.l.b16 %v809
          %v848 = vunpack.c.l.b16 %v810
          %v849 = vunpack.c.l.b16 %v811
          %v850 = vunpack.c.l.b16 %v812
          %v851 = vunpack.c.l.b16 %v813
          %v852 = vunpack.c.l.b16 %v814
          %v853 = vunpack.c.l.b16 %v815
          %v854 = vunpack.c.l.b16 %v816
          %v855 = vunpack.c.l.b16 %v817
          %v856 = vunpack.c.l.b16 %v818
          %v857 = vunpack.c.l.b16 %v819
          %v858 = vunpack.c.l.b16 %v820
          %v859 = vunpack.c.l.b16 %v821
          %v860 = vpack.c.b16 %v845, %v844
          %v861 = vpack.c.b16 %v847, %v846
          %v862 = vpack.c.b16 %v849, %v848
          %v863 = vpack.c.b16 %v851, %v850
          %v864 = vpack.c.b16 %v853, %v852
          %v865 = vpack.c.b16 %v855, %v854
          %v866 = vpack.c.b16 %v857, %v856
          %v867 = vpack.c.b16 %v859, %v858
          %876 = vmatprep.subr.bf16.mxu0 0
          %877 = vmatpush1.bf16.msra.mxu0 %v867
          %878 = vmatprep.subr.bf16.mxu0 0
          %879 = vmatpush1.bf16.msra.mxu0 %v866
          %880 = vmatprep.subr.bf16.mxu0 0
          %881 = vmatpush1.bf16.msra.mxu0 %v865
          %882 = vmatprep.subr.bf16.mxu0 0
          %883 = vmatpush1.bf16.msra.mxu0 %v864
          %884 = vmatprep.subr.bf16.mxu0 0
          %885 = vmatpush1.bf16.msra.mxu0 %v863
          %886 = vmatprep.subr.bf16.mxu0 0
          %887 = vmatpush1.bf16.msra.mxu0 %v862
          %888 = vmatprep.subr.bf16.mxu0 0
          %889 = vmatpush1.bf16.msra.mxu0 %v861
          %890 = vmatprep.subr.bf16.mxu0 0
          %891 = vmatpush1.bf16.msra.mxu0 %v860
          %892 = vmatprep.subr.bf16.mxu0 0
          %893 = vmatpush2.bf16.msra.mxu0 0
          %894 = vmatprep.subr.bf16.mxu0 0
          %895 = vmatpush2.bf16.msra.mxu0 0
          %896 = vmatprep.subr.bf16.mxu0 0
          %897 = vmatpush2.bf16.msra.mxu0 0
          %898 = vmatprep.subr.bf16.mxu0 0
          %899 = vmatpush2.bf16.msra.mxu0 0
          %900 = vmatprep.subr.bf16.mxu0 0
          %901 = vmatpush2.bf16.msra.mxu0 0
          %902 = vmatprep.subr.bf16.mxu0 0
          %903 = vmatpush2.bf16.msra.mxu0 0
          %904 = vmatprep.subr.bf16.mxu0 0
          %905 = vmatpush2.bf16.msra.mxu0 0
          %906 = vmatprep.subr.bf16.mxu0 0
          %907 = vmatpush2.bf16.msra.mxu0 0
          %908 = vmatprep.mubr.bf16.mxu0 0
          %909 = vmatmul.mubr.bf16.gmra.mxu0 %v826
          %v910 = vpop.f32.mrf.mxu0
          %v911 = vadd.f32 0.0, %v910
          %v912 = vpop.f32.mrf.mxu0
          %v913 = vpop.f32.mrf.mxu0
          %v914 = vadd.f32 0.0, %v913
          %v915 = vpop.f32.mrf.mxu0
          %916 = vdwg.mxu0
          %v917 = vadd.f32 %v797, %v911
          %v918 = vadd.f32 %v798, %v914
          %v919 = vld [vmem:[#allocation2] sm:$0xff]
          %v920 = vld [vmem:[#allocation2 + $0x8] sm:$0xff]
          %v921 = vmul.f32 %v919, %v277
          %v922 = vmul.f32 %v920, %v277
          %v923 = vadd.f32 %v921, %v917
          %v924 = vadd.f32 %v922, %v918
          %v925 = vsub.f32 %v923, %v284
          %v926 = vsub.f32 %v924, %v284
          %vm927 = vcmp.gt.f32.partialorder %v925, 0.0
          %vm928 = vcmp.gt.f32.partialorder %v926, 0.0
          %v929 = vsel %vm927, 1, 0
          %v930 = vsel %vm928, 1, 0
          %v931 = vcvt.s32.f32 %v929
          %v932 = vcvt.s32.f32 %v930
          %v933 = vmul.f32 %v931, %v284
          %v934 = vmul.f32 %v932, %v284
          %v935 = vsub.f32 %v923, %v933
          %v936 = vsub.f32 %v924, %v934
          %937 = vst [vmem:[#allocation2] sm:$0xff] %v935
          %938 = vst [vmem:[#allocation2 + $0x8] sm:$0xff] %v936
          %v939 = vpack.c.bf16 %v932, %v931
          %v941 = vunpack.c.l.b16 %v939
          %v942 = vunpack.c.h.b16 %v939
          %v943 = vpack.c.b16 %v941, %v941
          %v944 = vpack.c.b16 %v942, %v942
          %947 = vst [vmem:[%s249] sm:$0xf] %v943
          %948 = vst [vmem:[%s249 + $0x4] sm:$0xf] %v944
          %p949 = scmp.lt.s32.totalorder %s255, 0
          %s950 = ssub.s32 0, %s255
          %s951 = scalar_select %p949, %s950, %s255
          %s952 = sdiv.u32.pop %s951, 5
          %s953 = srem.u32.pop %s951, 5
          %s954 = ssub.s32 0, %s953
          %s955 = scalar_select %p949, %s954, %s953
          %p956 = scmp.ne.s32.totalorder %s955, 0
          %p957 = scmp.lt.s32.totalorder %s955, 0
          %p958 = pnand %p957, %p956
          %p959 = pneg %p958
          %s960 = sadd.s32 %s955, 5
          %s961 = scalar_select %p959, %s960, %s955
          %s962 = smul.u32 %s961, 2
          %s963 = smul.addr %s962, 4
          %s964 = scalar_lea.vmem [#allocation3], %s963
          %965 = vst [vmem:[%s964] sm:$0xf] %v943
          %966 = vst [vmem:[%s964 + $0x4] sm:$0xf] %v944
          %s967 = sadd.s32 %s255, 5
          %p968 = scmp.lt.s32.totalorder %s967, 0
          %s969 = ssub.s32 0, %s967
          %s970 = scalar_select %p968, %s969, %s967
          %s971 = sdiv.u32.pop %s970, 5
          %s972 = srem.u32.pop %s970, 5
          %s973 = ssub.s32 0, %s972
          %s974 = scalar_select %p968, %s973, %s972
          %p975 = scmp.ne.s32.totalorder %s974, 0
          %p976 = scmp.lt.s32.totalorder %s974, 0
          %p977 = pnand %p976, %p975
          %p978 = pneg %p977
          %s979 = sadd.s32 %s974, 5
          %s980 = scalar_select %p978, %s979, %s974
          %s981 = smul.u32 %s980, 2
          %s982 = smul.addr %s981, 4
          %s983 = scalar_lea.vmem [#allocation3], %s982
          %v984 = vld [vmem:[%s983] sm:$0xf]
          %v985 = vld [vmem:[%s983 + $0x4] sm:$0xf]
          %p986 = scmp.gt.s32.totalorder %s298, 1
          %s987 = scalar_select %p986, 1, 0
          %v988 = vstv %s987
          %vm989 = vcmp.eq.s32.totalorder %v988, 1
          %v990 = vsel %vm989, %v984, 0
          %v991 = vsel %vm989, %v985, 0
          %v992 = vld [vmem:[#allocation7] sm:$0xf]
          %v993 = vld [vmem:[#allocation7 + $0x4] sm:$0xf]
          %v994 = vld [vmem:[#allocation7 + $0x8] sm:$0xf]
          %v995 = vld [vmem:[#allocation7 + $0xc] sm:$0xf]
          %v996 = vld [vmem:[#allocation7 + $0x10] sm:$0xf]
          %v997 = vld [vmem:[#allocation7 + $0x14] sm:$0xf]
          %v998 = vld [vmem:[#allocation7 + $0x18] sm:$0xf]
          %v999 = vld [vmem:[#allocation7 + $0x1c] sm:$0xf]
          %v1000 = vld [vmem:[#allocation7 + $0x20] sm:$0xf]
          %v1001 = vld [vmem:[#allocation7 + $0x24] sm:$0xf]
          %v1002 = vld [vmem:[#allocation7 + $0x28] sm:$0xf]
          %v1003 = vld [vmem:[#allocation7 + $0x2c] sm:$0xf]
          %v1004 = vld [vmem:[#allocation7 + $0x30] sm:$0xf]
          %v1005 = vld [vmem:[#allocation7 + $0x34] sm:$0xf]
          %v1006 = vld [vmem:[#allocation7 + $0x38] sm:$0xf]
          %v1007 = vld [vmem:[#allocation7 + $0x3c] sm:$0xf]
          %v1010 = vunpack.c.l.b16 %v990
          %v1011 = vunpack.c.l.b16 %v991
          %v1012 = vpack.c.b16 %v1011, %v1010
          %v1030 = vunpack.c.l.b16 %v992
          %v1031 = vunpack.c.l.b16 %v993
          %v1032 = vunpack.c.l.b16 %v994
          %v1033 = vunpack.c.l.b16 %v995
          %v1034 = vunpack.c.l.b16 %v996
          %v1035 = vunpack.c.l.b16 %v997
          %v1036 = vunpack.c.l.b16 %v998
          %v1037 = vunpack.c.l.b16 %v999
          %v1038 = vunpack.c.l.b16 %v1000
          %v1039 = vunpack.c.l.b16 %v1001
          %v1040 = vunpack.c.l.b16 %v1002
          %v1041 = vunpack.c.l.b16 %v1003
          %v1042 = vunpack.c.l.b16 %v1004
          %v1043 = vunpack.c.l.b16 %v1005
          %v1044 = vunpack.c.l.b16 %v1006
          %v1045 = vunpack.c.l.b16 %v1007
          %v1046 = vpack.c.b16 %v1031, %v1030
          %v1047 = vpack.c.b16 %v1033, %v1032
          %v1048 = vpack.c.b16 %v1035, %v1034
          %v1049 = vpack.c.b16 %v1037, %v1036
          %v1050 = vpack.c.b16 %v1039, %v1038
          %v1051 = vpack.c.b16 %v1041, %v1040
          %v1052 = vpack.c.b16 %v1043, %v1042
          %v1053 = vpack.c.b16 %v1045, %v1044
          %1062 = vmatprep.subr.bf16.mxu0 0
          %1063 = vmatpush1.bf16.msra.mxu0 %v1053
          %1064 = vmatprep.subr.bf16.mxu0 0
          %1065 = vmatpush1.bf16.msra.mxu0 %v1052
          %1066 = vmatprep.subr.bf16.mxu0 0
          %1067 = vmatpush1.bf16.msra.mxu0 %v1051
          %1068 = vmatprep.subr.bf16.mxu0 0
          %1069 = vmatpush1.bf16.msra.mxu0 %v1050
          %1070 = vmatprep.subr.bf16.mxu0 0
          %1071 = vmatpush1.bf16.msra.mxu0 %v1049
          %1072 = vmatprep.subr.bf16.mxu0 0
          %1073 = vmatpush1.bf16.msra.mxu0 %v1048
          %1074 = vmatprep.subr.bf16.mxu0 0
          %1075 = vmatpush1.bf16.msra.mxu0 %v1047
          %1076 = vmatprep.subr.bf16.mxu0 0
          %1077 = vmatpush1.bf16.msra.mxu0 %v1046
          %1078 = vmatprep.subr.bf16.mxu0 0
          %1079 = vmatpush2.bf16.msra.mxu0 0
          %1080 = vmatprep.subr.bf16.mxu0 0
          %1081 = vmatpush2.bf16.msra.mxu0 0
          %1082 = vmatprep.subr.bf16.mxu0 0
          %1083 = vmatpush2.bf16.msra.mxu0 0
          %1084 = vmatprep.subr.bf16.mxu0 0
          %1085 = vmatpush2.bf16.msra.mxu0 0
          %1086 = vmatprep.subr.bf16.mxu0 0
          %1087 = vmatpush2.bf16.msra.mxu0 0
          %1088 = vmatprep.subr.bf16.mxu0 0
          %1089 = vmatpush2.bf16.msra.mxu0 0
          %1090 = vmatprep.subr.bf16.mxu0 0
          %1091 = vmatpush2.bf16.msra.mxu0 0
          %1092 = vmatprep.subr.bf16.mxu0 0
          %1093 = vmatpush2.bf16.msra.mxu0 0
          %1094 = vmatprep.mubr.bf16.mxu0 0
          %1095 = vmatmul.mubr.bf16.gmra.mxu0 %v1012
          %v1096 = vpop.f32.mrf.mxu0
          %v1097 = vadd.f32 0.0, %v1096
          %v1098 = vpop.f32.mrf.mxu0
          %v1099 = vpop.f32.mrf.mxu0
          %v1100 = vadd.f32 0.0, %v1099
          %v1101 = vpop.f32.mrf.mxu0
          %1102 = vdwg.mxu0
          %v1103 = vadd.f32 %v554, %v1097
          %v1104 = vadd.f32 %v555, %v1100
          %v1105 = vld [vmem:[%s389] sm:$0xf]
          %v1106 = vld [vmem:[%s389 + $0x4] sm:$0xf]
          %p1107 = scmp.gt.s32.totalorder %s298, 2
          %s1108 = scalar_select %p1107, 1, 0
          %v1109 = vstv %s1108
          %vm1110 = vcmp.eq.s32.totalorder %v1109, 1
          %v1111 = vsel %vm1110, %v1105, 0
          %v1112 = vsel %vm1110, %v1106, 0
          %v1113 = vld [vmem:[%s685] sm:$0xf]
          %v1114 = vld [vmem:[%s685 + $0x4] sm:$0xf]
          %v1115 = vld [vmem:[%s685 + $0x8] sm:$0xf]
          %v1116 = vld [vmem:[%s685 + $0xc] sm:$0xf]
          %v1117 = vld [vmem:[%s685 + $0x10] sm:$0xf]
          %v1118 = vld [vmem:[%s685 + $0x14] sm:$0xf]
          %v1119 = vld [vmem:[%s685 + $0x18] sm:$0xf]
          %v1120 = vld [vmem:[%s685 + $0x1c] sm:$0xf]
          %v1121 = vld [vmem:[%s685 + $0x20] sm:$0xf]
          %v1122 = vld [vmem:[%s685 + $0x24] sm:$0xf]
          %v1123 = vld [vmem:[%s685 + $0x28] sm:$0xf]
          %v1124 = vld [vmem:[%s685 + $0x2c] sm:$0xf]
          %v1125 = vld [vmem:[%s685 + $0x30] sm:$0xf]
          %v1126 = vld [vmem:[%s685 + $0x34] sm:$0xf]
          %v1127 = vld [vmem:[%s685 + $0x38] sm:$0xf]
          %v1128 = vld [vmem:[%s685 + $0x3c] sm:$0xf]
          %v1131 = vunpack.c.l.b16 %v1111
          %v1132 = vunpack.c.l.b16 %v1112
          %v1133 = vpack.c.b16 %v1132, %v1131
          %v1151 = vunpack.c.l.b16 %v1113
          %v1152 = vunpack.c.l.b16 %v1114
          %v1153 = vunpack.c.l.b16 %v1115
          %v1154 = vunpack.c.l.b16 %v1116
          %v1155 = vunpack.c.l.b16 %v1117
          %v1156 = vunpack.c.l.b16 %v1118
          %v1157 = vunpack.c.l.b16 %v1119
          %v1158 = vunpack.c.l.b16 %v1120
          %v1159 = vunpack.c.l.b16 %v1121
          %v1160 = vunpack.c.l.b16 %v1122
          %v1161 = vunpack.c.l.b16 %v1123
          %v1162 = vunpack.c.l.b16 %v1124
          %v1163 = vunpack.c.l.b16 %v1125
          %v1164 = vunpack.c.l.b16 %v1126
          %v1165 = vunpack.c.l.b16 %v1127
          %v1166 = vunpack.c.l.b16 %v1128
          %v1167 = vpack.c.b16 %v1152, %v1151
          %v1168 = vpack.c.b16 %v1154, %v1153
          %v1169 = vpack.c.b16 %v1156, %v1155
          %v1170 = vpack.c.b16 %v1158, %v1157
          %v1171 = vpack.c.b16 %v1160, %v1159
          %v1172 = vpack.c.b16 %v1162, %v1161
          %v1173 = vpack.c.b16 %v1164, %v1163
          %v1174 = vpack.c.b16 %v1166, %v1165
          %1183 = vmatprep.subr.bf16.mxu0 0
          %1184 = vmatpush1.bf16.msra.mxu0 %v1174
          %1185 = vmatprep.subr.bf16.mxu0 0
          %1186 = vmatpush1.bf16.msra.mxu0 %v1173
          %1187 = vmatprep.subr.bf16.mxu0 0
          %1188 = vmatpush1.bf16.msra.mxu0 %v1172
          %1189 = vmatprep.subr.bf16.mxu0 0
          %1190 = vmatpush1.bf16.msra.mxu0 %v1171
          %1191 = vmatprep.subr.bf16.mxu0 0
          %1192 = vmatpush1.bf16.msra.mxu0 %v1170
          %1193 = vmatprep.subr.bf16.mxu0 0
          %1194 = vmatpush1.bf16.msra.mxu0 %v1169
          %1195 = vmatprep.subr.bf16.mxu0 0
          %1196 = vmatpush1.bf16.msra.mxu0 %v1168
          %1197 = vmatprep.subr.bf16.mxu0 0
          %1198 = vmatpush1.bf16.msra.mxu0 %v1167
          %1199 = vmatprep.subr.bf16.mxu0 0
          %1200 = vmatpush2.bf16.msra.mxu0 0
          %1201 = vmatprep.subr.bf16.mxu0 0
          %1202 = vmatpush2.bf16.msra.mxu0 0
          %1203 = vmatprep.subr.bf16.mxu0 0
          %1204 = vmatpush2.bf16.msra.mxu0 0
          %1205 = vmatprep.subr.bf16.mxu0 0
          %1206 = vmatpush2.bf16.msra.mxu0 0
          %1207 = vmatprep.subr.bf16.mxu0 0
          %1208 = vmatpush2.bf16.msra.mxu0 0
          %1209 = vmatprep.subr.bf16.mxu0 0
          %1210 = vmatpush2.bf16.msra.mxu0 0
          %1211 = vmatprep.subr.bf16.mxu0 0
          %1212 = vmatpush2.bf16.msra.mxu0 0
          %1213 = vmatprep.subr.bf16.mxu0 0
          %1214 = vmatpush2.bf16.msra.mxu0 0
          %1215 = vmatprep.mubr.bf16.mxu0 0
          %1216 = vmatmul.mubr.bf16.gmra.mxu0 %v1133
          %v1217 = vpop.f32.mrf.mxu0
          %v1218 = vadd.f32 0.0, %v1217
          %v1219 = vpop.f32.mrf.mxu0
          %v1220 = vpop.f32.mrf.mxu0
          %v1221 = vadd.f32 0.0, %v1220
          %v1222 = vpop.f32.mrf.mxu0
          %1223 = vdwg.mxu0
          %v1224 = vadd.f32 %v1103, %v1218
          %v1225 = vadd.f32 %v1104, %v1221
          %v1226 = vld [vmem:[%s364] sm:$0xf]
          %v1227 = vld [vmem:[%s364 + $0x4] sm:$0xf]
          %p1228 = scmp.gt.s32.totalorder %s298, 3
          %s1229 = scalar_select %p1228, 1, 0
          %v1230 = vstv %s1229
          %vm1231 = vcmp.eq.s32.totalorder %v1230, 1
          %v1232 = vsel %vm1231, %v1226, 0
          %v1233 = vsel %vm1231, %v1227, 0
          %v1234 = vld [vmem:[%s805] sm:$0xf]
          %v1235 = vld [vmem:[%s805 + $0x4] sm:$0xf]
          %v1236 = vld [vmem:[%s805 + $0x8] sm:$0xf]
          %v1237 = vld [vmem:[%s805 + $0xc] sm:$0xf]
          %v1238 = vld [vmem:[%s805 + $0x10] sm:$0xf]
          %v1239 = vld [vmem:[%s805 + $0x14] sm:$0xf]
          %v1240 = vld [vmem:[%s805 + $0x18] sm:$0xf]
          %v1241 = vld [vmem:[%s805 + $0x1c] sm:$0xf]
          %v1242 = vld [vmem:[%s805 + $0x20] sm:$0xf]
          %v1243 = vld [vmem:[%s805 + $0x24] sm:$0xf]
          %v1244 = vld [vmem:[%s805 + $0x28] sm:$0xf]
          %v1245 = vld [vmem:[%s805 + $0x2c] sm:$0xf]
          %v1246 = vld [vmem:[%s805 + $0x30] sm:$0xf]
          %v1247 = vld [vmem:[%s805 + $0x34] sm:$0xf]
          %v1248 = vld [vmem:[%s805 + $0x38] sm:$0xf]
          %v1249 = vld [vmem:[%s805 + $0x3c] sm:$0xf]
          %v1252 = vunpack.c.l.b16 %v1232
          %v1253 = vunpack.c.l.b16 %v1233
          %v1254 = vpack.c.b16 %v1253, %v1252
          %v1272 = vunpack.c.l.b16 %v1234
          %v1273 = vunpack.c.l.b16 %v1235
          %v1274 = vunpack.c.l.b16 %v1236
          %v1275 = vunpack.c.l.b16 %v1237
          %v1276 = vunpack.c.l.b16 %v1238
          %v1277 = vunpack.c.l.b16 %v1239
          %v1278 = vunpack.c.l.b16 %v1240
          %v1279 = vunpack.c.l.b16 %v1241
          %v1280 = vunpack.c.l.b16 %v1242
          %v1281 = vunpack.c.l.b16 %v1243
          %v1282 = vunpack.c.l.b16 %v1244
          %v1283 = vunpack.c.l.b16 %v1245
          %v1284 = vunpack.c.l.b16 %v1246
          %v1285 = vunpack.c.l.b16 %v1247
          %v1286 = vunpack.c.l.b16 %v1248
          %v1287 = vunpack.c.l.b16 %v1249
          %v1288 = vpack.c.b16 %v1273, %v1272
          %v1289 = vpack.c.b16 %v1275, %v1274
          %v1290 = vpack.c.b16 %v1277, %v1276
          %v1291 = vpack.c.b16 %v1279, %v1278
          %v1292 = vpack.c.b16 %v1281, %v1280
          %v1293 = vpack.c.b16 %v1283, %v1282
          %v1294 = vpack.c.b16 %v1285, %v1284
          %v1295 = vpack.c.b16 %v1287, %v1286
          %1304 = vmatprep.subr.bf16.mxu0 0
          %1305 = vmatpush1.bf16.msra.mxu0 %v1295
          %1306 = vmatprep.subr.bf16.mxu0 0
          %1307 = vmatpush1.bf16.msra.mxu0 %v1294
          %1308 = vmatprep.subr.bf16.mxu0 0
          %1309 = vmatpush1.bf16.msra.mxu0 %v1293
          %1310 = vmatprep.subr.bf16.mxu0 0
          %1311 = vmatpush1.bf16.msra.mxu0 %v1292
          %1312 = vmatprep.subr.bf16.mxu0 0
          %1313 = vmatpush1.bf16.msra.mxu0 %v1291
          %1314 = vmatprep.subr.bf16.mxu0 0
          %1315 = vmatpush1.bf16.msra.mxu0 %v1290
          %1316 = vmatprep.subr.bf16.mxu0 0
          %1317 = vmatpush1.bf16.msra.mxu0 %v1289
          %1318 = vmatprep.subr.bf16.mxu0 0
          %1319 = vmatpush1.bf16.msra.mxu0 %v1288
          %1320 = vmatprep.subr.bf16.mxu0 0
          %1321 = vmatpush2.bf16.msra.mxu0 0
          %1322 = vmatprep.subr.bf16.mxu0 0
          %1323 = vmatpush2.bf16.msra.mxu0 0
          %1324 = vmatprep.subr.bf16.mxu0 0
          %1325 = vmatpush2.bf16.msra.mxu0 0
          %1326 = vmatprep.subr.bf16.mxu0 0
          %1327 = vmatpush2.bf16.msra.mxu0 0
          %1328 = vmatprep.subr.bf16.mxu0 0
          %1329 = vmatpush2.bf16.msra.mxu0 0
          %1330 = vmatprep.subr.bf16.mxu0 0
          %1331 = vmatpush2.bf16.msra.mxu0 0
          %1332 = vmatprep.subr.bf16.mxu0 0
          %1333 = vmatpush2.bf16.msra.mxu0 0
          %1334 = vmatprep.subr.bf16.mxu0 0
          %1335 = vmatpush2.bf16.msra.mxu0 0
          %1336 = vmatprep.mubr.bf16.mxu0 0
          %1337 = vmatmul.mubr.bf16.gmra.mxu0 %v1254
          %v1338 = vpop.f32.mrf.mxu0
          %v1339 = vadd.f32 0.0, %v1338
          %v1340 = vpop.f32.mrf.mxu0
          %v1341 = vpop.f32.mrf.mxu0
          %v1342 = vadd.f32 0.0, %v1341
          %v1343 = vpop.f32.mrf.mxu0
          %1344 = vdwg.mxu0
          %v1345 = vadd.f32 %v1224, %v1339
          %v1346 = vadd.f32 %v1225, %v1342
          %v1347 = vld [vmem:[#allocation2] sm:$0xff]
          %v1348 = vld [vmem:[#allocation2 + $0x8] sm:$0xff]
          %v1349 = vmul.f32 %v1347, %v277
          %v1350 = vmul.f32 %v1348, %v277
          %v1351 = vadd.f32 %v1349, %v1345
          %v1352 = vadd.f32 %v1350, %v1346
          %v1353 = vsub.f32 %v1351, %v284
          %v1354 = vsub.f32 %v1352, %v284
          %vm1355 = vcmp.gt.f32.partialorder %v1353, 0.0
          %vm1356 = vcmp.gt.f32.partialorder %v1354, 0.0
          %v1357 = vsel %vm1355, 1, 0
          %v1358 = vsel %vm1356, 1, 0
          %v1359 = vcvt.s32.f32 %v1357
          %v1360 = vcvt.s32.f32 %v1358
          %v1361 = vmul.f32 %v1359, %v284
          %v1362 = vmul.f32 %v1360, %v284
          %v1363 = vsub.f32 %v1351, %v1361
          %v1364 = vsub.f32 %v1352, %v1362
          %1365 = vst [vmem:[#allocation2] sm:$0xff] %v1363
          %1366 = vst [vmem:[#allocation2 + $0x8] sm:$0xff] %v1364
          %v1367 = vpack.c.bf16 %v1360, %v1359
          %v1369 = vunpack.c.l.b16 %v1367
          %v1370 = vunpack.c.h.b16 %v1367
          %v1371 = vpack.c.b16 %v1369, %v1369
          %v1372 = vpack.c.b16 %v1370, %v1370
          %s1375 = scalar_lea.vmem %s249, 8 [#allocation9]
          %1376 = vst [vmem:[%s1375] sm:$0xf] %v1371
          %1377 = vst [vmem:[%s1375 + $0x4] sm:$0xf] %v1372
          %1378 = vst [vmem:[%s314] sm:$0xf] %v1371
          %1379 = vst [vmem:[%s314 + $0x4] sm:$0xf] %v1372
          %s1380 = sadd.s32 %s255, 6
          %p1381 = scmp.lt.s32.totalorder %s1380, 0
          %s1382 = ssub.s32 0, %s1380
          %s1383 = scalar_select %p1381, %s1382, %s1380
          %s1384 = sdiv.u32.pop %s1383, 5
          %s1385 = srem.u32.pop %s1383, 5
          %s1386 = ssub.s32 0, %s1385
          %s1387 = scalar_select %p1381, %s1386, %s1385
          %p1388 = scmp.ne.s32.totalorder %s1387, 0
          %p1389 = scmp.lt.s32.totalorder %s1387, 0
          %p1390 = pnand %p1389, %p1388
          %p1391 = pneg %p1390
          %s1392 = sadd.s32 %s1387, 5
          %s1393 = scalar_select %p1391, %s1392, %s1387
          %s1394 = smul.u32 %s1393, 2
          %s1395 = smul.addr %s1394, 4
          %s1396 = scalar_lea.vmem [#allocation3], %s1395
          %v1397 = vld [vmem:[%s1396] sm:$0xf]
          %v1398 = vld [vmem:[%s1396 + $0x4] sm:$0xf]
          %p1399 = scmp.gt.s32.totalorder %s323, 1
          %s1400 = scalar_select %p1399, 1, 0
          %v1401 = vstv %s1400
          %vm1402 = vcmp.eq.s32.totalorder %v1401, 1
          %v1403 = vsel %vm1402, %v1397, 0
          %v1404 = vsel %vm1402, %v1398, 0
          %v1405 = vld [vmem:[#allocation7] sm:$0xf]
          %v1406 = vld [vmem:[#allocation7 + $0x4] sm:$0xf]
          %v1407 = vld [vmem:[#allocation7 + $0x8] sm:$0xf]
          %v1408 = vld [vmem:[#allocation7 + $0xc] sm:$0xf]
          %v1409 = vld [vmem:[#allocation7 + $0x10] sm:$0xf]
          %v1410 = vld [vmem:[#allocation7 + $0x14] sm:$0xf]
          %v1411 = vld [vmem:[#allocation7 + $0x18] sm:$0xf]
          %v1412 = vld [vmem:[#allocation7 + $0x1c] sm:$0xf]
          %v1413 = vld [vmem:[#allocation7 + $0x20] sm:$0xf]
          %v1414 = vld [vmem:[#allocation7 + $0x24] sm:$0xf]
          %v1415 = vld [vmem:[#allocation7 + $0x28] sm:$0xf]
          %v1416 = vld [vmem:[#allocation7 + $0x2c] sm:$0xf]
          %v1417 = vld [vmem:[#allocation7 + $0x30] sm:$0xf]
          %v1418 = vld [vmem:[#allocation7 + $0x34] sm:$0xf]
          %v1419 = vld [vmem:[#allocation7 + $0x38] sm:$0xf]
          %v1420 = vld [vmem:[#allocation7 + $0x3c] sm:$0xf]
          %v1423 = vunpack.c.l.b16 %v1403
          %v1424 = vunpack.c.l.b16 %v1404
          %v1425 = vpack.c.b16 %v1424, %v1423
          %v1443 = vunpack.c.l.b16 %v1405
          %v1444 = vunpack.c.l.b16 %v1406
          %v1445 = vunpack.c.l.b16 %v1407
          %v1446 = vunpack.c.l.b16 %v1408
          %v1447 = vunpack.c.l.b16 %v1409
          %v1448 = vunpack.c.l.b16 %v1410
          %v1449 = vunpack.c.l.b16 %v1411
          %v1450 = vunpack.c.l.b16 %v1412
          %v1451 = vunpack.c.l.b16 %v1413
          %v1452 = vunpack.c.l.b16 %v1414
          %v1453 = vunpack.c.l.b16 %v1415
          %v1454 = vunpack.c.l.b16 %v1416
          %v1455 = vunpack.c.l.b16 %v1417
          %v1456 = vunpack.c.l.b16 %v1418
          %v1457 = vunpack.c.l.b16 %v1419
          %v1458 = vunpack.c.l.b16 %v1420
          %v1459 = vpack.c.b16 %v1444, %v1443
          %v1460 = vpack.c.b16 %v1446, %v1445
          %v1461 = vpack.c.b16 %v1448, %v1447
          %v1462 = vpack.c.b16 %v1450, %v1449
          %v1463 = vpack.c.b16 %v1452, %v1451
          %v1464 = vpack.c.b16 %v1454, %v1453
          %v1465 = vpack.c.b16 %v1456, %v1455
          %v1466 = vpack.c.b16 %v1458, %v1457
          %1475 = vmatprep.subr.bf16.mxu0 0
          %1476 = vmatpush1.bf16.msra.mxu0 %v1466
          %1477 = vmatprep.subr.bf16.mxu0 0
          %1478 = vmatpush1.bf16.msra.mxu0 %v1465
          %1479 = vmatprep.subr.bf16.mxu0 0
          %1480 = vmatpush1.bf16.msra.mxu0 %v1464
          %1481 = vmatprep.subr.bf16.mxu0 0
          %1482 = vmatpush1.bf16.msra.mxu0 %v1463
          %1483 = vmatprep.subr.bf16.mxu0 0
          %1484 = vmatpush1.bf16.msra.mxu0 %v1462
          %1485 = vmatprep.subr.bf16.mxu0 0
          %1486 = vmatpush1.bf16.msra.mxu0 %v1461
          %1487 = vmatprep.subr.bf16.mxu0 0
          %1488 = vmatpush1.bf16.msra.mxu0 %v1460
          %1489 = vmatprep.subr.bf16.mxu0 0
          %1490 = vmatpush1.bf16.msra.mxu0 %v1459
          %1491 = vmatprep.subr.bf16.mxu0 0
          %1492 = vmatpush2.bf16.msra.mxu0 0
          %1493 = vmatprep.subr.bf16.mxu0 0
          %1494 = vmatpush2.bf16.msra.mxu0 0
          %1495 = vmatprep.subr.bf16.mxu0 0
          %1496 = vmatpush2.bf16.msra.mxu0 0
          %1497 = vmatprep.subr.bf16.mxu0 0
          %1498 = vmatpush2.bf16.msra.mxu0 0
          %1499 = vmatprep.subr.bf16.mxu0 0
          %1500 = vmatpush2.bf16.msra.mxu0 0
          %1501 = vmatprep.subr.bf16.mxu0 0
          %1502 = vmatpush2.bf16.msra.mxu0 0
          %1503 = vmatprep.subr.bf16.mxu0 0
          %1504 = vmatpush2.bf16.msra.mxu0 0
          %1505 = vmatprep.subr.bf16.mxu0 0
          %1506 = vmatpush2.bf16.msra.mxu0 0
          %1507 = vmatprep.mubr.bf16.mxu0 0
          %1508 = vmatmul.mubr.bf16.gmra.mxu0 %v1425
          %v1509 = vpop.f32.mrf.mxu0
          %v1510 = vadd.f32 0.0, %v1509
          %v1511 = vpop.f32.mrf.mxu0
          %v1512 = vpop.f32.mrf.mxu0
          %v1513 = vadd.f32 0.0, %v1512
          %v1514 = vpop.f32.mrf.mxu0
          %1515 = vdwg.mxu0
          %v1516 = vadd.f32 %v556, %v1510
          %v1517 = vadd.f32 %v557, %v1513
          %v1518 = vld [vmem:[%s983] sm:$0xf]
          %v1519 = vld [vmem:[%s983 + $0x4] sm:$0xf]
          %p1520 = scmp.gt.s32.totalorder %s323, 2
          %s1521 = scalar_select %p1520, 1, 0
          %v1522 = vstv %s1521
          %vm1523 = vcmp.eq.s32.totalorder %v1522, 1
          %v1524 = vsel %vm1523, %v1518, 0
          %v1525 = vsel %vm1523, %v1519, 0
          %v1526 = vld [vmem:[%s685] sm:$0xf]
          %v1527 = vld [vmem:[%s685 + $0x4] sm:$0xf]
          %v1528 = vld [vmem:[%s685 + $0x8] sm:$0xf]
          %v1529 = vld [vmem:[%s685 + $0xc] sm:$0xf]
          %v1530 = vld [vmem:[%s685 + $0x10] sm:$0xf]
          %v1531 = vld [vmem:[%s685 + $0x14] sm:$0xf]
          %v1532 = vld [vmem:[%s685 + $0x18] sm:$0xf]
          %v1533 = vld [vmem:[%s685 + $0x1c] sm:$0xf]
          %v1534 = vld [vmem:[%s685 + $0x20] sm:$0xf]
          %v1535 = vld [vmem:[%s685 + $0x24] sm:$0xf]
          %v1536 = vld [vmem:[%s685 + $0x28] sm:$0xf]
          %v1537 = vld [vmem:[%s685 + $0x2c] sm:$0xf]
          %v1538 = vld [vmem:[%s685 + $0x30] sm:$0xf]
          %v1539 = vld [vmem:[%s685 + $0x34] sm:$0xf]
          %v1540 = vld [vmem:[%s685 + $0x38] sm:$0xf]
          %v1541 = vld [vmem:[%s685 + $0x3c] sm:$0xf]
          %v1544 = vunpack.c.l.b16 %v1524
          %v1545 = vunpack.c.l.b16 %v1525
          %v1546 = vpack.c.b16 %v1545, %v1544
          %v1564 = vunpack.c.l.b16 %v1526
          %v1565 = vunpack.c.l.b16 %v1527
          %v1566 = vunpack.c.l.b16 %v1528
          %v1567 = vunpack.c.l.b16 %v1529
          %v1568 = vunpack.c.l.b16 %v1530
          %v1569 = vunpack.c.l.b16 %v1531
          %v1570 = vunpack.c.l.b16 %v1532
          %v1571 = vunpack.c.l.b16 %v1533
          %v1572 = vunpack.c.l.b16 %v1534
          %v1573 = vunpack.c.l.b16 %v1535
          %v1574 = vunpack.c.l.b16 %v1536
          %v1575 = vunpack.c.l.b16 %v1537
          %v1576 = vunpack.c.l.b16 %v1538
          %v1577 = vunpack.c.l.b16 %v1539
          %v1578 = vunpack.c.l.b16 %v1540
          %v1579 = vunpack.c.l.b16 %v1541
          %v1580 = vpack.c.b16 %v1565, %v1564
          %v1581 = vpack.c.b16 %v1567, %v1566
          %v1582 = vpack.c.b16 %v1569, %v1568
          %v1583 = vpack.c.b16 %v1571, %v1570
          %v1584 = vpack.c.b16 %v1573, %v1572
          %v1585 = vpack.c.b16 %v1575, %v1574
          %v1586 = vpack.c.b16 %v1577, %v1576
          %v1587 = vpack.c.b16 %v1579, %v1578
          %1596 = vmatprep.subr.bf16.mxu0 0
          %1597 = vmatpush1.bf16.msra.mxu0 %v1587
          %1598 = vmatprep.subr.bf16.mxu0 0
          %1599 = vmatpush1.bf16.msra.mxu0 %v1586
          %1600 = vmatprep.subr.bf16.mxu0 0
          %1601 = vmatpush1.bf16.msra.mxu0 %v1585
          %1602 = vmatprep.subr.bf16.mxu0 0
          %1603 = vmatpush1.bf16.msra.mxu0 %v1584
          %1604 = vmatprep.subr.bf16.mxu0 0
          %1605 = vmatpush1.bf16.msra.mxu0 %v1583
          %1606 = vmatprep.subr.bf16.mxu0 0
          %1607 = vmatpush1.bf16.msra.mxu0 %v1582
          %1608 = vmatprep.subr.bf16.mxu0 0
          %1609 = vmatpush1.bf16.msra.mxu0 %v1581
          %1610 = vmatprep.subr.bf16.mxu0 0
          %1611 = vmatpush1.bf16.msra.mxu0 %v1580
          %1612 = vmatprep.subr.bf16.mxu0 0
          %1613 = vmatpush2.bf16.msra.mxu0 0
          %1614 = vmatprep.subr.bf16.mxu0 0
          %1615 = vmatpush2.bf16.msra.mxu0 0
          %1616 = vmatprep.subr.bf16.mxu0 0
          %1617 = vmatpush2.bf16.msra.mxu0 0
          %1618 = vmatprep.subr.bf16.mxu0 0
          %1619 = vmatpush2.bf16.msra.mxu0 0
          %1620 = vmatprep.subr.bf16.mxu0 0
          %1621 = vmatpush2.bf16.msra.mxu0 0
          %1622 = vmatprep.subr.bf16.mxu0 0
          %1623 = vmatpush2.bf16.msra.mxu0 0
          %1624 = vmatprep.subr.bf16.mxu0 0
          %1625 = vmatpush2.bf16.msra.mxu0 0
          %1626 = vmatprep.subr.bf16.mxu0 0
          %1627 = vmatpush2.bf16.msra.mxu0 0
          %1628 = vmatprep.mubr.bf16.mxu0 0
          %1629 = vmatmul.mubr.bf16.gmra.mxu0 %v1546
          %v1630 = vpop.f32.mrf.mxu0
          %v1631 = vadd.f32 0.0, %v1630
          %v1632 = vpop.f32.mrf.mxu0
          %v1633 = vpop.f32.mrf.mxu0
          %v1634 = vadd.f32 0.0, %v1633
          %v1635 = vpop.f32.mrf.mxu0
          %1636 = vdwg.mxu0
          %v1637 = vadd.f32 %v1516, %v1631
          %v1638 = vadd.f32 %v1517, %v1634
          %v1639 = vld [vmem:[%s389] sm:$0xf]
          %v1640 = vld [vmem:[%s389 + $0x4] sm:$0xf]
          %p1641 = scmp.gt.s32.totalorder %s323, 3
          %s1642 = scalar_select %p1641, 1, 0
          %v1643 = vstv %s1642
          %vm1644 = vcmp.eq.s32.totalorder %v1643, 1
          %v1645 = vsel %vm1644, %v1639, 0
          %v1646 = vsel %vm1644, %v1640, 0
          %v1647 = vld [vmem:[%s805] sm:$0xf]
          %v1648 = vld [vmem:[%s805 + $0x4] sm:$0xf]
          %v1649 = vld [vmem:[%s805 + $0x8] sm:$0xf]
          %v1650 = vld [vmem:[%s805 + $0xc] sm:$0xf]
          %v1651 = vld [vmem:[%s805 + $0x10] sm:$0xf]
          %v1652 = vld [vmem:[%s805 + $0x14] sm:$0xf]
          %v1653 = vld [vmem:[%s805 + $0x18] sm:$0xf]
          %v1654 = vld [vmem:[%s805 + $0x1c] sm:$0xf]
          %v1655 = vld [vmem:[%s805 + $0x20] sm:$0xf]
          %v1656 = vld [vmem:[%s805 + $0x24] sm:$0xf]
          %v1657 = vld [vmem:[%s805 + $0x28] sm:$0xf]
          %v1658 = vld [vmem:[%s805 + $0x2c] sm:$0xf]
          %v1659 = vld [vmem:[%s805 + $0x30] sm:$0xf]
          %v1660 = vld [vmem:[%s805 + $0x34] sm:$0xf]
          %v1661 = vld [vmem:[%s805 + $0x38] sm:$0xf]
          %v1662 = vld [vmem:[%s805 + $0x3c] sm:$0xf]
          %v1665 = vunpack.c.l.b16 %v1645
          %v1666 = vunpack.c.l.b16 %v1646
          %v1667 = vpack.c.b16 %v1666, %v1665
          %v1685 = vunpack.c.l.b16 %v1647
          %v1686 = vunpack.c.l.b16 %v1648
          %v1687 = vunpack.c.l.b16 %v1649
          %v1688 = vunpack.c.l.b16 %v1650
          %v1689 = vunpack.c.l.b16 %v1651
          %v1690 = vunpack.c.l.b16 %v1652
          %v1691 = vunpack.c.l.b16 %v1653
          %v1692 = vunpack.c.l.b16 %v1654
          %v1693 = vunpack.c.l.b16 %v1655
          %v1694 = vunpack.c.l.b16 %v1656
          %v1695 = vunpack.c.l.b16 %v1657
          %v1696 = vunpack.c.l.b16 %v1658
          %v1697 = vunpack.c.l.b16 %v1659
          %v1698 = vunpack.c.l.b16 %v1660
          %v1699 = vunpack.c.l.b16 %v1661
          %v1700 = vunpack.c.l.b16 %v1662
          %v1701 = vpack.c.b16 %v1686, %v1685
          %v1702 = vpack.c.b16 %v1688, %v1687
          %v1703 = vpack.c.b16 %v1690, %v1689
          %v1704 = vpack.c.b16 %v1692, %v1691
          %v1705 = vpack.c.b16 %v1694, %v1693
          %v1706 = vpack.c.b16 %v1696, %v1695
          %v1707 = vpack.c.b16 %v1698, %v1697
          %v1708 = vpack.c.b16 %v1700, %v1699
          %1717 = vmatprep.subr.bf16.mxu0 0
          %1718 = vmatpush1.bf16.msra.mxu0 %v1708
          %1719 = vmatprep.subr.bf16.mxu0 0
          %1720 = vmatpush1.bf16.msra.mxu0 %v1707
          %1721 = vmatprep.subr.bf16.mxu0 0
          %1722 = vmatpush1.bf16.msra.mxu0 %v1706
          %1723 = vmatprep.subr.bf16.mxu0 0
          %1724 = vmatpush1.bf16.msra.mxu0 %v1705
          %1725 = vmatprep.subr.bf16.mxu0 0
          %1726 = vmatpush1.bf16.msra.mxu0 %v1704
          %1727 = vmatprep.subr.bf16.mxu0 0
          %1728 = vmatpush1.bf16.msra.mxu0 %v1703
          %1729 = vmatprep.subr.bf16.mxu0 0
          %1730 = vmatpush1.bf16.msra.mxu0 %v1702
          %1731 = vmatprep.subr.bf16.mxu0 0
          %1732 = vmatpush1.bf16.msra.mxu0 %v1701
          %1733 = vmatprep.subr.bf16.mxu0 0
          %1734 = vmatpush2.bf16.msra.mxu0 0
          %1735 = vmatprep.subr.bf16.mxu0 0
          %1736 = vmatpush2.bf16.msra.mxu0 0
          %1737 = vmatprep.subr.bf16.mxu0 0
          %1738 = vmatpush2.bf16.msra.mxu0 0
          %1739 = vmatprep.subr.bf16.mxu0 0
          %1740 = vmatpush2.bf16.msra.mxu0 0
          %1741 = vmatprep.subr.bf16.mxu0 0
          %1742 = vmatpush2.bf16.msra.mxu0 0
          %1743 = vmatprep.subr.bf16.mxu0 0
          %1744 = vmatpush2.bf16.msra.mxu0 0
          %1745 = vmatprep.subr.bf16.mxu0 0
          %1746 = vmatpush2.bf16.msra.mxu0 0
          %1747 = vmatprep.subr.bf16.mxu0 0
          %1748 = vmatpush2.bf16.msra.mxu0 0
          %1749 = vmatprep.mubr.bf16.mxu0 0
          %1750 = vmatmul.mubr.bf16.gmra.mxu0 %v1667
          %v1751 = vpop.f32.mrf.mxu0
          %v1752 = vadd.f32 0.0, %v1751
          %v1753 = vpop.f32.mrf.mxu0
          %v1754 = vpop.f32.mrf.mxu0
          %v1755 = vadd.f32 0.0, %v1754
          %v1756 = vpop.f32.mrf.mxu0
          %1757 = vdwg.mxu0
          %v1758 = vadd.f32 %v1637, %v1752
          %v1759 = vadd.f32 %v1638, %v1755
          %v1760 = vld [vmem:[#allocation2] sm:$0xff]
          %v1761 = vld [vmem:[#allocation2 + $0x8] sm:$0xff]
          %v1762 = vmul.f32 %v1760, %v277
          %v1763 = vmul.f32 %v1761, %v277
          %v1764 = vadd.f32 %v1762, %v1758
          %v1765 = vadd.f32 %v1763, %v1759
          %v1766 = vsub.f32 %v1764, %v284
          %v1767 = vsub.f32 %v1765, %v284
          %vm1768 = vcmp.gt.f32.partialorder %v1766, 0.0
          %vm1769 = vcmp.gt.f32.partialorder %v1767, 0.0
          %v1770 = vsel %vm1768, 1, 0
          %v1771 = vsel %vm1769, 1, 0
          %v1772 = vcvt.s32.f32 %v1770
          %v1773 = vcvt.s32.f32 %v1771
          %v1774 = vmul.f32 %v1772, %v284
          %v1775 = vmul.f32 %v1773, %v284
          %v1776 = vsub.f32 %v1764, %v1774
          %v1777 = vsub.f32 %v1765, %v1775
          %1778 = vst [vmem:[#allocation2] sm:$0xff] %v1776
          %1779 = vst [vmem:[#allocation2 + $0x8] sm:$0xff] %v1777
          %v1780 = vpack.c.bf16 %v1773, %v1772
          %v1782 = vunpack.c.l.b16 %v1780
          %v1783 = vunpack.c.h.b16 %v1780
          %v1784 = vpack.c.b16 %v1782, %v1782
          %v1785 = vpack.c.b16 %v1783, %v1783
          %s1788 = scalar_lea.vmem %s249, 16 [#allocation9]
          %1789 = vst [vmem:[%s1788] sm:$0xf] %v1784
          %1790 = vst [vmem:[%s1788 + $0x4] sm:$0xf] %v1785
          %1791 = vst [vmem:[%s339] sm:$0xf] %v1784
          %1792 = vst [vmem:[%s339 + $0x4] sm:$0xf] %v1785
          %s1793 = sadd.s32 %s255, 7
          %p1794 = scmp.lt.s32.totalorder %s1793, 0
          %s1795 = ssub.s32 0, %s1793
          %s1796 = scalar_select %p1794, %s1795, %s1793
          %s1797 = sdiv.u32.pop %s1796, 5
          %s1798 = srem.u32.pop %s1796, 5
          %s1799 = ssub.s32 0, %s1798
          %s1800 = scalar_select %p1794, %s1799, %s1798
          %p1801 = scmp.ne.s32.totalorder %s1800, 0
          %p1802 = scmp.lt.s32.totalorder %s1800, 0
          %p1803 = pnand %p1802, %p1801
          %p1804 = pneg %p1803
          %s1805 = sadd.s32 %s1800, 5
          %s1806 = scalar_select %p1804, %s1805, %s1800
          %s1807 = smul.u32 %s1806, 2
          %s1808 = smul.addr %s1807, 4
          %s1809 = scalar_lea.vmem [#allocation3], %s1808
          %v1810 = vld [vmem:[%s1809] sm:$0xf]
          %v1811 = vld [vmem:[%s1809 + $0x4] sm:$0xf]
          %p1812 = scmp.gt.s32.totalorder %s348, 1
          %s1813 = scalar_select %p1812, 1, 0
          %v1814 = vstv %s1813
          %vm1815 = vcmp.eq.s32.totalorder %v1814, 1
          %v1816 = vsel %vm1815, %v1810, 0
          %v1817 = vsel %vm1815, %v1811, 0
          %v1818 = vld [vmem:[#allocation7] sm:$0xf]
          %v1819 = vld [vmem:[#allocation7 + $0x4] sm:$0xf]
          %v1820 = vld [vmem:[#allocation7 + $0x8] sm:$0xf]
          %v1821 = vld [vmem:[#allocation7 + $0xc] sm:$0xf]
          %v1822 = vld [vmem:[#allocation7 + $0x10] sm:$0xf]
          %v1823 = vld [vmem:[#allocation7 + $0x14] sm:$0xf]
          %v1824 = vld [vmem:[#allocation7 + $0x18] sm:$0xf]
          %v1825 = vld [vmem:[#allocation7 + $0x1c] sm:$0xf]
          %v1826 = vld [vmem:[#allocation7 + $0x20] sm:$0xf]
          %v1827 = vld [vmem:[#allocation7 + $0x24] sm:$0xf]
          %v1828 = vld [vmem:[#allocation7 + $0x28] sm:$0xf]
          %v1829 = vld [vmem:[#allocation7 + $0x2c] sm:$0xf]
          %v1830 = vld [vmem:[#allocation7 + $0x30] sm:$0xf]
          %v1831 = vld [vmem:[#allocation7 + $0x34] sm:$0xf]
          %v1832 = vld [vmem:[#allocation7 + $0x38] sm:$0xf]
          %v1833 = vld [vmem:[#allocation7 + $0x3c] sm:$0xf]
          %v1836 = vunpack.c.l.b16 %v1816
          %v1837 = vunpack.c.l.b16 %v1817
          %v1838 = vpack.c.b16 %v1837, %v1836
          %v1856 = vunpack.c.l.b16 %v1818
          %v1857 = vunpack.c.l.b16 %v1819
          %v1858 = vunpack.c.l.b16 %v1820
          %v1859 = vunpack.c.l.b16 %v1821
          %v1860 = vunpack.c.l.b16 %v1822
          %v1861 = vunpack.c.l.b16 %v1823
          %v1862 = vunpack.c.l.b16 %v1824
          %v1863 = vunpack.c.l.b16 %v1825
          %v1864 = vunpack.c.l.b16 %v1826
          %v1865 = vunpack.c.l.b16 %v1827
          %v1866 = vunpack.c.l.b16 %v1828
          %v1867 = vunpack.c.l.b16 %v1829
          %v1868 = vunpack.c.l.b16 %v1830
          %v1869 = vunpack.c.l.b16 %v1831
          %v1870 = vunpack.c.l.b16 %v1832
          %v1871 = vunpack.c.l.b16 %v1833
          %v1872 = vpack.c.b16 %v1857, %v1856
          %v1873 = vpack.c.b16 %v1859, %v1858
          %v1874 = vpack.c.b16 %v1861, %v1860
          %v1875 = vpack.c.b16 %v1863, %v1862
          %v1876 = vpack.c.b16 %v1865, %v1864
          %v1877 = vpack.c.b16 %v1867, %v1866
          %v1878 = vpack.c.b16 %v1869, %v1868
          %v1879 = vpack.c.b16 %v1871, %v1870
          %1888 = vmatprep.subr.bf16.mxu0 0
          %1889 = vmatpush1.bf16.msra.mxu0 %v1879
          %1890 = vmatprep.subr.bf16.mxu0 0
          %1891 = vmatpush1.bf16.msra.mxu0 %v1878
          %1892 = vmatprep.subr.bf16.mxu0 0
          %1893 = vmatpush1.bf16.msra.mxu0 %v1877
          %1894 = vmatprep.subr.bf16.mxu0 0
          %1895 = vmatpush1.bf16.msra.mxu0 %v1876
          %1896 = vmatprep.subr.bf16.mxu0 0
          %1897 = vmatpush1.bf16.msra.mxu0 %v1875
          %1898 = vmatprep.subr.bf16.mxu0 0
          %1899 = vmatpush1.bf16.msra.mxu0 %v1874
          %1900 = vmatprep.subr.bf16.mxu0 0
          %1901 = vmatpush1.bf16.msra.mxu0 %v1873
          %1902 = vmatprep.subr.bf16.mxu0 0
          %1903 = vmatpush1.bf16.msra.mxu0 %v1872
          %1904 = vmatprep.subr.bf16.mxu0 0
          %1905 = vmatpush2.bf16.msra.mxu0 0
          %1906 = vmatprep.subr.bf16.mxu0 0
          %1907 = vmatpush2.bf16.msra.mxu0 0
          %1908 = vmatprep.subr.bf16.mxu0 0
          %1909 = vmatpush2.bf16.msra.mxu0 0
          %1910 = vmatprep.subr.bf16.mxu0 0
          %1911 = vmatpush2.bf16.msra.mxu0 0
          %1912 = vmatprep.subr.bf16.mxu0 0
          %1913 = vmatpush2.bf16.msra.mxu0 0
          %1914 = vmatprep.subr.bf16.mxu0 0
          %1915 = vmatpush2.bf16.msra.mxu0 0
          %1916 = vmatprep.subr.bf16.mxu0 0
          %1917 = vmatpush2.bf16.msra.mxu0 0
          %1918 = vmatprep.subr.bf16.mxu0 0
          %1919 = vmatpush2.bf16.msra.mxu0 0
          %1920 = vmatprep.mubr.bf16.mxu0 0
          %1921 = vmatmul.mubr.bf16.gmra.mxu0 %v1838
          %v1922 = vpop.f32.mrf.mxu0
          %v1923 = vadd.f32 0.0, %v1922
          %v1924 = vpop.f32.mrf.mxu0
          %v1925 = vpop.f32.mrf.mxu0
          %v1926 = vadd.f32 0.0, %v1925
          %v1927 = vpop.f32.mrf.mxu0
          %1928 = vdwg.mxu0
          %v1929 = vadd.f32 %v558, %v1923
          %v1930 = vadd.f32 %v559, %v1926
          %v1931 = vld [vmem:[%s1396] sm:$0xf]
          %v1932 = vld [vmem:[%s1396 + $0x4] sm:$0xf]
          %p1933 = scmp.gt.s32.totalorder %s348, 2
          %s1934 = scalar_select %p1933, 1, 0
          %v1935 = vstv %s1934
          %vm1936 = vcmp.eq.s32.totalorder %v1935, 1
          %v1937 = vsel %vm1936, %v1931, 0
          %v1938 = vsel %vm1936, %v1932, 0
          %v1939 = vld [vmem:[%s685] sm:$0xf]
          %v1940 = vld [vmem:[%s685 + $0x4] sm:$0xf]
          %v1941 = vld [vmem:[%s685 + $0x8] sm:$0xf]
          %v1942 = vld [vmem:[%s685 + $0xc] sm:$0xf]
          %v1943 = vld [vmem:[%s685 + $0x10] sm:$0xf]
          %v1944 = vld [vmem:[%s685 + $0x14] sm:$0xf]
          %v1945 = vld [vmem:[%s685 + $0x18] sm:$0xf]
          %v1946 = vld [vmem:[%s685 + $0x1c] sm:$0xf]
          %v1947 = vld [vmem:[%s685 + $0x20] sm:$0xf]
          %v1948 = vld [vmem:[%s685 + $0x24] sm:$0xf]
          %v1949 = vld [vmem:[%s685 + $0x28] sm:$0xf]
          %v1950 = vld [vmem:[%s685 + $0x2c] sm:$0xf]
          %v1951 = vld [vmem:[%s685 + $0x30] sm:$0xf]
          %v1952 = vld [vmem:[%s685 + $0x34] sm:$0xf]
          %v1953 = vld [vmem:[%s685 + $0x38] sm:$0xf]
          %v1954 = vld [vmem:[%s685 + $0x3c] sm:$0xf]
          %v1957 = vunpack.c.l.b16 %v1937
          %v1958 = vunpack.c.l.b16 %v1938
          %v1959 = vpack.c.b16 %v1958, %v1957
          %v1977 = vunpack.c.l.b16 %v1939
          %v1978 = vunpack.c.l.b16 %v1940
          %v1979 = vunpack.c.l.b16 %v1941
          %v1980 = vunpack.c.l.b16 %v1942
          %v1981 = vunpack.c.l.b16 %v1943
          %v1982 = vunpack.c.l.b16 %v1944
          %v1983 = vunpack.c.l.b16 %v1945
          %v1984 = vunpack.c.l.b16 %v1946
          %v1985 = vunpack.c.l.b16 %v1947
          %v1986 = vunpack.c.l.b16 %v1948
          %v1987 = vunpack.c.l.b16 %v1949
          %v1988 = vunpack.c.l.b16 %v1950
          %v1989 = vunpack.c.l.b16 %v1951
          %v1990 = vunpack.c.l.b16 %v1952
          %v1991 = vunpack.c.l.b16 %v1953
          %v1992 = vunpack.c.l.b16 %v1954
          %v1993 = vpack.c.b16 %v1978, %v1977
          %v1994 = vpack.c.b16 %v1980, %v1979
          %v1995 = vpack.c.b16 %v1982, %v1981
          %v1996 = vpack.c.b16 %v1984, %v1983
          %v1997 = vpack.c.b16 %v1986, %v1985
          %v1998 = vpack.c.b16 %v1988, %v1987
          %v1999 = vpack.c.b16 %v1990, %v1989
          %v2000 = vpack.c.b16 %v1992, %v1991
          %2009 = vmatprep.subr.bf16.mxu0 0
          %2010 = vmatpush1.bf16.msra.mxu0 %v2000
          %2011 = vmatprep.subr.bf16.mxu0 0
          %2012 = vmatpush1.bf16.msra.mxu0 %v1999
          %2013 = vmatprep.subr.bf16.mxu0 0
          %2014 = vmatpush1.bf16.msra.mxu0 %v1998
          %2015 = vmatprep.subr.bf16.mxu0 0
          %2016 = vmatpush1.bf16.msra.mxu0 %v1997
          %2017 = vmatprep.subr.bf16.mxu0 0
          %2018 = vmatpush1.bf16.msra.mxu0 %v1996
          %2019 = vmatprep.subr.bf16.mxu0 0
          %2020 = vmatpush1.bf16.msra.mxu0 %v1995
          %2021 = vmatprep.subr.bf16.mxu0 0
          %2022 = vmatpush1.bf16.msra.mxu0 %v1994
          %2023 = vmatprep.subr.bf16.mxu0 0
          %2024 = vmatpush1.bf16.msra.mxu0 %v1993
          %2025 = vmatprep.subr.bf16.mxu0 0
          %2026 = vmatpush2.bf16.msra.mxu0 0
          %2027 = vmatprep.subr.bf16.mxu0 0
          %2028 = vmatpush2.bf16.msra.mxu0 0
          %2029 = vmatprep.subr.bf16.mxu0 0
          %2030 = vmatpush2.bf16.msra.mxu0 0
          %2031 = vmatprep.subr.bf16.mxu0 0
          %2032 = vmatpush2.bf16.msra.mxu0 0
          %2033 = vmatprep.subr.bf16.mxu0 0
          %2034 = vmatpush2.bf16.msra.mxu0 0
          %2035 = vmatprep.subr.bf16.mxu0 0
          %2036 = vmatpush2.bf16.msra.mxu0 0
          %2037 = vmatprep.subr.bf16.mxu0 0
          %2038 = vmatpush2.bf16.msra.mxu0 0
          %2039 = vmatprep.subr.bf16.mxu0 0
          %2040 = vmatpush2.bf16.msra.mxu0 0
          %2041 = vmatprep.mubr.bf16.mxu0 0
          %2042 = vmatmul.mubr.bf16.gmra.mxu0 %v1959
          %v2043 = vpop.f32.mrf.mxu0
          %v2044 = vadd.f32 0.0, %v2043
          %v2045 = vpop.f32.mrf.mxu0
          %v2046 = vpop.f32.mrf.mxu0
          %v2047 = vadd.f32 0.0, %v2046
          %v2048 = vpop.f32.mrf.mxu0
          %2049 = vdwg.mxu0
          %v2050 = vadd.f32 %v1929, %v2044
          %v2051 = vadd.f32 %v1930, %v2047
          %v2052 = vld [vmem:[%s983] sm:$0xf]
          %v2053 = vld [vmem:[%s983 + $0x4] sm:$0xf]
          %p2054 = scmp.gt.s32.totalorder %s348, 3
          %s2055 = scalar_select %p2054, 1, 0
          %v2056 = vstv %s2055
          %vm2057 = vcmp.eq.s32.totalorder %v2056, 1
          %v2058 = vsel %vm2057, %v2052, 0
          %v2059 = vsel %vm2057, %v2053, 0
          %v2060 = vld [vmem:[%s805] sm:$0xf]
          %v2061 = vld [vmem:[%s805 + $0x4] sm:$0xf]
          %v2062 = vld [vmem:[%s805 + $0x8] sm:$0xf]
          %v2063 = vld [vmem:[%s805 + $0xc] sm:$0xf]
          %v2064 = vld [vmem:[%s805 + $0x10] sm:$0xf]
          %v2065 = vld [vmem:[%s805 + $0x14] sm:$0xf]
          %v2066 = vld [vmem:[%s805 + $0x18] sm:$0xf]
          %v2067 = vld [vmem:[%s805 + $0x1c] sm:$0xf]
          %v2068 = vld [vmem:[%s805 + $0x20] sm:$0xf]
          %v2069 = vld [vmem:[%s805 + $0x24] sm:$0xf]
          %v2070 = vld [vmem:[%s805 + $0x28] sm:$0xf]
          %v2071 = vld [vmem:[%s805 + $0x2c] sm:$0xf]
          %v2072 = vld [vmem:[%s805 + $0x30] sm:$0xf]
          %v2073 = vld [vmem:[%s805 + $0x34] sm:$0xf]
          %v2074 = vld [vmem:[%s805 + $0x38] sm:$0xf]
          %v2075 = vld [vmem:[%s805 + $0x3c] sm:$0xf]
          %v2078 = vunpack.c.l.b16 %v2058
          %v2079 = vunpack.c.l.b16 %v2059
          %v2080 = vpack.c.b16 %v2079, %v2078
          %v2098 = vunpack.c.l.b16 %v2060
          %v2099 = vunpack.c.l.b16 %v2061
          %v2100 = vunpack.c.l.b16 %v2062
          %v2101 = vunpack.c.l.b16 %v2063
          %v2102 = vunpack.c.l.b16 %v2064
          %v2103 = vunpack.c.l.b16 %v2065
          %v2104 = vunpack.c.l.b16 %v2066
          %v2105 = vunpack.c.l.b16 %v2067
          %v2106 = vunpack.c.l.b16 %v2068
          %v2107 = vunpack.c.l.b16 %v2069
          %v2108 = vunpack.c.l.b16 %v2070
          %v2109 = vunpack.c.l.b16 %v2071
          %v2110 = vunpack.c.l.b16 %v2072
          %v2111 = vunpack.c.l.b16 %v2073
          %v2112 = vunpack.c.l.b16 %v2074
          %v2113 = vunpack.c.l.b16 %v2075
          %v2114 = vpack.c.b16 %v2099, %v2098
          %v2115 = vpack.c.b16 %v2101, %v2100
          %v2116 = vpack.c.b16 %v2103, %v2102
          %v2117 = vpack.c.b16 %v2105, %v2104
          %v2118 = vpack.c.b16 %v2107, %v2106
          %v2119 = vpack.c.b16 %v2109, %v2108
          %v2120 = vpack.c.b16 %v2111, %v2110
          %v2121 = vpack.c.b16 %v2113, %v2112
          %2130 = vmatprep.subr.bf16.mxu0 0
          %2131 = vmatpush1.bf16.msra.mxu0 %v2121
          %2132 = vmatprep.subr.bf16.mxu0 0
          %2133 = vmatpush1.bf16.msra.mxu0 %v2120
          %2134 = vmatprep.subr.bf16.mxu0 0
          %2135 = vmatpush1.bf16.msra.mxu0 %v2119
          %2136 = vmatprep.subr.bf16.mxu0 0
          %2137 = vmatpush1.bf16.msra.mxu0 %v2118
          %2138 = vmatprep.subr.bf16.mxu0 0
          %2139 = vmatpush1.bf16.msra.mxu0 %v2117
          %2140 = vmatprep.subr.bf16.mxu0 0
          %2141 = vmatpush1.bf16.msra.mxu0 %v2116
          %2142 = vmatprep.subr.bf16.mxu0 0
          %2143 = vmatpush1.bf16.msra.mxu0 %v2115
          %2144 = vmatprep.subr.bf16.mxu0 0
          %2145 = vmatpush1.bf16.msra.mxu0 %v2114
          %2146 = vmatprep.subr.bf16.mxu0 0
          %2147 = vmatpush2.bf16.msra.mxu0 0
          %2148 = vmatprep.subr.bf16.mxu0 0
          %2149 = vmatpush2.bf16.msra.mxu0 0
          %2150 = vmatprep.subr.bf16.mxu0 0
          %2151 = vmatpush2.bf16.msra.mxu0 0
          %2152 = vmatprep.subr.bf16.mxu0 0
          %2153 = vmatpush2.bf16.msra.mxu0 0
          %2154 = vmatprep.subr.bf16.mxu0 0
          %2155 = vmatpush2.bf16.msra.mxu0 0
          %2156 = vmatprep.subr.bf16.mxu0 0
          %2157 = vmatpush2.bf16.msra.mxu0 0
          %2158 = vmatprep.subr.bf16.mxu0 0
          %2159 = vmatpush2.bf16.msra.mxu0 0
          %2160 = vmatprep.subr.bf16.mxu0 0
          %2161 = vmatpush2.bf16.msra.mxu0 0
          %2162 = vmatprep.mubr.bf16.mxu0 0
          %2163 = vmatmul.mubr.bf16.gmra.mxu0 %v2080
          %v2164 = vpop.f32.mrf.mxu0
          %v2165 = vadd.f32 0.0, %v2164
          %v2166 = vpop.f32.mrf.mxu0
          %v2167 = vpop.f32.mrf.mxu0
          %v2168 = vadd.f32 0.0, %v2167
          %v2169 = vpop.f32.mrf.mxu0
          %2170 = vdwg.mxu0
          %v2171 = vadd.f32 %v2050, %v2165
          %v2172 = vadd.f32 %v2051, %v2168
          %v2173 = vld [vmem:[#allocation2] sm:$0xff]
          %v2174 = vld [vmem:[#allocation2 + $0x8] sm:$0xff]
          %v2175 = vmul.f32 %v2173, %v277
          %v2176 = vmul.f32 %v2174, %v277
          %v2177 = vadd.f32 %v2175, %v2171
          %v2178 = vadd.f32 %v2176, %v2172
          %v2179 = vsub.f32 %v2177, %v284
          %v2180 = vsub.f32 %v2178, %v284
          %vm2181 = vcmp.gt.f32.partialorder %v2179, 0.0
          %vm2182 = vcmp.gt.f32.partialorder %v2180, 0.0
          %v2183 = vsel %vm2181, 1, 0
          %v2184 = vsel %vm2182, 1, 0
          %v2185 = vcvt.s32.f32 %v2183
          %v2186 = vcvt.s32.f32 %v2184
          %v2187 = vmul.f32 %v2185, %v284
          %v2188 = vmul.f32 %v2186, %v284
          %v2189 = vsub.f32 %v2177, %v2187
          %v2190 = vsub.f32 %v2178, %v2188
          %2191 = vst [vmem:[#allocation2] sm:$0xff] %v2189
          %2192 = vst [vmem:[#allocation2 + $0x8] sm:$0xff] %v2190
          %v2193 = vpack.c.bf16 %v2186, %v2185
          %v2195 = vunpack.c.l.b16 %v2193
          %v2196 = vunpack.c.h.b16 %v2193
          %v2197 = vpack.c.b16 %v2195, %v2195
          %v2198 = vpack.c.b16 %v2196, %v2196
          %s2201 = scalar_lea.vmem %s249, 24 [#allocation9]
          %2202 = vst [vmem:[%s2201] sm:$0xf] %v2197
          %2203 = vst [vmem:[%s2201 + $0x4] sm:$0xf] %v2198
          %2204 = vst [vmem:[%s364] sm:$0xf] %v2197
          %2205 = vst [vmem:[%s364 + $0x4] sm:$0xf] %v2198
        $region52: #{tpu_custom_call.1} parent=35 // pred_fallthru
          _
        %p2206 = scmp.gt.s32.totalorder %s255, 4
        // Predicated region
        $region53: #{tpu_custom_call.1} parent=35 // pred_check
          %p2207 = pneg %p2206
        $region54: #{tpu_custom_call.1} parent=35 // pred_check_branch
          %2209 = sbr.rel (%p2207) target = $region56
        $region55: #{tpu_custom_call.1} parent=35 // pred_region
          %v2210 = vld [vmem:[%s221] sm:$0xff]
          %v2211 = vld [vmem:[%s221 + $0x8] sm:$0xff]
          %v2212 = vld [vmem:[%s221 + $0x10] sm:$0xff]
          %v2213 = vld [vmem:[%s221 + $0x18] sm:$0xff]
          %v2214 = vld [vmem:[%s221 + $0x20] sm:$0xff]
          %v2215 = vld [vmem:[%s221 + $0x28] sm:$0xff]
          %v2216 = vld [vmem:[%s221 + $0x30] sm:$0xff]
          %v2217 = vld [vmem:[%s221 + $0x38] sm:$0xff]
          %s2218 = sadd.s32 %s255, 1
          %p2219 = scmp.lt.s32.totalorder %s2218, 0
          %s2220 = ssub.s32 0, %s2218
          %s2221 = scalar_select %p2219, %s2220, %s2218
          %s2222 = sdiv.u32.pop %s2221, 5
          %s2223 = srem.u32.pop %s2221, 5
          %s2224 = ssub.s32 0, %s2223
          %s2225 = scalar_select %p2219, %s2224, %s2223
          %p2226 = scmp.ne.s32.totalorder %s2225, 0
          %p2227 = scmp.lt.s32.totalorder %s2225, 0
          %p2228 = pnand %p2227, %p2226
          %p2229 = pneg %p2228
          %s2230 = sadd.s32 %s2225, 5
          %s2231 = scalar_select %p2229, %s2230, %s2225
          %s2232 = smul.u32 %s2231, 2
          %s2233 = smul.addr %s2232, 4
          %s2234 = scalar_lea.vmem [#allocation3], %s2233
          %v2235 = vld [vmem:[%s2234] sm:$0xf]
          %v2236 = vld [vmem:[%s2234 + $0x4] sm:$0xf]
          %s2237 = sadd.s32 %s255, 2
          %p2238 = scmp.lt.s32.totalorder %s2237, 0
          %s2239 = ssub.s32 0, %s2237
          %s2240 = scalar_select %p2238, %s2239, %s2237
          %s2241 = sdiv.u32.pop %s2240, 5
          %s2242 = srem.u32.pop %s2240, 5
          %s2243 = ssub.s32 0, %s2242
          %s2244 = scalar_select %p2238, %s2243, %s2242
          %p2245 = scmp.ne.s32.totalorder %s2244, 0
          %p2246 = scmp.lt.s32.totalorder %s2244, 0
          %p2247 = pnand %p2246, %p2245
          %p2248 = pneg %p2247
          %s2249 = sadd.s32 %s2244, 5
          %s2250 = scalar_select %p2248, %s2249, %s2244
          %s2251 = smul.u32 %s2250, 2
          %s2252 = smul.addr %s2251, 4
          %s2253 = scalar_lea.vmem [#allocation3], %s2252
          %v2254 = vld [vmem:[%s2253] sm:$0xf]
          %v2255 = vld [vmem:[%s2253 + $0x4] sm:$0xf]
          %s2256 = sadd.s32 %s255, 3
          %p2257 = scmp.lt.s32.totalorder %s2256, 0
          %s2258 = ssub.s32 0, %s2256
          %s2259 = scalar_select %p2257, %s2258, %s2256
          %s2260 = sdiv.u32.pop %s2259, 5
          %s2261 = srem.u32.pop %s2259, 5
          %s2262 = ssub.s32 0, %s2261
          %s2263 = scalar_select %p2257, %s2262, %s2261
          %p2264 = scmp.ne.s32.totalorder %s2263, 0
          %p2265 = scmp.lt.s32.totalorder %s2263, 0
          %p2266 = pnand %p2265, %p2264
          %p2267 = pneg %p2266
          %s2268 = sadd.s32 %s2263, 5
          %s2269 = scalar_select %p2267, %s2268, %s2263
          %s2270 = smul.u32 %s2269, 2
          %s2271 = smul.addr %s2270, 4
          %s2272 = scalar_lea.vmem [#allocation3], %s2271
          %v2273 = vld [vmem:[%s2272] sm:$0xf]
          %v2274 = vld [vmem:[%s2272 + $0x4] sm:$0xf]
          %s2275 = sadd.s32 %s255, 4
          %p2276 = scmp.lt.s32.totalorder %s2275, 0
          %s2277 = ssub.s32 0, %s2275
          %s2278 = scalar_select %p2276, %s2277, %s2275
          %s2279 = sdiv.u32.pop %s2278, 5
          %s2280 = srem.u32.pop %s2278, 5
          %s2281 = ssub.s32 0, %s2280
          %s2282 = scalar_select %p2276, %s2281, %s2280
          %p2283 = scmp.ne.s32.totalorder %s2282, 0
          %p2284 = scmp.lt.s32.totalorder %s2282, 0
          %p2285 = pnand %p2284, %p2283
          %p2286 = pneg %p2285
          %s2287 = sadd.s32 %s2282, 5
          %s2288 = scalar_select %p2286, %s2287, %s2282
          %s2289 = smul.u32 %s2288, 2
          %s2290 = smul.addr %s2289, 4
          %s2291 = scalar_lea.vmem [#allocation3], %s2290
          %v2292 = vld [vmem:[%s2291] sm:$0xf]
          %v2293 = vld [vmem:[%s2291 + $0x4] sm:$0xf]
          %v2296 = vunpack.c.l.b16 %v2235
          %v2297 = vunpack.c.l.b16 %v2236
          %v2298 = vpack.c.b16 %v2297, %v2296
          %v2302 = vunpack.c.l.b16 %v2254
          %v2303 = vunpack.c.l.b16 %v2255
          %v2304 = vpack.c.b16 %v2303, %v2302
          %v2308 = vunpack.c.l.b16 %v2273
          %v2309 = vunpack.c.l.b16 %v2274
          %v2310 = vpack.c.b16 %v2309, %v2308
          %v2314 = vunpack.c.l.b16 %v2292
          %v2315 = vunpack.c.l.b16 %v2293
          %v2316 = vpack.c.b16 %v2315, %v2314
          %s2318 = scalar_lea.vmem [#allocation7], 192
          %v2319 = vld [vmem:[%s2318] sm:$0xf]
          %v2320 = vld [vmem:[%s2318 + $0x4] sm:$0xf]
          %v2321 = vld [vmem:[%s2318 + $0x8] sm:$0xf]
          %v2322 = vld [vmem:[%s2318 + $0xc] sm:$0xf]
          %v2323 = vld [vmem:[%s2318 + $0x10] sm:$0xf]
          %v2324 = vld [vmem:[%s2318 + $0x14] sm:$0xf]
          %v2325 = vld [vmem:[%s2318 + $0x18] sm:$0xf]
          %v2326 = vld [vmem:[%s2318 + $0x1c] sm:$0xf]
          %v2327 = vld [vmem:[%s2318 + $0x20] sm:$0xf]
          %v2328 = vld [vmem:[%s2318 + $0x24] sm:$0xf]
          %v2329 = vld [vmem:[%s2318 + $0x28] sm:$0xf]
          %v2330 = vld [vmem:[%s2318 + $0x2c] sm:$0xf]
          %v2331 = vld [vmem:[%s2318 + $0x30] sm:$0xf]
          %v2332 = vld [vmem:[%s2318 + $0x34] sm:$0xf]
          %v2333 = vld [vmem:[%s2318 + $0x38] sm:$0xf]
          %v2334 = vld [vmem:[%s2318 + $0x3c] sm:$0xf]
          %v2351 = vunpack.c.l.b16 %v2319
          %v2352 = vunpack.c.l.b16 %v2320
          %v2353 = vunpack.c.l.b16 %v2321
          %v2354 = vunpack.c.l.b16 %v2322
          %v2355 = vunpack.c.l.b16 %v2323
          %v2356 = vunpack.c.l.b16 %v2324
          %v2357 = vunpack.c.l.b16 %v2325
          %v2358 = vunpack.c.l.b16 %v2326
          %v2359 = vunpack.c.l.b16 %v2327
          %v2360 = vunpack.c.l.b16 %v2328
          %v2361 = vunpack.c.l.b16 %v2329
          %v2362 = vunpack.c.l.b16 %v2330
          %v2363 = vunpack.c.l.b16 %v2331
          %v2364 = vunpack.c.l.b16 %v2332
          %v2365 = vunpack.c.l.b16 %v2333
          %v2366 = vunpack.c.l.b16 %v2334
          %v2367 = vpack.c.b16 %v2352, %v2351
          %v2368 = vpack.c.b16 %v2354, %v2353
          %v2369 = vpack.c.b16 %v2356, %v2355
          %v2370 = vpack.c.b16 %v2358, %v2357
          %v2371 = vpack.c.b16 %v2360, %v2359
          %v2372 = vpack.c.b16 %v2362, %v2361
          %v2373 = vpack.c.b16 %v2364, %v2363
          %v2374 = vpack.c.b16 %v2366, %v2365
          %2383 = vmatprep.subr.bf16.mxu0 0
          %2384 = vmatpush1.bf16.msra.mxu0 %v2374
          %2385 = vmatprep.subr.bf16.mxu0 0
          %2386 = vmatpush1.bf16.msra.mxu0 %v2373
          %2387 = vmatprep.subr.bf16.mxu0 0
          %2388 = vmatpush1.bf16.msra.mxu0 %v2372
          %2389 = vmatprep.subr.bf16.mxu0 0
          %2390 = vmatpush1.bf16.msra.mxu0 %v2371
          %2391 = vmatprep.subr.bf16.mxu0 0
          %2392 = vmatpush1.bf16.msra.mxu0 %v2370
          %2393 = vmatprep.subr.bf16.mxu0 0
          %2394 = vmatpush1.bf16.msra.mxu0 %v2369
          %2395 = vmatprep.subr.bf16.mxu0 0
          %2396 = vmatpush1.bf16.msra.mxu0 %v2368
          %2397 = vmatprep.subr.bf16.mxu0 0
          %2398 = vmatpush1.bf16.msra.mxu0 %v2367
          %2399 = vmatprep.subr.bf16.mxu0 0
          %2400 = vmatpush2.bf16.msra.mxu0 0
          %2401 = vmatprep.subr.bf16.mxu0 0
          %2402 = vmatpush2.bf16.msra.mxu0 0
          %2403 = vmatprep.subr.bf16.mxu0 0
          %2404 = vmatpush2.bf16.msra.mxu0 0
          %2405 = vmatprep.subr.bf16.mxu0 0
          %2406 = vmatpush2.bf16.msra.mxu0 0
          %2407 = vmatprep.subr.bf16.mxu0 0
          %2408 = vmatpush2.bf16.msra.mxu0 0
          %2409 = vmatprep.subr.bf16.mxu0 0
          %2410 = vmatpush2.bf16.msra.mxu0 0
          %2411 = vmatprep.subr.bf16.mxu0 0
          %2412 = vmatpush2.bf16.msra.mxu0 0
          %2413 = vmatprep.subr.bf16.mxu0 0
          %2414 = vmatpush2.bf16.msra.mxu0 0
          %2415 = vmatprep.mubr.bf16.mxu0 0
          %2416 = vmatmul.mubr.bf16.gmra.mxu0 %v2298
          %v2417 = vpop.f32.mrf.mxu0
          %v2418 = vadd.f32 0.0, %v2417
          %v2419 = vpop.f32.mrf.mxu0
          %v2420 = vpop.f32.mrf.mxu0
          %v2421 = vadd.f32 0.0, %v2420
          %v2422 = vpop.f32.mrf.mxu0
          %2423 = vmatprep.mubr.bf16.mxu0 0
          %2424 = vmatmul.mubr.bf16.gmra.mxu0 %v2304
          %v2425 = vpop.f32.mrf.mxu0
          %v2426 = vadd.f32 0.0, %v2425
          %v2427 = vpop.f32.mrf.mxu0
          %v2428 = vpop.f32.mrf.mxu0
          %v2429 = vadd.f32 0.0, %v2428
          %v2430 = vpop.f32.mrf.mxu0
          %2431 = vmatprep.mubr.bf16.mxu0 0
          %2432 = vmatmul.mubr.bf16.gmra.mxu0 %v2310
          %v2433 = vpop.f32.mrf.mxu0
          %v2434 = vadd.f32 0.0, %v2433
          %v2435 = vpop.f32.mrf.mxu0
          %v2436 = vpop.f32.mrf.mxu0
          %v2437 = vadd.f32 0.0, %v2436
          %v2438 = vpop.f32.mrf.mxu0
          %2439 = vmatprep.mubr.bf16.mxu0 0
          %2440 = vmatmul.mubr.bf16.gmra.mxu0 %v2316
          %v2441 = vpop.f32.mrf.mxu0
          %v2442 = vadd.f32 0.0, %v2441
          %v2443 = vpop.f32.mrf.mxu0
          %v2444 = vpop.f32.mrf.mxu0
          %v2445 = vadd.f32 0.0, %v2444
          %v2446 = vpop.f32.mrf.mxu0
          %2447 = vdwg.mxu0
          %v2448 = vadd.f32 %v2210, %v2418
          %v2449 = vadd.f32 %v2211, %v2421
          %v2450 = vadd.f32 %v2212, %v2426
          %v2451 = vadd.f32 %v2213, %v2429
          %v2452 = vadd.f32 %v2214, %v2434
          %v2453 = vadd.f32 %v2215, %v2437
          %v2454 = vadd.f32 %v2216, %v2442
          %v2455 = vadd.f32 %v2217, %v2445
          %v2456 = vld [vmem:[#allocation7] sm:$0xf]
          %v2457 = vld [vmem:[#allocation7 + $0x4] sm:$0xf]
          %v2458 = vld [vmem:[#allocation7 + $0x8] sm:$0xf]
          %v2459 = vld [vmem:[#allocation7 + $0xc] sm:$0xf]
          %v2460 = vld [vmem:[#allocation7 + $0x10] sm:$0xf]
          %v2461 = vld [vmem:[#allocation7 + $0x14] sm:$0xf]
          %v2462 = vld [vmem:[#allocation7 + $0x18] sm:$0xf]
          %v2463 = vld [vmem:[#allocation7 + $0x1c] sm:$0xf]
          %v2464 = vld [vmem:[#allocation7 + $0x20] sm:$0xf]
          %v2465 = vld [vmem:[#allocation7 + $0x24] sm:$0xf]
          %v2466 = vld [vmem:[#allocation7 + $0x28] sm:$0xf]
          %v2467 = vld [vmem:[#allocation7 + $0x2c] sm:$0xf]
          %v2468 = vld [vmem:[#allocation7 + $0x30] sm:$0xf]
          %v2469 = vld [vmem:[#allocation7 + $0x34] sm:$0xf]
          %v2470 = vld [vmem:[#allocation7 + $0x38] sm:$0xf]
          %v2471 = vld [vmem:[#allocation7 + $0x3c] sm:$0xf]
          %v2488 = vunpack.c.l.b16 %v2456
          %v2489 = vunpack.c.l.b16 %v2457
          %v2490 = vunpack.c.l.b16 %v2458
          %v2491 = vunpack.c.l.b16 %v2459
          %v2492 = vunpack.c.l.b16 %v2460
          %v2493 = vunpack.c.l.b16 %v2461
          %v2494 = vunpack.c.l.b16 %v2462
          %v2495 = vunpack.c.l.b16 %v2463
          %v2496 = vunpack.c.l.b16 %v2464
          %v2497 = vunpack.c.l.b16 %v2465
          %v2498 = vunpack.c.l.b16 %v2466
          %v2499 = vunpack.c.l.b16 %v2467
          %v2500 = vunpack.c.l.b16 %v2468
          %v2501 = vunpack.c.l.b16 %v2469
          %v2502 = vunpack.c.l.b16 %v2470
          %v2503 = vunpack.c.l.b16 %v2471
          %v2504 = vpack.c.b16 %v2489, %v2488
          %v2505 = vpack.c.b16 %v2491, %v2490
          %v2506 = vpack.c.b16 %v2493, %v2492
          %v2507 = vpack.c.b16 %v2495, %v2494
          %v2508 = vpack.c.b16 %v2497, %v2496
          %v2509 = vpack.c.b16 %v2499, %v2498
          %v2510 = vpack.c.b16 %v2501, %v2500
          %v2511 = vpack.c.b16 %v2503, %v2502
          %2520 = vmatprep.subr.bf16.mxu0 0
          %2521 = vmatpush1.bf16.msra.mxu0 %v2511
          %2522 = vmatprep.subr.bf16.mxu0 0
          %2523 = vmatpush1.bf16.msra.mxu0 %v2510
          %2524 = vmatprep.subr.bf16.mxu0 0
          %2525 = vmatpush1.bf16.msra.mxu0 %v2509
          %2526 = vmatprep.subr.bf16.mxu0 0
          %2527 = vmatpush1.bf16.msra.mxu0 %v2508
          %2528 = vmatprep.subr.bf16.mxu0 0
          %2529 = vmatpush1.bf16.msra.mxu0 %v2507
          %2530 = vmatprep.subr.bf16.mxu0 0
          %2531 = vmatpush1.bf16.msra.mxu0 %v2506
          %2532 = vmatprep.subr.bf16.mxu0 0
          %2533 = vmatpush1.bf16.msra.mxu0 %v2505
          %2534 = vmatprep.subr.bf16.mxu0 0
          %2535 = vmatpush1.bf16.msra.mxu0 %v2504
          %2536 = vmatprep.subr.bf16.mxu0 0
          %2537 = vmatpush2.bf16.msra.mxu0 0
          %2538 = vmatprep.subr.bf16.mxu0 0
          %2539 = vmatpush2.bf16.msra.mxu0 0
          %2540 = vmatprep.subr.bf16.mxu0 0
          %2541 = vmatpush2.bf16.msra.mxu0 0
          %2542 = vmatprep.subr.bf16.mxu0 0
          %2543 = vmatpush2.bf16.msra.mxu0 0
          %2544 = vmatprep.subr.bf16.mxu0 0
          %2545 = vmatpush2.bf16.msra.mxu0 0
          %2546 = vmatprep.subr.bf16.mxu0 0
          %2547 = vmatpush2.bf16.msra.mxu0 0
          %2548 = vmatprep.subr.bf16.mxu0 0
          %2549 = vmatpush2.bf16.msra.mxu0 0
          %2550 = vmatprep.subr.bf16.mxu0 0
          %2551 = vmatpush2.bf16.msra.mxu0 0
          %2552 = vmatprep.mubr.bf16.mxu0 0
          %2553 = vmatmul.mubr.bf16.gmra.mxu0 %v2316
          %v2554 = vpop.f32.mrf.mxu0
          %v2555 = vadd.f32 0.0, %v2554
          %v2556 = vpop.f32.mrf.mxu0
          %v2557 = vpop.f32.mrf.mxu0
          %v2558 = vadd.f32 0.0, %v2557
          %v2559 = vpop.f32.mrf.mxu0
          %2560 = vdwg.mxu0
          %v2561 = vadd.f32 %v2448, %v2555
          %v2562 = vadd.f32 %v2449, %v2558
          %s2563 = scalar_lea.vmem [#allocation7], 64
          %v2564 = vld [vmem:[%s2563] sm:$0xf]
          %v2565 = vld [vmem:[%s2563 + $0x4] sm:$0xf]
          %v2566 = vld [vmem:[%s2563 + $0x8] sm:$0xf]
          %v2567 = vld [vmem:[%s2563 + $0xc] sm:$0xf]
          %v2568 = vld [vmem:[%s2563 + $0x10] sm:$0xf]
          %v2569 = vld [vmem:[%s2563 + $0x14] sm:$0xf]
          %v2570 = vld [vmem:[%s2563 + $0x18] sm:$0xf]
          %v2571 = vld [vmem:[%s2563 + $0x1c] sm:$0xf]
          %v2572 = vld [vmem:[%s2563 + $0x20] sm:$0xf]
          %v2573 = vld [vmem:[%s2563 + $0x24] sm:$0xf]
          %v2574 = vld [vmem:[%s2563 + $0x28] sm:$0xf]
          %v2575 = vld [vmem:[%s2563 + $0x2c] sm:$0xf]
          %v2576 = vld [vmem:[%s2563 + $0x30] sm:$0xf]
          %v2577 = vld [vmem:[%s2563 + $0x34] sm:$0xf]
          %v2578 = vld [vmem:[%s2563 + $0x38] sm:$0xf]
          %v2579 = vld [vmem:[%s2563 + $0x3c] sm:$0xf]
          %v2596 = vunpack.c.l.b16 %v2564
          %v2597 = vunpack.c.l.b16 %v2565
          %v2598 = vunpack.c.l.b16 %v2566
          %v2599 = vunpack.c.l.b16 %v2567
          %v2600 = vunpack.c.l.b16 %v2568
          %v2601 = vunpack.c.l.b16 %v2569
          %v2602 = vunpack.c.l.b16 %v2570
          %v2603 = vunpack.c.l.b16 %v2571
          %v2604 = vunpack.c.l.b16 %v2572
          %v2605 = vunpack.c.l.b16 %v2573
          %v2606 = vunpack.c.l.b16 %v2574
          %v2607 = vunpack.c.l.b16 %v2575
          %v2608 = vunpack.c.l.b16 %v2576
          %v2609 = vunpack.c.l.b16 %v2577
          %v2610 = vunpack.c.l.b16 %v2578
          %v2611 = vunpack.c.l.b16 %v2579
          %v2612 = vpack.c.b16 %v2597, %v2596
          %v2613 = vpack.c.b16 %v2599, %v2598
          %v2614 = vpack.c.b16 %v2601, %v2600
          %v2615 = vpack.c.b16 %v2603, %v2602
          %v2616 = vpack.c.b16 %v2605, %v2604
          %v2617 = vpack.c.b16 %v2607, %v2606
          %v2618 = vpack.c.b16 %v2609, %v2608
          %v2619 = vpack.c.b16 %v2611, %v2610
          %2628 = vmatprep.subr.bf16.mxu0 0
          %2629 = vmatpush1.bf16.msra.mxu0 %v2619
          %2630 = vmatprep.subr.bf16.mxu0 0
          %2631 = vmatpush1.bf16.msra.mxu0 %v2618
          %2632 = vmatprep.subr.bf16.mxu0 0
          %2633 = vmatpush1.bf16.msra.mxu0 %v2617
          %2634 = vmatprep.subr.bf16.mxu0 0
          %2635 = vmatpush1.bf16.msra.mxu0 %v2616
          %2636 = vmatprep.subr.bf16.mxu0 0
          %2637 = vmatpush1.bf16.msra.mxu0 %v2615
          %2638 = vmatprep.subr.bf16.mxu0 0
          %2639 = vmatpush1.bf16.msra.mxu0 %v2614
          %2640 = vmatprep.subr.bf16.mxu0 0
          %2641 = vmatpush1.bf16.msra.mxu0 %v2613
          %2642 = vmatprep.subr.bf16.mxu0 0
          %2643 = vmatpush1.bf16.msra.mxu0 %v2612
          %2644 = vmatprep.subr.bf16.mxu0 0
          %2645 = vmatpush2.bf16.msra.mxu0 0
          %2646 = vmatprep.subr.bf16.mxu0 0
          %2647 = vmatpush2.bf16.msra.mxu0 0
          %2648 = vmatprep.subr.bf16.mxu0 0
          %2649 = vmatpush2.bf16.msra.mxu0 0
          %2650 = vmatprep.subr.bf16.mxu0 0
          %2651 = vmatpush2.bf16.msra.mxu0 0
          %2652 = vmatprep.subr.bf16.mxu0 0
          %2653 = vmatpush2.bf16.msra.mxu0 0
          %2654 = vmatprep.subr.bf16.mxu0 0
          %2655 = vmatpush2.bf16.msra.mxu0 0
          %2656 = vmatprep.subr.bf16.mxu0 0
          %2657 = vmatpush2.bf16.msra.mxu0 0
          %2658 = vmatprep.subr.bf16.mxu0 0
          %2659 = vmatpush2.bf16.msra.mxu0 0
          %2660 = vmatprep.mubr.bf16.mxu0 0
          %2661 = vmatmul.mubr.bf16.gmra.mxu0 %v2310
          %v2662 = vpop.f32.mrf.mxu0
          %v2663 = vadd.f32 0.0, %v2662
          %v2664 = vpop.f32.mrf.mxu0
          %v2665 = vpop.f32.mrf.mxu0
          %v2666 = vadd.f32 0.0, %v2665
          %v2667 = vpop.f32.mrf.mxu0
          %2668 = vdwg.mxu0
          %v2669 = vadd.f32 %v2561, %v2663
          %v2670 = vadd.f32 %v2562, %v2666
          %s2671 = scalar_lea.vmem [#allocation7], 128
          %v2672 = vld [vmem:[%s2671] sm:$0xf]
          %v2673 = vld [vmem:[%s2671 + $0x4] sm:$0xf]
          %v2674 = vld [vmem:[%s2671 + $0x8] sm:$0xf]
          %v2675 = vld [vmem:[%s2671 + $0xc] sm:$0xf]
          %v2676 = vld [vmem:[%s2671 + $0x10] sm:$0xf]
          %v2677 = vld [vmem:[%s2671 + $0x14] sm:$0xf]
          %v2678 = vld [vmem:[%s2671 + $0x18] sm:$0xf]
          %v2679 = vld [vmem:[%s2671 + $0x1c] sm:$0xf]
          %v2680 = vld [vmem:[%s2671 + $0x20] sm:$0xf]
          %v2681 = vld [vmem:[%s2671 + $0x24] sm:$0xf]
          %v2682 = vld [vmem:[%s2671 + $0x28] sm:$0xf]
          %v2683 = vld [vmem:[%s2671 + $0x2c] sm:$0xf]
          %v2684 = vld [vmem:[%s2671 + $0x30] sm:$0xf]
          %v2685 = vld [vmem:[%s2671 + $0x34] sm:$0xf]
          %v2686 = vld [vmem:[%s2671 + $0x38] sm:$0xf]
          %v2687 = vld [vmem:[%s2671 + $0x3c] sm:$0xf]
          %v2704 = vunpack.c.l.b16 %v2672
          %v2705 = vunpack.c.l.b16 %v2673
          %v2706 = vunpack.c.l.b16 %v2674
          %v2707 = vunpack.c.l.b16 %v2675
          %v2708 = vunpack.c.l.b16 %v2676
          %v2709 = vunpack.c.l.b16 %v2677
          %v2710 = vunpack.c.l.b16 %v2678
          %v2711 = vunpack.c.l.b16 %v2679
          %v2712 = vunpack.c.l.b16 %v2680
          %v2713 = vunpack.c.l.b16 %v2681
          %v2714 = vunpack.c.l.b16 %v2682
          %v2715 = vunpack.c.l.b16 %v2683
          %v2716 = vunpack.c.l.b16 %v2684
          %v2717 = vunpack.c.l.b16 %v2685
          %v2718 = vunpack.c.l.b16 %v2686
          %v2719 = vunpack.c.l.b16 %v2687
          %v2720 = vpack.c.b16 %v2705, %v2704
          %v2721 = vpack.c.b16 %v2707, %v2706
          %v2722 = vpack.c.b16 %v2709, %v2708
          %v2723 = vpack.c.b16 %v2711, %v2710
          %v2724 = vpack.c.b16 %v2713, %v2712
          %v2725 = vpack.c.b16 %v2715, %v2714
          %v2726 = vpack.c.b16 %v2717, %v2716
          %v2727 = vpack.c.b16 %v2719, %v2718
          %2736 = vmatprep.subr.bf16.mxu0 0
          %2737 = vmatpush1.bf16.msra.mxu0 %v2727
          %2738 = vmatprep.subr.bf16.mxu0 0
          %2739 = vmatpush1.bf16.msra.mxu0 %v2726
          %2740 = vmatprep.subr.bf16.mxu0 0
          %2741 = vmatpush1.bf16.msra.mxu0 %v2725
          %2742 = vmatprep.subr.bf16.mxu0 0
          %2743 = vmatpush1.bf16.msra.mxu0 %v2724
          %2744 = vmatprep.subr.bf16.mxu0 0
          %2745 = vmatpush1.bf16.msra.mxu0 %v2723
          %2746 = vmatprep.subr.bf16.mxu0 0
          %2747 = vmatpush1.bf16.msra.mxu0 %v2722
          %2748 = vmatprep.subr.bf16.mxu0 0
          %2749 = vmatpush1.bf16.msra.mxu0 %v2721
          %2750 = vmatprep.subr.bf16.mxu0 0
          %2751 = vmatpush1.bf16.msra.mxu0 %v2720
          %2752 = vmatprep.subr.bf16.mxu0 0
          %2753 = vmatpush2.bf16.msra.mxu0 0
          %2754 = vmatprep.subr.bf16.mxu0 0
          %2755 = vmatpush2.bf16.msra.mxu0 0
          %2756 = vmatprep.subr.bf16.mxu0 0
          %2757 = vmatpush2.bf16.msra.mxu0 0
          %2758 = vmatprep.subr.bf16.mxu0 0
          %2759 = vmatpush2.bf16.msra.mxu0 0
          %2760 = vmatprep.subr.bf16.mxu0 0
          %2761 = vmatpush2.bf16.msra.mxu0 0
          %2762 = vmatprep.subr.bf16.mxu0 0
          %2763 = vmatpush2.bf16.msra.mxu0 0
          %2764 = vmatprep.subr.bf16.mxu0 0
          %2765 = vmatpush2.bf16.msra.mxu0 0
          %2766 = vmatprep.subr.bf16.mxu0 0
          %2767 = vmatpush2.bf16.msra.mxu0 0
          %2768 = vmatprep.mubr.bf16.mxu0 0
          %2769 = vmatmul.mubr.bf16.gmra.mxu0 %v2304
          %v2770 = vpop.f32.mrf.mxu0
          %v2771 = vadd.f32 0.0, %v2770
          %v2772 = vpop.f32.mrf.mxu0
          %v2773 = vpop.f32.mrf.mxu0
          %v2774 = vadd.f32 0.0, %v2773
          %v2775 = vpop.f32.mrf.mxu0
          %2776 = vdwg.mxu0
          %v2777 = vadd.f32 %v2669, %v2771
          %v2778 = vadd.f32 %v2670, %v2774
          %v2779 = vld [vmem:[#allocation2] sm:$0xff]
          %v2780 = vld [vmem:[#allocation2 + $0x8] sm:$0xff]
          %v2781 = vmul.f32 %v2779, %v277
          %v2782 = vmul.f32 %v2780, %v277
          %v2783 = vadd.f32 %v2781, %v2777
          %v2784 = vadd.f32 %v2782, %v2778
          %v2785 = vsub.f32 %v2783, %v284
          %v2786 = vsub.f32 %v2784, %v284
          %vm2787 = vcmp.gt.f32.partialorder %v2785, 0.0
          %vm2788 = vcmp.gt.f32.partialorder %v2786, 0.0
          %v2789 = vsel %vm2787, 1, 0
          %v2790 = vsel %vm2788, 1, 0
          %v2791 = vcvt.s32.f32 %v2789
          %v2792 = vcvt.s32.f32 %v2790
          %v2793 = vmul.f32 %v2791, %v284
          %v2794 = vmul.f32 %v2792, %v284
          %v2795 = vsub.f32 %v2783, %v2793
          %v2796 = vsub.f32 %v2784, %v2794
          %2797 = vst [vmem:[#allocation2] sm:$0xff] %v2795
          %2798 = vst [vmem:[#allocation2 + $0x8] sm:$0xff] %v2796
          %v2799 = vpack.c.bf16 %v2792, %v2791
          %v2801 = vunpack.c.l.b16 %v2799
          %v2802 = vunpack.c.h.b16 %v2799
          %v2803 = vpack.c.b16 %v2801, %v2801
          %v2804 = vpack.c.b16 %v2802, %v2802
          %2807 = vst [vmem:[%s249] sm:$0xf] %v2803
          %2808 = vst [vmem:[%s249 + $0x4] sm:$0xf] %v2804
          %p2809 = scmp.lt.s32.totalorder %s255, 0
          %s2810 = ssub.s32 0, %s255
          %s2811 = scalar_select %p2809, %s2810, %s255
          %s2812 = sdiv.u32.pop %s2811, 5
          %s2813 = srem.u32.pop %s2811, 5
          %s2814 = ssub.s32 0, %s2813
          %s2815 = scalar_select %p2809, %s2814, %s2813
          %p2816 = scmp.ne.s32.totalorder %s2815, 0
          %p2817 = scmp.lt.s32.totalorder %s2815, 0
          %p2818 = pnand %p2817, %p2816
          %p2819 = pneg %p2818
          %s2820 = sadd.s32 %s2815, 5
          %s2821 = scalar_select %p2819, %s2820, %s2815
          %s2822 = smul.u32 %s2821, 2
          %s2823 = smul.addr %s2822, 4
          %s2824 = scalar_lea.vmem [#allocation3], %s2823
          %2825 = vst [vmem:[%s2824] sm:$0xf] %v2803
          %2826 = vst [vmem:[%s2824 + $0x4] sm:$0xf] %v2804
          %s2827 = sadd.s32 %s255, 5
          %p2828 = scmp.lt.s32.totalorder %s2827, 0
          %s2829 = ssub.s32 0, %s2827
          %s2830 = scalar_select %p2828, %s2829, %s2827
          %s2831 = sdiv.u32.pop %s2830, 5
          %s2832 = srem.u32.pop %s2830, 5
          %s2833 = ssub.s32 0, %s2832
          %s2834 = scalar_select %p2828, %s2833, %s2832
          %p2835 = scmp.ne.s32.totalorder %s2834, 0
          %p2836 = scmp.lt.s32.totalorder %s2834, 0
          %p2837 = pnand %p2836, %p2835
          %p2838 = pneg %p2837
          %s2839 = sadd.s32 %s2834, 5
          %s2840 = scalar_select %p2838, %s2839, %s2834
          %s2841 = smul.u32 %s2840, 2
          %s2842 = smul.addr %s2841, 4
          %s2843 = scalar_lea.vmem [#allocation3], %s2842
          %v2844 = vld [vmem:[%s2843] sm:$0xf]
          %v2845 = vld [vmem:[%s2843 + $0x4] sm:$0xf]
          %v2846 = vld [vmem:[#allocation7] sm:$0xf]
          %v2847 = vld [vmem:[#allocation7 + $0x4] sm:$0xf]
          %v2848 = vld [vmem:[#allocation7 + $0x8] sm:$0xf]
          %v2849 = vld [vmem:[#allocation7 + $0xc] sm:$0xf]
          %v2850 = vld [vmem:[#allocation7 + $0x10] sm:$0xf]
          %v2851 = vld [vmem:[#allocation7 + $0x14] sm:$0xf]
          %v2852 = vld [vmem:[#allocation7 + $0x18] sm:$0xf]
          %v2853 = vld [vmem:[#allocation7 + $0x1c] sm:$0xf]
          %v2854 = vld [vmem:[#allocation7 + $0x20] sm:$0xf]
          %v2855 = vld [vmem:[#allocation7 + $0x24] sm:$0xf]
          %v2856 = vld [vmem:[#allocation7 + $0x28] sm:$0xf]
          %v2857 = vld [vmem:[#allocation7 + $0x2c] sm:$0xf]
          %v2858 = vld [vmem:[#allocation7 + $0x30] sm:$0xf]
          %v2859 = vld [vmem:[#allocation7 + $0x34] sm:$0xf]
          %v2860 = vld [vmem:[#allocation7 + $0x38] sm:$0xf]
          %v2861 = vld [vmem:[#allocation7 + $0x3c] sm:$0xf]
          %v2864 = vunpack.c.l.b16 %v2844
          %v2865 = vunpack.c.l.b16 %v2845
          %v2866 = vpack.c.b16 %v2865, %v2864
          %v2884 = vunpack.c.l.b16 %v2846
          %v2885 = vunpack.c.l.b16 %v2847
          %v2886 = vunpack.c.l.b16 %v2848
          %v2887 = vunpack.c.l.b16 %v2849
          %v2888 = vunpack.c.l.b16 %v2850
          %v2889 = vunpack.c.l.b16 %v2851
          %v2890 = vunpack.c.l.b16 %v2852
          %v2891 = vunpack.c.l.b16 %v2853
          %v2892 = vunpack.c.l.b16 %v2854
          %v2893 = vunpack.c.l.b16 %v2855
          %v2894 = vunpack.c.l.b16 %v2856
          %v2895 = vunpack.c.l.b16 %v2857
          %v2896 = vunpack.c.l.b16 %v2858
          %v2897 = vunpack.c.l.b16 %v2859
          %v2898 = vunpack.c.l.b16 %v2860
          %v2899 = vunpack.c.l.b16 %v2861
          %v2900 = vpack.c.b16 %v2885, %v2884
          %v2901 = vpack.c.b16 %v2887, %v2886
          %v2902 = vpack.c.b16 %v2889, %v2888
          %v2903 = vpack.c.b16 %v2891, %v2890
          %v2904 = vpack.c.b16 %v2893, %v2892
          %v2905 = vpack.c.b16 %v2895, %v2894
          %v2906 = vpack.c.b16 %v2897, %v2896
          %v2907 = vpack.c.b16 %v2899, %v2898
          %2916 = vmatprep.subr.bf16.mxu0 0
          %2917 = vmatpush1.bf16.msra.mxu0 %v2907
          %2918 = vmatprep.subr.bf16.mxu0 0
          %2919 = vmatpush1.bf16.msra.mxu0 %v2906
          %2920 = vmatprep.subr.bf16.mxu0 0
          %2921 = vmatpush1.bf16.msra.mxu0 %v2905
          %2922 = vmatprep.subr.bf16.mxu0 0
          %2923 = vmatpush1.bf16.msra.mxu0 %v2904
          %2924 = vmatprep.subr.bf16.mxu0 0
          %2925 = vmatpush1.bf16.msra.mxu0 %v2903
          %2926 = vmatprep.subr.bf16.mxu0 0
          %2927 = vmatpush1.bf16.msra.mxu0 %v2902
          %2928 = vmatprep.subr.bf16.mxu0 0
          %2929 = vmatpush1.bf16.msra.mxu0 %v2901
          %2930 = vmatprep.subr.bf16.mxu0 0
          %2931 = vmatpush1.bf16.msra.mxu0 %v2900
          %2932 = vmatprep.subr.bf16.mxu0 0
          %2933 = vmatpush2.bf16.msra.mxu0 0
          %2934 = vmatprep.subr.bf16.mxu0 0
          %2935 = vmatpush2.bf16.msra.mxu0 0
          %2936 = vmatprep.subr.bf16.mxu0 0
          %2937 = vmatpush2.bf16.msra.mxu0 0
          %2938 = vmatprep.subr.bf16.mxu0 0
          %2939 = vmatpush2.bf16.msra.mxu0 0
          %2940 = vmatprep.subr.bf16.mxu0 0
          %2941 = vmatpush2.bf16.msra.mxu0 0
          %2942 = vmatprep.subr.bf16.mxu0 0
          %2943 = vmatpush2.bf16.msra.mxu0 0
          %2944 = vmatprep.subr.bf16.mxu0 0
          %2945 = vmatpush2.bf16.msra.mxu0 0
          %2946 = vmatprep.subr.bf16.mxu0 0
          %2947 = vmatpush2.bf16.msra.mxu0 0
          %2948 = vmatprep.mubr.bf16.mxu0 0
          %2949 = vmatmul.mubr.bf16.gmra.mxu0 %v2866
          %v2950 = vpop.f32.mrf.mxu0
          %v2951 = vadd.f32 0.0, %v2950
          %v2952 = vpop.f32.mrf.mxu0
          %v2953 = vpop.f32.mrf.mxu0
          %v2954 = vadd.f32 0.0, %v2953
          %v2955 = vpop.f32.mrf.mxu0
          %2956 = vdwg.mxu0
          %v2957 = vadd.f32 %v2450, %v2951
          %v2958 = vadd.f32 %v2451, %v2954
          %v2959 = vld [vmem:[%s2291] sm:$0xf]
          %v2960 = vld [vmem:[%s2291 + $0x4] sm:$0xf]
          %v2961 = vld [vmem:[%s2563] sm:$0xf]
          %v2962 = vld [vmem:[%s2563 + $0x4] sm:$0xf]
          %v2963 = vld [vmem:[%s2563 + $0x8] sm:$0xf]
          %v2964 = vld [vmem:[%s2563 + $0xc] sm:$0xf]
          %v2965 = vld [vmem:[%s2563 + $0x10] sm:$0xf]
          %v2966 = vld [vmem:[%s2563 + $0x14] sm:$0xf]
          %v2967 = vld [vmem:[%s2563 + $0x18] sm:$0xf]
          %v2968 = vld [vmem:[%s2563 + $0x1c] sm:$0xf]
          %v2969 = vld [vmem:[%s2563 + $0x20] sm:$0xf]
          %v2970 = vld [vmem:[%s2563 + $0x24] sm:$0xf]
          %v2971 = vld [vmem:[%s2563 + $0x28] sm:$0xf]
          %v2972 = vld [vmem:[%s2563 + $0x2c] sm:$0xf]
          %v2973 = vld [vmem:[%s2563 + $0x30] sm:$0xf]
          %v2974 = vld [vmem:[%s2563 + $0x34] sm:$0xf]
          %v2975 = vld [vmem:[%s2563 + $0x38] sm:$0xf]
          %v2976 = vld [vmem:[%s2563 + $0x3c] sm:$0xf]
          %v2979 = vunpack.c.l.b16 %v2959
          %v2980 = vunpack.c.l.b16 %v2960
          %v2981 = vpack.c.b16 %v2980, %v2979
          %v2999 = vunpack.c.l.b16 %v2961
          %v3000 = vunpack.c.l.b16 %v2962
          %v3001 = vunpack.c.l.b16 %v2963
          %v3002 = vunpack.c.l.b16 %v2964
          %v3003 = vunpack.c.l.b16 %v2965
          %v3004 = vunpack.c.l.b16 %v2966
          %v3005 = vunpack.c.l.b16 %v2967
          %v3006 = vunpack.c.l.b16 %v2968
          %v3007 = vunpack.c.l.b16 %v2969
          %v3008 = vunpack.c.l.b16 %v2970
          %v3009 = vunpack.c.l.b16 %v2971
          %v3010 = vunpack.c.l.b16 %v2972
          %v3011 = vunpack.c.l.b16 %v2973
          %v3012 = vunpack.c.l.b16 %v2974
          %v3013 = vunpack.c.l.b16 %v2975
          %v3014 = vunpack.c.l.b16 %v2976
          %v3015 = vpack.c.b16 %v3000, %v2999
          %v3016 = vpack.c.b16 %v3002, %v3001
          %v3017 = vpack.c.b16 %v3004, %v3003
          %v3018 = vpack.c.b16 %v3006, %v3005
          %v3019 = vpack.c.b16 %v3008, %v3007
          %v3020 = vpack.c.b16 %v3010, %v3009
          %v3021 = vpack.c.b16 %v3012, %v3011
          %v3022 = vpack.c.b16 %v3014, %v3013
          %3031 = vmatprep.subr.bf16.mxu0 0
          %3032 = vmatpush1.bf16.msra.mxu0 %v3022
          %3033 = vmatprep.subr.bf16.mxu0 0
          %3034 = vmatpush1.bf16.msra.mxu0 %v3021
          %3035 = vmatprep.subr.bf16.mxu0 0
          %3036 = vmatpush1.bf16.msra.mxu0 %v3020
          %3037 = vmatprep.subr.bf16.mxu0 0
          %3038 = vmatpush1.bf16.msra.mxu0 %v3019
          %3039 = vmatprep.subr.bf16.mxu0 0
          %3040 = vmatpush1.bf16.msra.mxu0 %v3018
          %3041 = vmatprep.subr.bf16.mxu0 0
          %3042 = vmatpush1.bf16.msra.mxu0 %v3017
          %3043 = vmatprep.subr.bf16.mxu0 0
          %3044 = vmatpush1.bf16.msra.mxu0 %v3016
          %3045 = vmatprep.subr.bf16.mxu0 0
          %3046 = vmatpush1.bf16.msra.mxu0 %v3015
          %3047 = vmatprep.subr.bf16.mxu0 0
          %3048 = vmatpush2.bf16.msra.mxu0 0
          %3049 = vmatprep.subr.bf16.mxu0 0
          %3050 = vmatpush2.bf16.msra.mxu0 0
          %3051 = vmatprep.subr.bf16.mxu0 0
          %3052 = vmatpush2.bf16.msra.mxu0 0
          %3053 = vmatprep.subr.bf16.mxu0 0
          %3054 = vmatpush2.bf16.msra.mxu0 0
          %3055 = vmatprep.subr.bf16.mxu0 0
          %3056 = vmatpush2.bf16.msra.mxu0 0
          %3057 = vmatprep.subr.bf16.mxu0 0
          %3058 = vmatpush2.bf16.msra.mxu0 0
          %3059 = vmatprep.subr.bf16.mxu0 0
          %3060 = vmatpush2.bf16.msra.mxu0 0
          %3061 = vmatprep.subr.bf16.mxu0 0
          %3062 = vmatpush2.bf16.msra.mxu0 0
          %3063 = vmatprep.mubr.bf16.mxu0 0
          %3064 = vmatmul.mubr.bf16.gmra.mxu0 %v2981
          %v3065 = vpop.f32.mrf.mxu0
          %v3066 = vadd.f32 0.0, %v3065
          %v3067 = vpop.f32.mrf.mxu0
          %v3068 = vpop.f32.mrf.mxu0
          %v3069 = vadd.f32 0.0, %v3068
          %v3070 = vpop.f32.mrf.mxu0
          %3071 = vdwg.mxu0
          %v3072 = vadd.f32 %v2957, %v3066
          %v3073 = vadd.f32 %v2958, %v3069
          %v3074 = vld [vmem:[%s2272] sm:$0xf]
          %v3075 = vld [vmem:[%s2272 + $0x4] sm:$0xf]
          %v3076 = vld [vmem:[%s2671] sm:$0xf]
          %v3077 = vld [vmem:[%s2671 + $0x4] sm:$0xf]
          %v3078 = vld [vmem:[%s2671 + $0x8] sm:$0xf]
          %v3079 = vld [vmem:[%s2671 + $0xc] sm:$0xf]
          %v3080 = vld [vmem:[%s2671 + $0x10] sm:$0xf]
          %v3081 = vld [vmem:[%s2671 + $0x14] sm:$0xf]
          %v3082 = vld [vmem:[%s2671 + $0x18] sm:$0xf]
          %v3083 = vld [vmem:[%s2671 + $0x1c] sm:$0xf]
          %v3084 = vld [vmem:[%s2671 + $0x20] sm:$0xf]
          %v3085 = vld [vmem:[%s2671 + $0x24] sm:$0xf]
          %v3086 = vld [vmem:[%s2671 + $0x28] sm:$0xf]
          %v3087 = vld [vmem:[%s2671 + $0x2c] sm:$0xf]
          %v3088 = vld [vmem:[%s2671 + $0x30] sm:$0xf]
          %v3089 = vld [vmem:[%s2671 + $0x34] sm:$0xf]
          %v3090 = vld [vmem:[%s2671 + $0x38] sm:$0xf]
          %v3091 = vld [vmem:[%s2671 + $0x3c] sm:$0xf]
          %v3094 = vunpack.c.l.b16 %v3074
          %v3095 = vunpack.c.l.b16 %v3075
          %v3096 = vpack.c.b16 %v3095, %v3094
          %v3114 = vunpack.c.l.b16 %v3076
          %v3115 = vunpack.c.l.b16 %v3077
          %v3116 = vunpack.c.l.b16 %v3078
          %v3117 = vunpack.c.l.b16 %v3079
          %v3118 = vunpack.c.l.b16 %v3080
          %v3119 = vunpack.c.l.b16 %v3081
          %v3120 = vunpack.c.l.b16 %v3082
          %v3121 = vunpack.c.l.b16 %v3083
          %v3122 = vunpack.c.l.b16 %v3084
          %v3123 = vunpack.c.l.b16 %v3085
          %v3124 = vunpack.c.l.b16 %v3086
          %v3125 = vunpack.c.l.b16 %v3087
          %v3126 = vunpack.c.l.b16 %v3088
          %v3127 = vunpack.c.l.b16 %v3089
          %v3128 = vunpack.c.l.b16 %v3090
          %v3129 = vunpack.c.l.b16 %v3091
          %v3130 = vpack.c.b16 %v3115, %v3114
          %v3131 = vpack.c.b16 %v3117, %v3116
          %v3132 = vpack.c.b16 %v3119, %v3118
          %v3133 = vpack.c.b16 %v3121, %v3120
          %v3134 = vpack.c.b16 %v3123, %v3122
          %v3135 = vpack.c.b16 %v3125, %v3124
          %v3136 = vpack.c.b16 %v3127, %v3126
          %v3137 = vpack.c.b16 %v3129, %v3128
          %3146 = vmatprep.subr.bf16.mxu0 0
          %3147 = vmatpush1.bf16.msra.mxu0 %v3137
          %3148 = vmatprep.subr.bf16.mxu0 0
          %3149 = vmatpush1.bf16.msra.mxu0 %v3136
          %3150 = vmatprep.subr.bf16.mxu0 0
          %3151 = vmatpush1.bf16.msra.mxu0 %v3135
          %3152 = vmatprep.subr.bf16.mxu0 0
          %3153 = vmatpush1.bf16.msra.mxu0 %v3134
          %3154 = vmatprep.subr.bf16.mxu0 0
          %3155 = vmatpush1.bf16.msra.mxu0 %v3133
          %3156 = vmatprep.subr.bf16.mxu0 0
          %3157 = vmatpush1.bf16.msra.mxu0 %v3132
          %3158 = vmatprep.subr.bf16.mxu0 0
          %3159 = vmatpush1.bf16.msra.mxu0 %v3131
          %3160 = vmatprep.subr.bf16.mxu0 0
          %3161 = vmatpush1.bf16.msra.mxu0 %v3130
          %3162 = vmatprep.subr.bf16.mxu0 0
          %3163 = vmatpush2.bf16.msra.mxu0 0
          %3164 = vmatprep.subr.bf16.mxu0 0
          %3165 = vmatpush2.bf16.msra.mxu0 0
          %3166 = vmatprep.subr.bf16.mxu0 0
          %3167 = vmatpush2.bf16.msra.mxu0 0
          %3168 = vmatprep.subr.bf16.mxu0 0
          %3169 = vmatpush2.bf16.msra.mxu0 0
          %3170 = vmatprep.subr.bf16.mxu0 0
          %3171 = vmatpush2.bf16.msra.mxu0 0
          %3172 = vmatprep.subr.bf16.mxu0 0
          %3173 = vmatpush2.bf16.msra.mxu0 0
          %3174 = vmatprep.subr.bf16.mxu0 0
          %3175 = vmatpush2.bf16.msra.mxu0 0
          %3176 = vmatprep.subr.bf16.mxu0 0
          %3177 = vmatpush2.bf16.msra.mxu0 0
          %3178 = vmatprep.mubr.bf16.mxu0 0
          %3179 = vmatmul.mubr.bf16.gmra.mxu0 %v3096
          %v3180 = vpop.f32.mrf.mxu0
          %v3181 = vadd.f32 0.0, %v3180
          %v3182 = vpop.f32.mrf.mxu0
          %v3183 = vpop.f32.mrf.mxu0
          %v3184 = vadd.f32 0.0, %v3183
          %v3185 = vpop.f32.mrf.mxu0
          %3186 = vdwg.mxu0
          %v3187 = vadd.f32 %v3072, %v3181
          %v3188 = vadd.f32 %v3073, %v3184
          %v3189 = vld [vmem:[#allocation2] sm:$0xff]
          %v3190 = vld [vmem:[#allocation2 + $0x8] sm:$0xff]
          %v3191 = vmul.f32 %v3189, %v277
          %v3192 = vmul.f32 %v3190, %v277
          %v3193 = vadd.f32 %v3191, %v3187
          %v3194 = vadd.f32 %v3192, %v3188
          %v3195 = vsub.f32 %v3193, %v284
          %v3196 = vsub.f32 %v3194, %v284
          %vm3197 = vcmp.gt.f32.partialorder %v3195, 0.0
          %vm3198 = vcmp.gt.f32.partialorder %v3196, 0.0
          %v3199 = vsel %vm3197, 1, 0
          %v3200 = vsel %vm3198, 1, 0
          %v3201 = vcvt.s32.f32 %v3199
          %v3202 = vcvt.s32.f32 %v3200
          %v3203 = vmul.f32 %v3201, %v284
          %v3204 = vmul.f32 %v3202, %v284
          %v3205 = vsub.f32 %v3193, %v3203
          %v3206 = vsub.f32 %v3194, %v3204
          %3207 = vst [vmem:[#allocation2] sm:$0xff] %v3205
          %3208 = vst [vmem:[#allocation2 + $0x8] sm:$0xff] %v3206
          %v3209 = vpack.c.bf16 %v3202, %v3201
          %v3211 = vunpack.c.l.b16 %v3209
          %v3212 = vunpack.c.h.b16 %v3209
          %v3213 = vpack.c.b16 %v3211, %v3211
          %v3214 = vpack.c.b16 %v3212, %v3212
          %s3217 = scalar_lea.vmem %s249, 8 [#allocation9]
          %3218 = vst [vmem:[%s3217] sm:$0xf] %v3213
          %3219 = vst [vmem:[%s3217 + $0x4] sm:$0xf] %v3214
          %3220 = vst [vmem:[%s2234] sm:$0xf] %v3213
          %3221 = vst [vmem:[%s2234 + $0x4] sm:$0xf] %v3214
          %s3222 = sadd.s32 %s255, 6
          %p3223 = scmp.lt.s32.totalorder %s3222, 0
          %s3224 = ssub.s32 0, %s3222
          %s3225 = scalar_select %p3223, %s3224, %s3222
          %s3226 = sdiv.u32.pop %s3225, 5
          %s3227 = srem.u32.pop %s3225, 5
          %s3228 = ssub.s32 0, %s3227
          %s3229 = scalar_select %p3223, %s3228, %s3227
          %p3230 = scmp.ne.s32.totalorder %s3229, 0
          %p3231 = scmp.lt.s32.totalorder %s3229, 0
          %p3232 = pnand %p3231, %p3230
          %p3233 = pneg %p3232
          %s3234 = sadd.s32 %s3229, 5
          %s3235 = scalar_select %p3233, %s3234, %s3229
          %s3236 = smul.u32 %s3235, 2
          %s3237 = smul.addr %s3236, 4
          %s3238 = scalar_lea.vmem [#allocation3], %s3237
          %v3239 = vld [vmem:[%s3238] sm:$0xf]
          %v3240 = vld [vmem:[%s3238 + $0x4] sm:$0xf]
          %v3241 = vld [vmem:[#allocation7] sm:$0xf]
          %v3242 = vld [vmem:[#allocation7 + $0x4] sm:$0xf]
          %v3243 = vld [vmem:[#allocation7 + $0x8] sm:$0xf]
          %v3244 = vld [vmem:[#allocation7 + $0xc] sm:$0xf]
          %v3245 = vld [vmem:[#allocation7 + $0x10] sm:$0xf]
          %v3246 = vld [vmem:[#allocation7 + $0x14] sm:$0xf]
          %v3247 = vld [vmem:[#allocation7 + $0x18] sm:$0xf]
          %v3248 = vld [vmem:[#allocation7 + $0x1c] sm:$0xf]
          %v3249 = vld [vmem:[#allocation7 + $0x20] sm:$0xf]
          %v3250 = vld [vmem:[#allocation7 + $0x24] sm:$0xf]
          %v3251 = vld [vmem:[#allocation7 + $0x28] sm:$0xf]
          %v3252 = vld [vmem:[#allocation7 + $0x2c] sm:$0xf]
          %v3253 = vld [vmem:[#allocation7 + $0x30] sm:$0xf]
          %v3254 = vld [vmem:[#allocation7 + $0x34] sm:$0xf]
          %v3255 = vld [vmem:[#allocation7 + $0x38] sm:$0xf]
          %v3256 = vld [vmem:[#allocation7 + $0x3c] sm:$0xf]
          %v3259 = vunpack.c.l.b16 %v3239
          %v3260 = vunpack.c.l.b16 %v3240
          %v3261 = vpack.c.b16 %v3260, %v3259
          %v3279 = vunpack.c.l.b16 %v3241
          %v3280 = vunpack.c.l.b16 %v3242
          %v3281 = vunpack.c.l.b16 %v3243
          %v3282 = vunpack.c.l.b16 %v3244
          %v3283 = vunpack.c.l.b16 %v3245
          %v3284 = vunpack.c.l.b16 %v3246
          %v3285 = vunpack.c.l.b16 %v3247
          %v3286 = vunpack.c.l.b16 %v3248
          %v3287 = vunpack.c.l.b16 %v3249
          %v3288 = vunpack.c.l.b16 %v3250
          %v3289 = vunpack.c.l.b16 %v3251
          %v3290 = vunpack.c.l.b16 %v3252
          %v3291 = vunpack.c.l.b16 %v3253
          %v3292 = vunpack.c.l.b16 %v3254
          %v3293 = vunpack.c.l.b16 %v3255
          %v3294 = vunpack.c.l.b16 %v3256
          %v3295 = vpack.c.b16 %v3280, %v3279
          %v3296 = vpack.c.b16 %v3282, %v3281
          %v3297 = vpack.c.b16 %v3284, %v3283
          %v3298 = vpack.c.b16 %v3286, %v3285
          %v3299 = vpack.c.b16 %v3288, %v3287
          %v3300 = vpack.c.b16 %v3290, %v3289
          %v3301 = vpack.c.b16 %v3292, %v3291
          %v3302 = vpack.c.b16 %v3294, %v3293
          %3311 = vmatprep.subr.bf16.mxu0 0
          %3312 = vmatpush1.bf16.msra.mxu0 %v3302
          %3313 = vmatprep.subr.bf16.mxu0 0
          %3314 = vmatpush1.bf16.msra.mxu0 %v3301
          %3315 = vmatprep.subr.bf16.mxu0 0
          %3316 = vmatpush1.bf16.msra.mxu0 %v3300
          %3317 = vmatprep.subr.bf16.mxu0 0
          %3318 = vmatpush1.bf16.msra.mxu0 %v3299
          %3319 = vmatprep.subr.bf16.mxu0 0
          %3320 = vmatpush1.bf16.msra.mxu0 %v3298
          %3321 = vmatprep.subr.bf16.mxu0 0
          %3322 = vmatpush1.bf16.msra.mxu0 %v3297
          %3323 = vmatprep.subr.bf16.mxu0 0
          %3324 = vmatpush1.bf16.msra.mxu0 %v3296
          %3325 = vmatprep.subr.bf16.mxu0 0
          %3326 = vmatpush1.bf16.msra.mxu0 %v3295
          %3327 = vmatprep.subr.bf16.mxu0 0
          %3328 = vmatpush2.bf16.msra.mxu0 0
          %3329 = vmatprep.subr.bf16.mxu0 0
          %3330 = vmatpush2.bf16.msra.mxu0 0
          %3331 = vmatprep.subr.bf16.mxu0 0
          %3332 = vmatpush2.bf16.msra.mxu0 0
          %3333 = vmatprep.subr.bf16.mxu0 0
          %3334 = vmatpush2.bf16.msra.mxu0 0
          %3335 = vmatprep.subr.bf16.mxu0 0
          %3336 = vmatpush2.bf16.msra.mxu0 0
          %3337 = vmatprep.subr.bf16.mxu0 0
          %3338 = vmatpush2.bf16.msra.mxu0 0
          %3339 = vmatprep.subr.bf16.mxu0 0
          %3340 = vmatpush2.bf16.msra.mxu0 0
          %3341 = vmatprep.subr.bf16.mxu0 0
          %3342 = vmatpush2.bf16.msra.mxu0 0
          %3343 = vmatprep.mubr.bf16.mxu0 0
          %3344 = vmatmul.mubr.bf16.gmra.mxu0 %v3261
          %v3345 = vpop.f32.mrf.mxu0
          %v3346 = vadd.f32 0.0, %v3345
          %v3347 = vpop.f32.mrf.mxu0
          %v3348 = vpop.f32.mrf.mxu0
          %v3349 = vadd.f32 0.0, %v3348
          %v3350 = vpop.f32.mrf.mxu0
          %3351 = vdwg.mxu0
          %v3352 = vadd.f32 %v2452, %v3346
          %v3353 = vadd.f32 %v2453, %v3349
          %v3354 = vld [vmem:[%s2843] sm:$0xf]
          %v3355 = vld [vmem:[%s2843 + $0x4] sm:$0xf]
          %v3356 = vld [vmem:[%s2563] sm:$0xf]
          %v3357 = vld [vmem:[%s2563 + $0x4] sm:$0xf]
          %v3358 = vld [vmem:[%s2563 + $0x8] sm:$0xf]
          %v3359 = vld [vmem:[%s2563 + $0xc] sm:$0xf]
          %v3360 = vld [vmem:[%s2563 + $0x10] sm:$0xf]
          %v3361 = vld [vmem:[%s2563 + $0x14] sm:$0xf]
          %v3362 = vld [vmem:[%s2563 + $0x18] sm:$0xf]
          %v3363 = vld [vmem:[%s2563 + $0x1c] sm:$0xf]
          %v3364 = vld [vmem:[%s2563 + $0x20] sm:$0xf]
          %v3365 = vld [vmem:[%s2563 + $0x24] sm:$0xf]
          %v3366 = vld [vmem:[%s2563 + $0x28] sm:$0xf]
          %v3367 = vld [vmem:[%s2563 + $0x2c] sm:$0xf]
          %v3368 = vld [vmem:[%s2563 + $0x30] sm:$0xf]
          %v3369 = vld [vmem:[%s2563 + $0x34] sm:$0xf]
          %v3370 = vld [vmem:[%s2563 + $0x38] sm:$0xf]
          %v3371 = vld [vmem:[%s2563 + $0x3c] sm:$0xf]
          %v3374 = vunpack.c.l.b16 %v3354
          %v3375 = vunpack.c.l.b16 %v3355
          %v3376 = vpack.c.b16 %v3375, %v3374
          %v3394 = vunpack.c.l.b16 %v3356
          %v3395 = vunpack.c.l.b16 %v3357
          %v3396 = vunpack.c.l.b16 %v3358
          %v3397 = vunpack.c.l.b16 %v3359
          %v3398 = vunpack.c.l.b16 %v3360
          %v3399 = vunpack.c.l.b16 %v3361
          %v3400 = vunpack.c.l.b16 %v3362
          %v3401 = vunpack.c.l.b16 %v3363
          %v3402 = vunpack.c.l.b16 %v3364
          %v3403 = vunpack.c.l.b16 %v3365
          %v3404 = vunpack.c.l.b16 %v3366
          %v3405 = vunpack.c.l.b16 %v3367
          %v3406 = vunpack.c.l.b16 %v3368
          %v3407 = vunpack.c.l.b16 %v3369
          %v3408 = vunpack.c.l.b16 %v3370
          %v3409 = vunpack.c.l.b16 %v3371
          %v3410 = vpack.c.b16 %v3395, %v3394
          %v3411 = vpack.c.b16 %v3397, %v3396
          %v3412 = vpack.c.b16 %v3399, %v3398
          %v3413 = vpack.c.b16 %v3401, %v3400
          %v3414 = vpack.c.b16 %v3403, %v3402
          %v3415 = vpack.c.b16 %v3405, %v3404
          %v3416 = vpack.c.b16 %v3407, %v3406
          %v3417 = vpack.c.b16 %v3409, %v3408
          %3426 = vmatprep.subr.bf16.mxu0 0
          %3427 = vmatpush1.bf16.msra.mxu0 %v3417
          %3428 = vmatprep.subr.bf16.mxu0 0
          %3429 = vmatpush1.bf16.msra.mxu0 %v3416
          %3430 = vmatprep.subr.bf16.mxu0 0
          %3431 = vmatpush1.bf16.msra.mxu0 %v3415
          %3432 = vmatprep.subr.bf16.mxu0 0
          %3433 = vmatpush1.bf16.msra.mxu0 %v3414
          %3434 = vmatprep.subr.bf16.mxu0 0
          %3435 = vmatpush1.bf16.msra.mxu0 %v3413
          %3436 = vmatprep.subr.bf16.mxu0 0
          %3437 = vmatpush1.bf16.msra.mxu0 %v3412
          %3438 = vmatprep.subr.bf16.mxu0 0
          %3439 = vmatpush1.bf16.msra.mxu0 %v3411
          %3440 = vmatprep.subr.bf16.mxu0 0
          %3441 = vmatpush1.bf16.msra.mxu0 %v3410
          %3442 = vmatprep.subr.bf16.mxu0 0
          %3443 = vmatpush2.bf16.msra.mxu0 0
          %3444 = vmatprep.subr.bf16.mxu0 0
          %3445 = vmatpush2.bf16.msra.mxu0 0
          %3446 = vmatprep.subr.bf16.mxu0 0
          %3447 = vmatpush2.bf16.msra.mxu0 0
          %3448 = vmatprep.subr.bf16.mxu0 0
          %3449 = vmatpush2.bf16.msra.mxu0 0
          %3450 = vmatprep.subr.bf16.mxu0 0
          %3451 = vmatpush2.bf16.msra.mxu0 0
          %3452 = vmatprep.subr.bf16.mxu0 0
          %3453 = vmatpush2.bf16.msra.mxu0 0
          %3454 = vmatprep.subr.bf16.mxu0 0
          %3455 = vmatpush2.bf16.msra.mxu0 0
          %3456 = vmatprep.subr.bf16.mxu0 0
          %3457 = vmatpush2.bf16.msra.mxu0 0
          %3458 = vmatprep.mubr.bf16.mxu0 0
          %3459 = vmatmul.mubr.bf16.gmra.mxu0 %v3376
          %v3460 = vpop.f32.mrf.mxu0
          %v3461 = vadd.f32 0.0, %v3460
          %v3462 = vpop.f32.mrf.mxu0
          %v3463 = vpop.f32.mrf.mxu0
          %v3464 = vadd.f32 0.0, %v3463
          %v3465 = vpop.f32.mrf.mxu0
          %3466 = vdwg.mxu0
          %v3467 = vadd.f32 %v3352, %v3461
          %v3468 = vadd.f32 %v3353, %v3464
          %v3469 = vld [vmem:[%s2291] sm:$0xf]
          %v3470 = vld [vmem:[%s2291 + $0x4] sm:$0xf]
          %v3471 = vld [vmem:[%s2671] sm:$0xf]
          %v3472 = vld [vmem:[%s2671 + $0x4] sm:$0xf]
          %v3473 = vld [vmem:[%s2671 + $0x8] sm:$0xf]
          %v3474 = vld [vmem:[%s2671 + $0xc] sm:$0xf]
          %v3475 = vld [vmem:[%s2671 + $0x10] sm:$0xf]
          %v3476 = vld [vmem:[%s2671 + $0x14] sm:$0xf]
          %v3477 = vld [vmem:[%s2671 + $0x18] sm:$0xf]
          %v3478 = vld [vmem:[%s2671 + $0x1c] sm:$0xf]
          %v3479 = vld [vmem:[%s2671 + $0x20] sm:$0xf]
          %v3480 = vld [vmem:[%s2671 + $0x24] sm:$0xf]
          %v3481 = vld [vmem:[%s2671 + $0x28] sm:$0xf]
          %v3482 = vld [vmem:[%s2671 + $0x2c] sm:$0xf]
          %v3483 = vld [vmem:[%s2671 + $0x30] sm:$0xf]
          %v3484 = vld [vmem:[%s2671 + $0x34] sm:$0xf]
          %v3485 = vld [vmem:[%s2671 + $0x38] sm:$0xf]
          %v3486 = vld [vmem:[%s2671 + $0x3c] sm:$0xf]
          %v3489 = vunpack.c.l.b16 %v3469
          %v3490 = vunpack.c.l.b16 %v3470
          %v3491 = vpack.c.b16 %v3490, %v3489
          %v3509 = vunpack.c.l.b16 %v3471
          %v3510 = vunpack.c.l.b16 %v3472
          %v3511 = vunpack.c.l.b16 %v3473
          %v3512 = vunpack.c.l.b16 %v3474
          %v3513 = vunpack.c.l.b16 %v3475
          %v3514 = vunpack.c.l.b16 %v3476
          %v3515 = vunpack.c.l.b16 %v3477
          %v3516 = vunpack.c.l.b16 %v3478
          %v3517 = vunpack.c.l.b16 %v3479
          %v3518 = vunpack.c.l.b16 %v3480
          %v3519 = vunpack.c.l.b16 %v3481
          %v3520 = vunpack.c.l.b16 %v3482
          %v3521 = vunpack.c.l.b16 %v3483
          %v3522 = vunpack.c.l.b16 %v3484
          %v3523 = vunpack.c.l.b16 %v3485
          %v3524 = vunpack.c.l.b16 %v3486
          %v3525 = vpack.c.b16 %v3510, %v3509
          %v3526 = vpack.c.b16 %v3512, %v3511
          %v3527 = vpack.c.b16 %v3514, %v3513
          %v3528 = vpack.c.b16 %v3516, %v3515
          %v3529 = vpack.c.b16 %v3518, %v3517
          %v3530 = vpack.c.b16 %v3520, %v3519
          %v3531 = vpack.c.b16 %v3522, %v3521
          %v3532 = vpack.c.b16 %v3524, %v3523
          %3541 = vmatprep.subr.bf16.mxu0 0
          %3542 = vmatpush1.bf16.msra.mxu0 %v3532
          %3543 = vmatprep.subr.bf16.mxu0 0
          %3544 = vmatpush1.bf16.msra.mxu0 %v3531
          %3545 = vmatprep.subr.bf16.mxu0 0
          %3546 = vmatpush1.bf16.msra.mxu0 %v3530
          %3547 = vmatprep.subr.bf16.mxu0 0
          %3548 = vmatpush1.bf16.msra.mxu0 %v3529
          %3549 = vmatprep.subr.bf16.mxu0 0
          %3550 = vmatpush1.bf16.msra.mxu0 %v3528
          %3551 = vmatprep.subr.bf16.mxu0 0
          %3552 = vmatpush1.bf16.msra.mxu0 %v3527
          %3553 = vmatprep.subr.bf16.mxu0 0
          %3554 = vmatpush1.bf16.msra.mxu0 %v3526
          %3555 = vmatprep.subr.bf16.mxu0 0
          %3556 = vmatpush1.bf16.msra.mxu0 %v3525
          %3557 = vmatprep.subr.bf16.mxu0 0
          %3558 = vmatpush2.bf16.msra.mxu0 0
          %3559 = vmatprep.subr.bf16.mxu0 0
          %3560 = vmatpush2.bf16.msra.mxu0 0
          %3561 = vmatprep.subr.bf16.mxu0 0
          %3562 = vmatpush2.bf16.msra.mxu0 0
          %3563 = vmatprep.subr.bf16.mxu0 0
          %3564 = vmatpush2.bf16.msra.mxu0 0
          %3565 = vmatprep.subr.bf16.mxu0 0
          %3566 = vmatpush2.bf16.msra.mxu0 0
          %3567 = vmatprep.subr.bf16.mxu0 0
          %3568 = vmatpush2.bf16.msra.mxu0 0
          %3569 = vmatprep.subr.bf16.mxu0 0
          %3570 = vmatpush2.bf16.msra.mxu0 0
          %3571 = vmatprep.subr.bf16.mxu0 0
          %3572 = vmatpush2.bf16.msra.mxu0 0
          %3573 = vmatprep.mubr.bf16.mxu0 0
          %3574 = vmatmul.mubr.bf16.gmra.mxu0 %v3491
          %v3575 = vpop.f32.mrf.mxu0
          %v3576 = vadd.f32 0.0, %v3575
          %v3577 = vpop.f32.mrf.mxu0
          %v3578 = vpop.f32.mrf.mxu0
          %v3579 = vadd.f32 0.0, %v3578
          %v3580 = vpop.f32.mrf.mxu0
          %3581 = vdwg.mxu0
          %v3582 = vadd.f32 %v3467, %v3576
          %v3583 = vadd.f32 %v3468, %v3579
          %v3584 = vld [vmem:[#allocation2] sm:$0xff]
          %v3585 = vld [vmem:[#allocation2 + $0x8] sm:$0xff]
          %v3586 = vmul.f32 %v3584, %v277
          %v3587 = vmul.f32 %v3585, %v277
          %v3588 = vadd.f32 %v3586, %v3582
          %v3589 = vadd.f32 %v3587, %v3583
          %v3590 = vsub.f32 %v3588, %v284
          %v3591 = vsub.f32 %v3589, %v284
          %vm3592 = vcmp.gt.f32.partialorder %v3590, 0.0
          %vm3593 = vcmp.gt.f32.partialorder %v3591, 0.0
          %v3594 = vsel %vm3592, 1, 0
          %v3595 = vsel %vm3593, 1, 0
          %v3596 = vcvt.s32.f32 %v3594
          %v3597 = vcvt.s32.f32 %v3595
          %v3598 = vmul.f32 %v3596, %v284
          %v3599 = vmul.f32 %v3597, %v284
          %v3600 = vsub.f32 %v3588, %v3598
          %v3601 = vsub.f32 %v3589, %v3599
          %3602 = vst [vmem:[#allocation2] sm:$0xff] %v3600
          %3603 = vst [vmem:[#allocation2 + $0x8] sm:$0xff] %v3601
          %v3604 = vpack.c.bf16 %v3597, %v3596
          %v3606 = vunpack.c.l.b16 %v3604
          %v3607 = vunpack.c.h.b16 %v3604
          %v3608 = vpack.c.b16 %v3606, %v3606
          %v3609 = vpack.c.b16 %v3607, %v3607
          %s3612 = scalar_lea.vmem %s249, 16 [#allocation9]
          %3613 = vst [vmem:[%s3612] sm:$0xf] %v3608
          %3614 = vst [vmem:[%s3612 + $0x4] sm:$0xf] %v3609
          %3615 = vst [vmem:[%s2253] sm:$0xf] %v3608
          %3616 = vst [vmem:[%s2253 + $0x4] sm:$0xf] %v3609
          %s3617 = sadd.s32 %s255, 7
          %p3618 = scmp.lt.s32.totalorder %s3617, 0
          %s3619 = ssub.s32 0, %s3617
          %s3620 = scalar_select %p3618, %s3619, %s3617
          %s3621 = sdiv.u32.pop %s3620, 5
          %s3622 = srem.u32.pop %s3620, 5
          %s3623 = ssub.s32 0, %s3622
          %s3624 = scalar_select %p3618, %s3623, %s3622
          %p3625 = scmp.ne.s32.totalorder %s3624, 0
          %p3626 = scmp.lt.s32.totalorder %s3624, 0
          %p3627 = pnand %p3626, %p3625
          %p3628 = pneg %p3627
          %s3629 = sadd.s32 %s3624, 5
          %s3630 = scalar_select %p3628, %s3629, %s3624
          %s3631 = smul.u32 %s3630, 2
          %s3632 = smul.addr %s3631, 4
          %s3633 = scalar_lea.vmem [#allocation3], %s3632
          %v3634 = vld [vmem:[%s3633] sm:$0xf]
          %v3635 = vld [vmem:[%s3633 + $0x4] sm:$0xf]
          %v3636 = vld [vmem:[#allocation7] sm:$0xf]
          %v3637 = vld [vmem:[#allocation7 + $0x4] sm:$0xf]
          %v3638 = vld [vmem:[#allocation7 + $0x8] sm:$0xf]
          %v3639 = vld [vmem:[#allocation7 + $0xc] sm:$0xf]
          %v3640 = vld [vmem:[#allocation7 + $0x10] sm:$0xf]
          %v3641 = vld [vmem:[#allocation7 + $0x14] sm:$0xf]
          %v3642 = vld [vmem:[#allocation7 + $0x18] sm:$0xf]
          %v3643 = vld [vmem:[#allocation7 + $0x1c] sm:$0xf]
          %v3644 = vld [vmem:[#allocation7 + $0x20] sm:$0xf]
          %v3645 = vld [vmem:[#allocation7 + $0x24] sm:$0xf]
          %v3646 = vld [vmem:[#allocation7 + $0x28] sm:$0xf]
          %v3647 = vld [vmem:[#allocation7 + $0x2c] sm:$0xf]
          %v3648 = vld [vmem:[#allocation7 + $0x30] sm:$0xf]
          %v3649 = vld [vmem:[#allocation7 + $0x34] sm:$0xf]
          %v3650 = vld [vmem:[#allocation7 + $0x38] sm:$0xf]
          %v3651 = vld [vmem:[#allocation7 + $0x3c] sm:$0xf]
          %v3654 = vunpack.c.l.b16 %v3634
          %v3655 = vunpack.c.l.b16 %v3635
          %v3656 = vpack.c.b16 %v3655, %v3654
          %v3674 = vunpack.c.l.b16 %v3636
          %v3675 = vunpack.c.l.b16 %v3637
          %v3676 = vunpack.c.l.b16 %v3638
          %v3677 = vunpack.c.l.b16 %v3639
          %v3678 = vunpack.c.l.b16 %v3640
          %v3679 = vunpack.c.l.b16 %v3641
          %v3680 = vunpack.c.l.b16 %v3642
          %v3681 = vunpack.c.l.b16 %v3643
          %v3682 = vunpack.c.l.b16 %v3644
          %v3683 = vunpack.c.l.b16 %v3645
          %v3684 = vunpack.c.l.b16 %v3646
          %v3685 = vunpack.c.l.b16 %v3647
          %v3686 = vunpack.c.l.b16 %v3648
          %v3687 = vunpack.c.l.b16 %v3649
          %v3688 = vunpack.c.l.b16 %v3650
          %v3689 = vunpack.c.l.b16 %v3651
          %v3690 = vpack.c.b16 %v3675, %v3674
          %v3691 = vpack.c.b16 %v3677, %v3676
          %v3692 = vpack.c.b16 %v3679, %v3678
          %v3693 = vpack.c.b16 %v3681, %v3680
          %v3694 = vpack.c.b16 %v3683, %v3682
          %v3695 = vpack.c.b16 %v3685, %v3684
          %v3696 = vpack.c.b16 %v3687, %v3686
          %v3697 = vpack.c.b16 %v3689, %v3688
          %3706 = vmatprep.subr.bf16.mxu0 0
          %3707 = vmatpush1.bf16.msra.mxu0 %v3697
          %3708 = vmatprep.subr.bf16.mxu0 0
          %3709 = vmatpush1.bf16.msra.mxu0 %v3696
          %3710 = vmatprep.subr.bf16.mxu0 0
          %3711 = vmatpush1.bf16.msra.mxu0 %v3695
          %3712 = vmatprep.subr.bf16.mxu0 0
          %3713 = vmatpush1.bf16.msra.mxu0 %v3694
          %3714 = vmatprep.subr.bf16.mxu0 0
          %3715 = vmatpush1.bf16.msra.mxu0 %v3693
          %3716 = vmatprep.subr.bf16.mxu0 0
          %3717 = vmatpush1.bf16.msra.mxu0 %v3692
          %3718 = vmatprep.subr.bf16.mxu0 0
          %3719 = vmatpush1.bf16.msra.mxu0 %v3691
          %3720 = vmatprep.subr.bf16.mxu0 0
          %3721 = vmatpush1.bf16.msra.mxu0 %v3690
          %3722 = vmatprep.subr.bf16.mxu0 0
          %3723 = vmatpush2.bf16.msra.mxu0 0
          %3724 = vmatprep.subr.bf16.mxu0 0
          %3725 = vmatpush2.bf16.msra.mxu0 0
          %3726 = vmatprep.subr.bf16.mxu0 0
          %3727 = vmatpush2.bf16.msra.mxu0 0
          %3728 = vmatprep.subr.bf16.mxu0 0
          %3729 = vmatpush2.bf16.msra.mxu0 0
          %3730 = vmatprep.subr.bf16.mxu0 0
          %3731 = vmatpush2.bf16.msra.mxu0 0
          %3732 = vmatprep.subr.bf16.mxu0 0
          %3733 = vmatpush2.bf16.msra.mxu0 0
          %3734 = vmatprep.subr.bf16.mxu0 0
          %3735 = vmatpush2.bf16.msra.mxu0 0
          %3736 = vmatprep.subr.bf16.mxu0 0
          %3737 = vmatpush2.bf16.msra.mxu0 0
          %3738 = vmatprep.mubr.bf16.mxu0 0
          %3739 = vmatmul.mubr.bf16.gmra.mxu0 %v3656
          %v3740 = vpop.f32.mrf.mxu0
          %v3741 = vadd.f32 0.0, %v3740
          %v3742 = vpop.f32.mrf.mxu0
          %v3743 = vpop.f32.mrf.mxu0
          %v3744 = vadd.f32 0.0, %v3743
          %v3745 = vpop.f32.mrf.mxu0
          %3746 = vdwg.mxu0
          %v3747 = vadd.f32 %v2454, %v3741
          %v3748 = vadd.f32 %v2455, %v3744
          %v3749 = vld [vmem:[%s3238] sm:$0xf]
          %v3750 = vld [vmem:[%s3238 + $0x4] sm:$0xf]
          %v3751 = vld [vmem:[%s2563] sm:$0xf]
          %v3752 = vld [vmem:[%s2563 + $0x4] sm:$0xf]
          %v3753 = vld [vmem:[%s2563 + $0x8] sm:$0xf]
          %v3754 = vld [vmem:[%s2563 + $0xc] sm:$0xf]
          %v3755 = vld [vmem:[%s2563 + $0x10] sm:$0xf]
          %v3756 = vld [vmem:[%s2563 + $0x14] sm:$0xf]
          %v3757 = vld [vmem:[%s2563 + $0x18] sm:$0xf]
          %v3758 = vld [vmem:[%s2563 + $0x1c] sm:$0xf]
          %v3759 = vld [vmem:[%s2563 + $0x20] sm:$0xf]
          %v3760 = vld [vmem:[%s2563 + $0x24] sm:$0xf]
          %v3761 = vld [vmem:[%s2563 + $0x28] sm:$0xf]
          %v3762 = vld [vmem:[%s2563 + $0x2c] sm:$0xf]
          %v3763 = vld [vmem:[%s2563 + $0x30] sm:$0xf]
          %v3764 = vld [vmem:[%s2563 + $0x34] sm:$0xf]
          %v3765 = vld [vmem:[%s2563 + $0x38] sm:$0xf]
          %v3766 = vld [vmem:[%s2563 + $0x3c] sm:$0xf]
          %v3769 = vunpack.c.l.b16 %v3749
          %v3770 = vunpack.c.l.b16 %v3750
          %v3771 = vpack.c.b16 %v3770, %v3769
          %v3789 = vunpack.c.l.b16 %v3751
          %v3790 = vunpack.c.l.b16 %v3752
          %v3791 = vunpack.c.l.b16 %v3753
          %v3792 = vunpack.c.l.b16 %v3754
          %v3793 = vunpack.c.l.b16 %v3755
          %v3794 = vunpack.c.l.b16 %v3756
          %v3795 = vunpack.c.l.b16 %v3757
          %v3796 = vunpack.c.l.b16 %v3758
          %v3797 = vunpack.c.l.b16 %v3759
          %v3798 = vunpack.c.l.b16 %v3760
          %v3799 = vunpack.c.l.b16 %v3761
          %v3800 = vunpack.c.l.b16 %v3762
          %v3801 = vunpack.c.l.b16 %v3763
          %v3802 = vunpack.c.l.b16 %v3764
          %v3803 = vunpack.c.l.b16 %v3765
          %v3804 = vunpack.c.l.b16 %v3766
          %v3805 = vpack.c.b16 %v3790, %v3789
          %v3806 = vpack.c.b16 %v3792, %v3791
          %v3807 = vpack.c.b16 %v3794, %v3793
          %v3808 = vpack.c.b16 %v3796, %v3795
          %v3809 = vpack.c.b16 %v3798, %v3797
          %v3810 = vpack.c.b16 %v3800, %v3799
          %v3811 = vpack.c.b16 %v3802, %v3801
          %v3812 = vpack.c.b16 %v3804, %v3803
          %3821 = vmatprep.subr.bf16.mxu0 0
          %3822 = vmatpush1.bf16.msra.mxu0 %v3812
          %3823 = vmatprep.subr.bf16.mxu0 0
          %3824 = vmatpush1.bf16.msra.mxu0 %v3811
          %3825 = vmatprep.subr.bf16.mxu0 0
          %3826 = vmatpush1.bf16.msra.mxu0 %v3810
          %3827 = vmatprep.subr.bf16.mxu0 0
          %3828 = vmatpush1.bf16.msra.mxu0 %v3809
          %3829 = vmatprep.subr.bf16.mxu0 0
          %3830 = vmatpush1.bf16.msra.mxu0 %v3808
          %3831 = vmatprep.subr.bf16.mxu0 0
          %3832 = vmatpush1.bf16.msra.mxu0 %v3807
          %3833 = vmatprep.subr.bf16.mxu0 0
          %3834 = vmatpush1.bf16.msra.mxu0 %v3806
          %3835 = vmatprep.subr.bf16.mxu0 0
          %3836 = vmatpush1.bf16.msra.mxu0 %v3805
          %3837 = vmatprep.subr.bf16.mxu0 0
          %3838 = vmatpush2.bf16.msra.mxu0 0
          %3839 = vmatprep.subr.bf16.mxu0 0
          %3840 = vmatpush2.bf16.msra.mxu0 0
          %3841 = vmatprep.subr.bf16.mxu0 0
          %3842 = vmatpush2.bf16.msra.mxu0 0
          %3843 = vmatprep.subr.bf16.mxu0 0
          %3844 = vmatpush2.bf16.msra.mxu0 0
          %3845 = vmatprep.subr.bf16.mxu0 0
          %3846 = vmatpush2.bf16.msra.mxu0 0
          %3847 = vmatprep.subr.bf16.mxu0 0
          %3848 = vmatpush2.bf16.msra.mxu0 0
          %3849 = vmatprep.subr.bf16.mxu0 0
          %3850 = vmatpush2.bf16.msra.mxu0 0
          %3851 = vmatprep.subr.bf16.mxu0 0
          %3852 = vmatpush2.bf16.msra.mxu0 0
          %3853 = vmatprep.mubr.bf16.mxu0 0
          %3854 = vmatmul.mubr.bf16.gmra.mxu0 %v3771
          %v3855 = vpop.f32.mrf.mxu0
          %v3856 = vadd.f32 0.0, %v3855
          %v3857 = vpop.f32.mrf.mxu0
          %v3858 = vpop.f32.mrf.mxu0
          %v3859 = vadd.f32 0.0, %v3858
          %v3860 = vpop.f32.mrf.mxu0
          %3861 = vdwg.mxu0
          %v3862 = vadd.f32 %v3747, %v3856
          %v3863 = vadd.f32 %v3748, %v3859
          %v3864 = vld [vmem:[%s2843] sm:$0xf]
          %v3865 = vld [vmem:[%s2843 + $0x4] sm:$0xf]
          %v3866 = vld [vmem:[%s2671] sm:$0xf]
          %v3867 = vld [vmem:[%s2671 + $0x4] sm:$0xf]
          %v3868 = vld [vmem:[%s2671 + $0x8] sm:$0xf]
          %v3869 = vld [vmem:[%s2671 + $0xc] sm:$0xf]
          %v3870 = vld [vmem:[%s2671 + $0x10] sm:$0xf]
          %v3871 = vld [vmem:[%s2671 + $0x14] sm:$0xf]
          %v3872 = vld [vmem:[%s2671 + $0x18] sm:$0xf]
          %v3873 = vld [vmem:[%s2671 + $0x1c] sm:$0xf]
          %v3874 = vld [vmem:[%s2671 + $0x20] sm:$0xf]
          %v3875 = vld [vmem:[%s2671 + $0x24] sm:$0xf]
          %v3876 = vld [vmem:[%s2671 + $0x28] sm:$0xf]
          %v3877 = vld [vmem:[%s2671 + $0x2c] sm:$0xf]
          %v3878 = vld [vmem:[%s2671 + $0x30] sm:$0xf]
          %v3879 = vld [vmem:[%s2671 + $0x34] sm:$0xf]
          %v3880 = vld [vmem:[%s2671 + $0x38] sm:$0xf]
          %v3881 = vld [vmem:[%s2671 + $0x3c] sm:$0xf]
          %v3884 = vunpack.c.l.b16 %v3864
          %v3885 = vunpack.c.l.b16 %v3865
          %v3886 = vpack.c.b16 %v3885, %v3884
          %v3904 = vunpack.c.l.b16 %v3866
          %v3905 = vunpack.c.l.b16 %v3867
          %v3906 = vunpack.c.l.b16 %v3868
          %v3907 = vunpack.c.l.b16 %v3869
          %v3908 = vunpack.c.l.b16 %v3870
          %v3909 = vunpack.c.l.b16 %v3871
          %v3910 = vunpack.c.l.b16 %v3872
          %v3911 = vunpack.c.l.b16 %v3873
          %v3912 = vunpack.c.l.b16 %v3874
          %v3913 = vunpack.c.l.b16 %v3875
          %v3914 = vunpack.c.l.b16 %v3876
          %v3915 = vunpack.c.l.b16 %v3877
          %v3916 = vunpack.c.l.b16 %v3878
          %v3917 = vunpack.c.l.b16 %v3879
          %v3918 = vunpack.c.l.b16 %v3880
          %v3919 = vunpack.c.l.b16 %v3881
          %v3920 = vpack.c.b16 %v3905, %v3904
          %v3921 = vpack.c.b16 %v3907, %v3906
          %v3922 = vpack.c.b16 %v3909, %v3908
          %v3923 = vpack.c.b16 %v3911, %v3910
          %v3924 = vpack.c.b16 %v3913, %v3912
          %v3925 = vpack.c.b16 %v3915, %v3914
          %v3926 = vpack.c.b16 %v3917, %v3916
          %v3927 = vpack.c.b16 %v3919, %v3918
          %3936 = vmatprep.subr.bf16.mxu0 0
          %3937 = vmatpush1.bf16.msra.mxu0 %v3927
          %3938 = vmatprep.subr.bf16.mxu0 0
          %3939 = vmatpush1.bf16.msra.mxu0 %v3926
          %3940 = vmatprep.subr.bf16.mxu0 0
          %3941 = vmatpush1.bf16.msra.mxu0 %v3925
          %3942 = vmatprep.subr.bf16.mxu0 0
          %3943 = vmatpush1.bf16.msra.mxu0 %v3924
          %3944 = vmatprep.subr.bf16.mxu0 0
          %3945 = vmatpush1.bf16.msra.mxu0 %v3923
          %3946 = vmatprep.subr.bf16.mxu0 0
          %3947 = vmatpush1.bf16.msra.mxu0 %v3922
          %3948 = vmatprep.subr.bf16.mxu0 0
          %3949 = vmatpush1.bf16.msra.mxu0 %v3921
          %3950 = vmatprep.subr.bf16.mxu0 0
          %3951 = vmatpush1.bf16.msra.mxu0 %v3920
          %3952 = vmatprep.subr.bf16.mxu0 0
          %3953 = vmatpush2.bf16.msra.mxu0 0
          %3954 = vmatprep.subr.bf16.mxu0 0
          %3955 = vmatpush2.bf16.msra.mxu0 0
          %3956 = vmatprep.subr.bf16.mxu0 0
          %3957 = vmatpush2.bf16.msra.mxu0 0
          %3958 = vmatprep.subr.bf16.mxu0 0
          %3959 = vmatpush2.bf16.msra.mxu0 0
          %3960 = vmatprep.subr.bf16.mxu0 0
          %3961 = vmatpush2.bf16.msra.mxu0 0
          %3962 = vmatprep.subr.bf16.mxu0 0
          %3963 = vmatpush2.bf16.msra.mxu0 0
          %3964 = vmatprep.subr.bf16.mxu0 0
          %3965 = vmatpush2.bf16.msra.mxu0 0
          %3966 = vmatprep.subr.bf16.mxu0 0
          %3967 = vmatpush2.bf16.msra.mxu0 0
          %3968 = vmatprep.mubr.bf16.mxu0 0
          %3969 = vmatmul.mubr.bf16.gmra.mxu0 %v3886
          %v3970 = vpop.f32.mrf.mxu0
          %v3971 = vadd.f32 0.0, %v3970
          %v3972 = vpop.f32.mrf.mxu0
          %v3973 = vpop.f32.mrf.mxu0
          %v3974 = vadd.f32 0.0, %v3973
          %v3975 = vpop.f32.mrf.mxu0
          %3976 = vdwg.mxu0
          %v3977 = vadd.f32 %v3862, %v3971
          %v3978 = vadd.f32 %v3863, %v3974
          %v3979 = vld [vmem:[#allocation2] sm:$0xff]
          %v3980 = vld [vmem:[#allocation2 + $0x8] sm:$0xff]
          %v3981 = vmul.f32 %v3979, %v277
          %v3982 = vmul.f32 %v3980, %v277
          %v3983 = vadd.f32 %v3981, %v3977
          %v3984 = vadd.f32 %v3982, %v3978
          %v3985 = vsub.f32 %v3983, %v284
          %v3986 = vsub.f32 %v3984, %v284
          %vm3987 = vcmp.gt.f32.partialorder %v3985, 0.0
          %vm3988 = vcmp.gt.f32.partialorder %v3986, 0.0
          %v3989 = vsel %vm3987, 1, 0
          %v3990 = vsel %vm3988, 1, 0
          %v3991 = vcvt.s32.f32 %v3989
          %v3992 = vcvt.s32.f32 %v3990
          %v3993 = vmul.f32 %v3991, %v284
          %v3994 = vmul.f32 %v3992, %v284
          %v3995 = vsub.f32 %v3983, %v3993
          %v3996 = vsub.f32 %v3984, %v3994
          %3997 = vst [vmem:[#allocation2] sm:$0xff] %v3995
          %3998 = vst [vmem:[#allocation2 + $0x8] sm:$0xff] %v3996
          %v3999 = vpack.c.bf16 %v3992, %v3991
          %v4001 = vunpack.c.l.b16 %v3999
          %v4002 = vunpack.c.h.b16 %v3999
          %v4003 = vpack.c.b16 %v4001, %v4001
          %v4004 = vpack.c.b16 %v4002, %v4002
          %s4007 = scalar_lea.vmem %s249, 24 [#allocation9]
          %4008 = vst [vmem:[%s4007] sm:$0xf] %v4003
          %4009 = vst [vmem:[%s4007 + $0x4] sm:$0xf] %v4004
          %4010 = vst [vmem:[%s2272] sm:$0xf] %v4003
          %4011 = vst [vmem:[%s2272 + $0x4] sm:$0xf] %v4004
        $region56: #{tpu_custom_call.1} parent=35 // pred_fallthru
          _
        %s4012 = sand.u32 %s135, 1
        %s4013 = scalar_lea.sflag [#allocation6], %s4012
        %s4014 = sand.u32 %s135, 1
        %s4015 = smul.addr %s4014, 32
        %s4016 = scalar_lea.vmem [#allocation9], %s4015
        // Predicated region
        $region57: #{tpu_custom_call.1} parent=35 // pred_check
          %p4017 = pneg %p145
        $region58: #{tpu_custom_call.1} parent=35 // pred_check_branch
          %4019 = sbr.rel (%p4017) target = $region60
        $region59: #{tpu_custom_call.1} parent=35 // pred_region
          %s4020 = smul.u32 4, %s27
          %s4021 = smul.u32 2, %s26
          %s4023 = ssub.s32 512, 512
          %4024 = vsyncadd %s4013, %s4023
          %s4025 = smul.addr %s4020, 2
          %s4026 = sadd.s32 %s4021, %s4025
          %s4027 = smul.addr %s4026, 64
          %s4028 = scalar_lea.hbm %s4, %s4027
          %s4029 = sshll.u32 %s4016, 4
          %s4030 = int_to_ptr.vmem [resolvable:$true] %s4029
          %4035 = dma.vmem_to_hbm [thread:$0]  %s4030, 512, %s4028, %s4013, 64, 64, 4
        $region60: #{tpu_custom_call.1} parent=35 // pred_fallthru
          _
      $region36: #{tpu_custom_call.1} parent=5 // pred_fallthru
        _
      %p4036 = scmp.le.s32.totalorder 2, %s17
      // Predicated region
      $region61: #{tpu_custom_call.1} parent=5 // pred_check
        %p4037 = pneg %p4036
      $region62: #{tpu_custom_call.1} parent=5 // pred_check_branch
        %4039 = sbr.rel (%p4037) target = $region64
      $region63: #{tpu_custom_call.1} parent=5 // pred_region
        %s4040 = ssub.s32 %s17, 2
        // Predicated region
        $region65: #{tpu_custom_call.1} parent=63 // pred_check
          %p4041 = pneg %p151
        $region66: #{tpu_custom_call.1} parent=63 // pred_check_branch
          %4043 = sbr.rel (%p4041) target = $region68
        $region67: #{tpu_custom_call.1} parent=63 // pred_region
          %s4044 = sand.u32 %s136, 1
          %s4045 = scalar_lea.sflag [#allocation6], %s4044
          %s4046 = sand.u32 %s136, 1
          %s4047 = smul.addr %s4046, 32
          %s4048 = scalar_lea.vmem [#allocation9], %s4047
          %4049 = dma.done %s4045, 512
        $region68: #{tpu_custom_call.1} parent=63 // pred_fallthru
          _
      $region64: #{tpu_custom_call.1} parent=5 // pred_fallthru
        _
    $region6: #{tpu_custom_call.1} parent=1 // loop_footer
      %s21 = sadd.s32 1, %s17
    $region7: #{tpu_custom_call.1} parent=1 // loop_footer_branch
      %16 = sbr.rel target = $region3
    $region8: #{tpu_custom_call.1} parent=1 // loop_exit
      _
    %4050 = vsyncpa [#allocation5], 1
    %s4051 = scalar_lea.sflag [#allocation5], 1
    %4052 = vsyncpa %s4051, 1
    %4053 = vsyncpa [#allocation8], 1
    %4054 = vsyncpa [#allocation6], 1
    %s4055 = scalar_lea.sflag [#allocation6], 1
    %4056 = vsyncpa %s4055, 1

</llo_original>
